<compile_context>
chip_gen: v7x
topology: tpu7x:2x2x1
jax: 0.10.0
libtpu: 0.0.40
codegen_flags: <defaults>
</compile_context>

<pallas_src>
import functools

import jax
import jax.numpy as jnp
from jax.experimental import pallas as pl
from jax.experimental.pallas import tpu as pltpu

K = 7
PAD = K // 2


def spatial_attention_kernel(w_ref, b_ref, x_ref, o_ref,
                             max_acc, sum_acc, flat_maps, mpad, apad,
                             *, C, ct, n_ct, H, W):
    # w_ref     : (2*K*K,) f32 SMEM  -- conv weight, (in_ch, ky, kx) row-major
    # b_ref     : (1,)     f32 SMEM  -- conv bias
    # x_ref     : (ct, H*W) VMEM     -- one channel tile, lane-dense spatial axis
    # o_ref     : (1, H*W)  VMEM     -- lane-dense output block
    # max_acc   : (8, H*W)  VMEM     -- running channel max (bf16 if x is bf16)
    # sum_acc   : (8, H*W)  VMEM f32 -- running channel sum
    # flat_maps : (2, H*W)  VMEM f32 -- combined (max, mean) maps, lane-dense
    # mpad/apad : (H+2P, W+2P) f32   -- zero-padded 2-D maps for the 7x7 conv
    c_idx = pl.program_id(1)
    HW = H * W

    @pl.when(c_idx == 0)
    def _():
        max_acc[...] = jnp.full(max_acc.shape, -jnp.inf, max_acc.dtype)
        sum_acc[...] = jnp.zeros(sum_acc.shape, sum_acc.dtype)

    def accumulate(n_groups, tail):
        # n_groups full 8-channel sublane groups + a (<8)-channel tail; both static.
        if n_groups > 0:
            def body(g, carry):
                base = pl.multiple_of(g * 8, 8)
                xg = x_ref[pl.ds(base, 8), :]                       # (8, HW)
                max_acc[...] = jnp.maximum(max_acc[...], xg.astype(max_acc.dtype))
                sum_acc[...] = sum_acc[...] + xg.astype(jnp.float32)
                return carry
            jax.lax.fori_loop(0, n_groups, body, 0, unroll=min(n_groups, 2))
        if tail > 0:
            s = n_groups * 8
            xt = x_ref[s:s + tail, :]                               # (tail, HW)
            max_acc[0:tail, :] = jnp.maximum(max_acc[0:tail, :],
                                             xt.astype(max_acc.dtype))
            sum_acc[0:tail, :] = sum_acc[0:tail, :] + xt.astype(jnp.float32)

    full_groups = ct // 8
    last_valid = C - (n_ct - 1) * ct            # channels in the final tile (static)
    last_groups, last_tail = last_valid // 8, last_valid % 8

    if n_ct == 1:
        accumulate(last_groups, last_tail)
    elif last_valid == ct:
        accumulate(full_groups, 0)
    else:
        @pl.when(c_idx < n_ct - 1)
        def _():
            accumulate(full_groups, 0)

        @pl.when(c_idx == n_ct - 1)
        def _():
            accumulate(last_groups, last_tail)

    # Final channel tile: sublane combine, unflatten, 7x7 conv, sigmoid.
    @pl.when(c_idx == n_ct - 1)
    def _():
        flat_maps[0:1, :] = jnp.max(max_acc[...].astype(jnp.float32),
                                    axis=0, keepdims=True)
        flat_maps[1:2, :] = jnp.sum(sum_acc[...], axis=0,
                                    keepdims=True) * (1.0 / C)

        # Unflatten the lane-dense maps into zero-padded (H+2P, W+2P) scratch.
        mpad[...] = jnp.zeros(mpad.shape, mpad.dtype)
        apad[...] = jnp.zeros(apad.shape, apad.dtype)
        for h in range(H):
            mpad[PAD + h:PAD + h + 1, PAD:PAD + W] = flat_maps[0:1, h * W:(h + 1) * W]
            apad[PAD + h:PAD + h + 1, PAD:PAD + W] = flat_maps[1:2, h * W:(h + 1) * W]

        # 7x7 conv over 2 channels (max map = ch 0, avg map = ch 1).
        # Lane (kx) shift hoisted out of the ky loop; two independent partial
        # accumulators break the 98-term serial FMA dependency chain.
        acc_m = jnp.zeros((H, W), jnp.float32)
        acc_a = jnp.zeros((H, W), jnp.float32)
        for kx in range(K):
            m_kx = mpad[:, kx:kx + W]          # (H+2P, W) lane-shifted load
            a_kx = apad[:, kx:kx + W]
            for ky in range(K):
                wm = w_ref[ky * K + kx]            # weight[0, 0, ky, kx]
                wa = w_ref[K * K + ky * K + kx]    # weight[0, 1, ky, kx]
                acc_m = acc_m + wm * m_kx[ky:ky + H, :]
                acc_a = acc_a + wa * a_kx[ky:ky + H, :]
        out = jax.nn.sigmoid(acc_m + acc_a + b_ref[0])              # (H, W) f32

        # Lane-dense writeback into the (1, H*W) output block.
        for h in range(H):
            o_ref[0:1, h * W:(h + 1) * W] = out[h:h + 1, :].astype(o_ref.dtype)


def _pick_c_tile(C, HW, itemsize, budget_bytes=8 * 1024 * 1024):
    """Largest channel tile whose double-buffered lane-dense (ct, H*W) block
    fits `budget_bytes`.  8 MiB is past the DMA-efficiency knee and leaves
    ample scoped-VMEM headroom on v5e/v6e and v7x (64 MiB per TC)."""
    hw_pad = -(-HW // 128) * 128           # lane padding
    per_c = 2 * hw_pad * itemsize          # x2 for double buffering
    max_ct = max(1, budget_bytes // per_c)
    if C <= max_ct or C <= 8:
        return C                            # single tile: ct == C is always legal
    return max(8, (int(max_ct) // 8) * 8)   # ct < C must be a multiple of 8


def spatial_attention(x, weight, bias, *, c_tile=None):
    """x: (B, C, H, W); weight: (1, 2, K, K); bias: (1,). Returns (B, 1, H, W)."""
    B, C, H, W = x.shape
    HW = H * W
    ct = c_tile if c_tile is not None else _pick_c_tile(
        C, HW, jnp.dtype(x.dtype).itemsize)
    ct = min(ct, C)
    n_ct = -(-C // ct)

    x_flat = x.reshape(B, C, HW)                      # free for contiguous NCHW
    w_flat = weight.reshape(-1).astype(jnp.float32)   # (2*K*K,)
    b_flat = bias.reshape(1).astype(jnp.float32)      # (1,)

    # bf16 running max is exact and halves VALU/vreg traffic on v6e/v7x
    # bf16 VPUs; f32 inputs keep an f32 max accumulator.
    max_dtype = jnp.bfloat16 if x.dtype == jnp.bfloat16 else jnp.float32

    kernel = functools.partial(spatial_attention_kernel,
                               C=C, ct=ct, n_ct=n_ct, H=H, W=W)

    # TODO(synk): for B == 1 on v7x, a second parallel grid axis splitting C
    # across the two TensorCores (per-half partial maps + tiny merge step)
    # would give ~2x; not applied here to keep a single fused kernel.
    out_flat = pl.pallas_call(
        kernel,
        out_shape=jax.ShapeDtypeStruct((B, 1, HW), x.dtype),
        grid=(B, n_ct),
        in_specs=[
            pl.BlockSpec(memory_space=pltpu.MemorySpace.SMEM),    # conv weight
            pl.BlockSpec(memory_space=pltpu.MemorySpace.SMEM),    # conv bias
            pl.BlockSpec((None, ct, HW), lambda b, c: (b, c, 0)),
        ],
        out_specs=pl.BlockSpec((None, 1, HW), lambda b, c: (b, 0, 0)),
        scratch_shapes=[
            pltpu.VMEM((8, HW), max_dtype),       # running channel max
            pltpu.VMEM((8, HW), jnp.float32),     # running channel sum (f32)
            pltpu.VMEM((2, HW), jnp.float32),     # combined (max, mean) maps
            pltpu.VMEM((H + 2 * PAD, W + 2 * PAD), jnp.float32),  # padded max map
            pltpu.VMEM((H + 2 * PAD, W + 2 * PAD), jnp.float32),  # padded avg map
        ],
        compiler_params=pltpu.CompilerParams(
            dimension_semantics=("parallel", "arbitrary")),
    )(w_flat, b_flat, x_flat)

    return out_flat.reshape(B, 1, H, W)


def _reference(x, weight, bias):
    """Pure-JAX reference mirroring the PyTorch forward (for verification)."""
    xf = x.astype(jnp.float32)
    max_r = jnp.max(xf, axis=1, keepdims=True)
    avg_r = jnp.mean(xf, axis=1, keepdims=True)
    res = jnp.concatenate([max_r, avg_r], axis=1)          # (B, 2, H, W)
    out = jax.lax.conv_general_dilated(
        res, weight.astype(jnp.float32), window_strides=(1, 1),
        padding=((PAD, PAD), (PAD, PAD)),
        dimension_numbers=("NCHW", "OIHW", "NCHW"))
    return jax.nn.sigmoid(out + bias.reshape(1, 1, 1, 1))


if __name__ == "__main__":
    key = jax.random.PRNGKey(0)
    kx, kw, kb, kx2 = jax.random.split(key, 4)

    # Deterministic Conv2d(2, 1, 7) init, PyTorch-style uniform(-1/sqrt(fan_in), +)
    fan_in = 2 * K * K
    bound = 1.0 / (fan_in ** 0.5)
    weight = jax.random.uniform(kw, (1, 2, K, K), jnp.float32, -bound, bound)
    bias = jax.random.uniform(kb, (1,), jnp.float32, -bound, bound)

    # Primary check: f32, single channel tile.
    B, C, H, W = 2, 4, 16, 16
    x = jax.random.normal(kx, (B, C, H, W), dtype=jnp.float32)
    out = jax.block_until_ready(spatial_attention(x, weight, bias))
    ref = _reference(x, weight, bias)
    assert out.shape == (B, 1, H, W), out.shape
    assert jnp.allclose(out, ref, atol=1e-5, rtol=1e-5), "f32 mismatch vs reference"

    # Secondary check: bf16 input with a forced multi-tile grid and a partial
    # last channel tile — exercises the cdiv(C, ct) path, the <8-channel tail,
    # and the bf16 running-max accumulator.
    B2, C2, H2, W2 = 1, 20, 8, 8
    x2 = jax.random.normal(kx2, (B2, C2, H2, W2), jnp.float32).astype(jnp.bfloat16)
    out2 = jax.block_until_ready(spatial_attention(x2, weight, bias, c_tile=8))
    ref2 = _reference(x2, weight, bias)
    assert out2.shape == (B2, 1, H2, W2), out2.shape
    assert jnp.allclose(out2.astype(jnp.float32), ref2, atol=2e-2, rtol=0.0), \
        "bf16 mismatch vs reference"

    print("KERNEL_OK")
</pallas_src>

<mosaic_0001>
module attributes {stable_mosaic.version = 11 : i64} {
  func.func @spatial_attention_kernel(%arg0: i32, %arg1: i32, %arg2: memref<98xf32, #tpu.memory_space<smem>>, %arg3: memref<1xf32, #tpu.memory_space<smem>>, %arg4: memref<1x4x256xf32, #tpu.memory_space<vmem>>, %arg5: memref<1x1x256xf32, #tpu.memory_space<vmem>>, %arg6: memref<8x256xf32, #tpu.memory_space<vmem>>, %arg7: memref<8x256xf32, #tpu.memory_space<vmem>>, %arg8: memref<2x256xf32, #tpu.memory_space<vmem>>, %arg9: memref<22x22xf32, #tpu.memory_space<vmem>>, %arg10: memref<22x22xf32, #tpu.memory_space<vmem>>) attributes {dimension_semantics = [#tpu.dimension_semantics<parallel>, #tpu.dimension_semantics<arbitrary>], iteration_bounds = array<i64: 2, 1>, scalar_prefetch = 0 : i64, scratch_operands = 5 : i64, tpu.core_type = #tpu.core_type<tc>, window_params = [{transform_indices = @transform_0, window_bounds = array<i64: 98>}, {transform_indices = @transform_1, window_bounds = array<i64: 1>}, {transform_indices = @transform_2, window_bounds = array<i64: 1, 4, 256>}, {transform_indices = @transform_3, window_bounds = array<i64: 1, 1, 256>}]} {
    %c0_i32 = arith.constant 0 : i32
    %0 = arith.cmpi eq, %arg1, %c0_i32 : i32
    %1 = arith.extui %0 : i1 to i32
    %c0_i32_0 = arith.constant 0 : i32
    %2 = arith.cmpi ne, %1, %c0_i32_0 : i32
    scf.if %2 {
      %cst = arith.constant 0xFF800000 : f32
      %14 = vector.broadcast %cst : f32 to vector<8x256xf32>
      %c0_13 = arith.constant 0 : index
      %c0_14 = arith.constant 0 : index
      %15 = vector.load %arg6[%c0_13, %c0_14] : memref<8x256xf32, #tpu.memory_space<vmem>>, vector<8x256xf32>
      tpu.vector_store %arg6[%c0_13, %c0_14], %14 {strides = array<i32>} : memref<8x256xf32, #tpu.memory_space<vmem>>, vector<8x256xf32>,
      %cst_15 = arith.constant 0.000000e+00 : f32
      %16 = vector.broadcast %cst_15 : f32 to vector<8x256xf32>
      %c0_16 = arith.constant 0 : index
      %c0_17 = arith.constant 0 : index
      %17 = vector.load %arg7[%c0_16, %c0_17] : memref<8x256xf32, #tpu.memory_space<vmem>>, vector<8x256xf32>
      tpu.vector_store %arg7[%c0_16, %c0_17], %16 {strides = array<i32>} : memref<8x256xf32, #tpu.memory_space<vmem>>, vector<8x256xf32>,
    } else {
    }
    %c0 = arith.constant 0 : index
    %c0_1 = arith.constant 0 : index
    %c0_2 = arith.constant 0 : index
    %3 = vector.load %arg4[%c0, %c0_1, %c0_2] : memref<1x4x256xf32, #tpu.memory_space<vmem>>, vector<1x4x256xf32>
    %4 = vector.shape_cast %3 : vector<1x4x256xf32> to vector<4x256xf32>
    %c0_3 = arith.constant 0 : index
    %c0_4 = arith.constant 0 : index
    %5 = vector.load %arg6[%c0_3, %c0_4] : memref<8x256xf32, #tpu.memory_space<vmem>>, vector<4x256xf32>
    %6 = arith.maximumf %5, %4 : vector<4x256xf32>
    %c0_5 = arith.constant 0 : index
    %c0_6 = arith.constant 0 : index
    %7 = vector.load %arg6[%c0_5, %c0_6] : memref<8x256xf32, #tpu.memory_space<vmem>>, vector<4x256xf32>
    tpu.vector_store %arg6[%c0_5, %c0_6], %6 {strides = array<i32>} : memref<8x256xf32, #tpu.memory_space<vmem>>, vector<4x256xf32>,
    %c0_7 = arith.constant 0 : index
    %c0_8 = arith.constant 0 : index
    %8 = vector.load %arg7[%c0_7, %c0_8] : memref<8x256xf32, #tpu.memory_space<vmem>>, vector<4x256xf32>
    %9 = arith.addf %8, %4 : vector<4x256xf32>
    %c0_9 = arith.constant 0 : index
    %c0_10 = arith.constant 0 : index
    %10 = vector.load %arg7[%c0_9, %c0_10] : memref<8x256xf32, #tpu.memory_space<vmem>>, vector<4x256xf32>
    tpu.vector_store %arg7[%c0_9, %c0_10], %9 {strides = array<i32>} : memref<8x256xf32, #tpu.memory_space<vmem>>, vector<4x256xf32>,
    %c0_i32_11 = arith.constant 0 : i32
    %11 = arith.cmpi eq, %arg1, %c0_i32_11 : i32
    %12 = arith.extui %11 : i1 to i32
    %c0_i32_12 = arith.constant 0 : i32
    %13 = arith.cmpi ne, %12, %c0_i32_12 : i32
    scf.if %13 {
      %c0_13 = arith.constant 0 : index
      %c0_14 = arith.constant 0 : index
      %14 = vector.load %arg6[%c0_13, %c0_14] : memref<8x256xf32, #tpu.memory_space<vmem>>, vector<8x256xf32>
      %cst = arith.constant dense<0xFF800000> : vector<256xf32>
      %15 = vector.multi_reduction <maximumf>, %14, %cst [0] : vector<8x256xf32> to vector<256xf32>
      %16 = vector.shape_cast %15 : vector<256xf32> to vector<1x256xf32>
      %c0_15 = arith.constant 0 : index
      %c0_16 = arith.constant 0 : index
      %17 = vector.load %arg8[%c0_15, %c0_16] : memref<2x256xf32, #tpu.memory_space<vmem>>, vector<1x256xf32>
      tpu.vector_store %arg8[%c0_15, %c0_16], %16 {strides = array<i32>} : memref<2x256xf32, #tpu.memory_space<vmem>>, vector<1x256xf32>,
      %c0_17 = arith.constant 0 : index
      %c0_18 = arith.constant 0 : index
      %18 = vector.load %arg7[%c0_17, %c0_18] : memref<8x256xf32, #tpu.memory_space<vmem>>, vector<8x256xf32>
      %cst_19 = arith.constant dense<0.000000e+00> : vector<256xf32>
      %19 = vector.multi_reduction <add>, %18, %cst_19 [0] : vector<8x256xf32> to vector<256xf32>
      %20 = vector.shape_cast %19 : vector<256xf32> to vector<1x256xf32>
      %cst_20 = arith.constant 2.500000e-01 : f32
      %21 = vector.broadcast %cst_20 : f32 to vector<1x256xf32>
      %22 = arith.mulf %20, %21 : vector<1x256xf32>
      %c1 = arith.constant 1 : index
      %c0_21 = arith.constant 0 : index
      %23 = vector.load %arg8[%c1, %c0_21] : memref<2x256xf32, #tpu.memory_space<vmem>>, vector<1x256xf32>
      tpu.vector_store %arg8[%c1, %c0_21], %22 {strides = array<i32>} : memref<2x256xf32, #tpu.memory_space<vmem>>, vector<1x256xf32>,
      %cst_22 = arith.constant 0.000000e+00 : f32
      %24 = vector.broadcast %cst_22 : f32 to vector<22x22xf32>
      %c0_23 = arith.constant 0 : index
      %c0_24 = arith.constant 0 : index
      %25 = vector.load %arg9[%c0_23, %c0_24] : memref<22x22xf32, #tpu.memory_space<vmem>>, vector<22x22xf32>
      tpu.vector_store %arg9[%c0_23, %c0_24], %24 {strides = array<i32>} : memref<22x22xf32, #tpu.memory_space<vmem>>, vector<22x22xf32>,
      %cst_25 = arith.constant 0.000000e+00 : f32
      %26 = vector.broadcast %cst_25 : f32 to vector<22x22xf32>
      %c0_26 = arith.constant 0 : index
      %c0_27 = arith.constant 0 : index
      %27 = vector.load %arg10[%c0_26, %c0_27] : memref<22x22xf32, #tpu.memory_space<vmem>>, vector<22x22xf32>
      tpu.vector_store %arg10[%c0_26, %c0_27], %26 {strides = array<i32>} : memref<22x22xf32, #tpu.memory_space<vmem>>, vector<22x22xf32>,
      %c0_28 = arith.constant 0 : index
      %c0_29 = arith.constant 0 : index
      %28 = vector.load %arg8[%c0_28, %c0_29] : memref<2x256xf32, #tpu.memory_space<vmem>>, vector<1x16xf32>
      %c3 = arith.constant 3 : index
      %c3_30 = arith.constant 3 : index
      %29 = vector.load %arg9[%c3, %c3_30] : memref<22x22xf32, #tpu.memory_space<vmem>>, vector<1x16xf32>
      tpu.vector_store %arg9[%c3, %c3_30], %28 {strides = array<i32>} : memref<22x22xf32, #tpu.memory_space<vmem>>, vector<1x16xf32>,
      %c1_31 = arith.constant 1 : index
      %c0_32 = arith.constant 0 : index
      %30 = vector.load %arg8[%c1_31, %c0_32] : memref<2x256xf32, #tpu.memory_space<vmem>>, vector<1x16xf32>
      %c3_33 = arith.constant 3 : index
      %c3_34 = arith.constant 3 : index
      %31 = vector.load %arg10[%c3_33, %c3_34] : memref<22x22xf32, #tpu.memory_space<vmem>>, vector<1x16xf32>
      tpu.vector_store %arg10[%c3_33, %c3_34], %30 {strides = array<i32>} : memref<22x22xf32, #tpu.memory_space<vmem>>, vector<1x16xf32>,
      %c0_35 = arith.constant 0 : index
      %c16 = arith.constant 16 : index
      %32 = vector.load %arg8[%c0_35, %c16] : memref<2x256xf32, #tpu.memory_space<vmem>>, vector<1x16xf32>
      %c4 = arith.constant 4 : index
      %c3_36 = arith.constant 3 : index
      %33 = vector.load %arg9[%c4, %c3_36] : memref<22x22xf32, #tpu.memory_space<vmem>>, vector<1x16xf32>
      tpu.vector_store %arg9[%c4, %c3_36], %32 {strides = array<i32>} : memref<22x22xf32, #tpu.memory_space<vmem>>, vector<1x16xf32>,
      %c1_37 = arith.constant 1 : index
      %c16_38 = arith.constant 16 : index
      %34 = vector.load %arg8[%c1_37, %c16_38] : memref<2x256xf32, #tpu.memory_space<vmem>>, vector<1x16xf32>
      %c4_39 = arith.constant 4 : index
      %c3_40 = arith.constant 3 : index
      %35 = vector.load %arg10[%c4_39, %c3_40] : memref<22x22xf32, #tpu.memory_space<vmem>>, vector<1x16xf32>
      tpu.vector_store %arg10[%c4_39, %c3_40], %34 {strides = array<i32>} : memref<22x22xf32, #tpu.memory_space<vmem>>, vector<1x16xf32>,
      %c0_41 = arith.constant 0 : index
      %c32 = arith.constant 32 : index
      %36 = vector.load %arg8[%c0_41, %c32] : memref<2x256xf32, #tpu.memory_space<vmem>>, vector<1x16xf32>
      %c5 = arith.constant 5 : index
      %c3_42 = arith.constant 3 : index
      %37 = vector.load %arg9[%c5, %c3_42] : memref<22x22xf32, #tpu.memory_space<vmem>>, vector<1x16xf32>
      tpu.vector_store %arg9[%c5, %c3_42], %36 {strides = array<i32>} : memref<22x22xf32, #tpu.memory_space<vmem>>, vector<1x16xf32>,
      %c1_43 = arith.constant 1 : index
      %c32_44 = arith.constant 32 : index
      %38 = vector.load %arg8[%c1_43, %c32_44] : memref<2x256xf32, #tpu.memory_space<vmem>>, vector<1x16xf32>
      %c5_45 = arith.constant 5 : index
      %c3_46 = arith.constant 3 : index
      %39 = vector.load %arg10[%c5_45, %c3_46] : memref<22x22xf32, #tpu.memory_space<vmem>>, vector<1x16xf32>
      tpu.vector_store %arg10[%c5_45, %c3_46], %38 {strides = array<i32>} : memref<22x22xf32, #tpu.memory_space<vmem>>, vector<1x16xf32>,
      %c0_47 = arith.constant 0 : index
      %c48 = arith.constant 48 : index
      %40 = vector.load %arg8[%c0_47, %c48] : memref<2x256xf32, #tpu.memory_space<vmem>>, vector<1x16xf32>
      %c6 = arith.constant 6 : index
      %c3_48 = arith.constant 3 : index
      %41 = vector.load %arg9[%c6, %c3_48] : memref<22x22xf32, #tpu.memory_space<vmem>>, vector<1x16xf32>
      tpu.vector_store %arg9[%c6, %c3_48], %40 {strides = array<i32>} : memref<22x22xf32, #tpu.memory_space<vmem>>, vector<1x16xf32>,
      %c1_49 = arith.constant 1 : index
      %c48_50 = arith.constant 48 : index
      %42 = vector.load %arg8[%c1_49, %c48_50] : memref<2x256xf32, #tpu.memory_space<vmem>>, vector<1x16xf32>
      %c6_51 = arith.constant 6 : index
      %c3_52 = arith.constant 3 : index
      %43 = vector.load %arg10[%c6_51, %c3_52] : memref<22x22xf32, #tpu.memory_space<vmem>>, vector<1x16xf32>
      tpu.vector_store %arg10[%c6_51, %c3_52], %42 {strides = array<i32>} : memref<22x22xf32, #tpu.memory_space<vmem>>, vector<1x16xf32>,
      %c0_53 = arith.constant 0 : index
      %c64 = arith.constant 64 : index
      %44 = vector.load %arg8[%c0_53, %c64] : memref<2x256xf32, #tpu.memory_space<vmem>>, vector<1x16xf32>
      %c7 = arith.constant 7 : index
      %c3_54 = arith.constant 3 : index
      %45 = vector.load %arg9[%c7, %c3_54] : memref<22x22xf32, #tpu.memory_space<vmem>>, vector<1x16xf32>
      tpu.vector_store %arg9[%c7, %c3_54], %44 {strides = array<i32>} : memref<22x22xf32, #tpu.memory_space<vmem>>, vector<1x16xf32>,
      %c1_55 = arith.constant 1 : index
      %c64_56 = arith.constant 64 : index
      %46 = vector.load %arg8[%c1_55, %c64_56] : memref<2x256xf32, #tpu.memory_space<vmem>>, vector<1x16xf32>
      %c7_57 = arith.constant 7 : index
      %c3_58 = arith.constant 3 : index
      %47 = vector.load %arg10[%c7_57, %c3_58] : memref<22x22xf32, #tpu.memory_space<vmem>>, vector<1x16xf32>
      tpu.vector_store %arg10[%c7_57, %c3_58], %46 {strides = array<i32>} : memref<22x22xf32, #tpu.memory_space<vmem>>, vector<1x16xf32>,
      %c0_59 = arith.constant 0 : index
      %c80 = arith.constant 80 : index
      %48 = vector.load %arg8[%c0_59, %c80] : memref<2x256xf32, #tpu.memory_space<vmem>>, vector<1x16xf32>
      %c8 = arith.constant 8 : index
      %c3_60 = arith.constant 3 : index
      %49 = vector.load %arg9[%c8, %c3_60] : memref<22x22xf32, #tpu.memory_space<vmem>>, vector<1x16xf32>
      tpu.vector_store %arg9[%c8, %c3_60], %48 {strides = array<i32>} : memref<22x22xf32, #tpu.memory_space<vmem>>, vector<1x16xf32>,
      %c1_61 = arith.constant 1 : index
      %c80_62 = arith.constant 80 : index
      %50 = vector.load %arg8[%c1_61, %c80_62] : memref<2x256xf32, #tpu.memory_space<vmem>>, vector<1x16xf32>
      %c8_63 = arith.constant 8 : index
      %c3_64 = arith.constant 3 : index
      %51 = vector.load %arg10[%c8_63, %c3_64] : memref<22x22xf32, #tpu.memory_space<vmem>>, vector<1x16xf32>
      tpu.vector_store %arg10[%c8_63, %c3_64], %50 {strides = array<i32>} : memref<22x22xf32, #tpu.memory_space<vmem>>, vector<1x16xf32>,
      %c0_65 = arith.constant 0 : index
      %c96 = arith.constant 96 : index
      %52 = vector.load %arg8[%c0_65, %c96] : memref<2x256xf32, #tpu.memory_space<vmem>>, vector<1x16xf32>
      %c9 = arith.constant 9 : index
      %c3_66 = arith.constant 3 : index
      %53 = vector.load %arg9[%c9, %c3_66] : memref<22x22xf32, #tpu.memory_space<vmem>>, vector<1x16xf32>
      tpu.vector_store %arg9[%c9, %c3_66], %52 {strides = array<i32>} : memref<22x22xf32, #tpu.memory_space<vmem>>, vector<1x16xf32>,
      %c1_67 = arith.constant 1 : index
      %c96_68 = arith.constant 96 : index
      %54 = vector.load %arg8[%c1_67, %c96_68] : memref<2x256xf32, #tpu.memory_space<vmem>>, vector<1x16xf32>
      %c9_69 = arith.constant 9 : index
      %c3_70 = arith.constant 3 : index
      %55 = vector.load %arg10[%c9_69, %c3_70] : memref<22x22xf32, #tpu.memory_space<vmem>>, vector<1x16xf32>
      tpu.vector_store %arg10[%c9_69, %c3_70], %54 {strides = array<i32>} : memref<22x22xf32, #tpu.memory_space<vmem>>, vector<1x16xf32>,
      %c0_71 = arith.constant 0 : index
      %c112 = arith.constant 112 : index
      %56 = vector.load %arg8[%c0_71, %c112] : memref<2x256xf32, #tpu.memory_space<vmem>>, vector<1x16xf32>
      %c10 = arith.constant 10 : index
      %c3_72 = arith.constant 3 : index
      %57 = vector.load %arg9[%c10, %c3_72] : memref<22x22xf32, #tpu.memory_space<vmem>>, vector<1x16xf32>
      tpu.vector_store %arg9[%c10, %c3_72], %56 {strides = array<i32>} : memref<22x22xf32, #tpu.memory_space<vmem>>, vector<1x16xf32>,
      %c1_73 = arith.constant 1 : index
      %c112_74 = arith.constant 112 : index
      %58 = vector.load %arg8[%c1_73, %c112_74] : memref<2x256xf32, #tpu.memory_space<vmem>>, vector<1x16xf32>
      %c10_75 = arith.constant 10 : index
      %c3_76 = arith.constant 3 : index
      %59 = vector.load %arg10[%c10_75, %c3_76] : memref<22x22xf32, #tpu.memory_space<vmem>>, vector<1x16xf32>
      tpu.vector_store %arg10[%c10_75, %c3_76], %58 {strides = array<i32>} : memref<22x22xf32, #tpu.memory_space<vmem>>, vector<1x16xf32>,
      %c0_77 = arith.constant 0 : index
      %c128 = arith.constant 128 : index
      %60 = vector.load %arg8[%c0_77, %c128] : memref<2x256xf32, #tpu.memory_space<vmem>>, vector<1x16xf32>
      %c11 = arith.constant 11 : index
      %c3_78 = arith.constant 3 : index
      %61 = vector.load %arg9[%c11, %c3_78] : memref<22x22xf32, #tpu.memory_space<vmem>>, vector<1x16xf32>
      tpu.vector_store %arg9[%c11, %c3_78], %60 {strides = array<i32>} : memref<22x22xf32, #tpu.memory_space<vmem>>, vector<1x16xf32>,
      %c1_79 = arith.constant 1 : index
      %c128_80 = arith.constant 128 : index
      %62 = vector.load %arg8[%c1_79, %c128_80] : memref<2x256xf32, #tpu.memory_space<vmem>>, vector<1x16xf32>
      %c11_81 = arith.constant 11 : index
      %c3_82 = arith.constant 3 : index
      %63 = vector.load %arg10[%c11_81, %c3_82] : memref<22x22xf32, #tpu.memory_space<vmem>>, vector<1x16xf32>
      tpu.vector_store %arg10[%c11_81, %c3_82], %62 {strides = array<i32>} : memref<22x22xf32, #tpu.memory_space<vmem>>, vector<1x16xf32>,
      %c0_83 = arith.constant 0 : index
      %c144 = arith.constant 144 : index
      %64 = vector.load %arg8[%c0_83, %c144] : memref<2x256xf32, #tpu.memory_space<vmem>>, vector<1x16xf32>
      %c12 = arith.constant 12 : index
      %c3_84 = arith.constant 3 : index
      %65 = vector.load %arg9[%c12, %c3_84] : memref<22x22xf32, #tpu.memory_space<vmem>>, vector<1x16xf32>
      tpu.vector_store %arg9[%c12, %c3_84], %64 {strides = array<i32>} : memref<22x22xf32, #tpu.memory_space<vmem>>, vector<1x16xf32>,
      %c1_85 = arith.constant 1 : index
      %c144_86 = arith.constant 144 : index
      %66 = vector.load %arg8[%c1_85, %c144_86] : memref<2x256xf32, #tpu.memory_space<vmem>>, vector<1x16xf32>
      %c12_87 = arith.constant 12 : index
      %c3_88 = arith.constant 3 : index
      %67 = vector.load %arg10[%c12_87, %c3_88] : memref<22x22xf32, #tpu.memory_space<vmem>>, vector<1x16xf32>
      tpu.vector_store %arg10[%c12_87, %c3_88], %66 {strides = array<i32>} : memref<22x22xf32, #tpu.memory_space<vmem>>, vector<1x16xf32>,
      %c0_89 = arith.constant 0 : index
      %c160 = arith.constant 160 : index
      %68 = vector.load %arg8[%c0_89, %c160] : memref<2x256xf32, #tpu.memory_space<vmem>>, vector<1x16xf32>
      %c13 = arith.constant 13 : index
      %c3_90 = arith.constant 3 : index
      %69 = vector.load %arg9[%c13, %c3_90] : memref<22x22xf32, #tpu.memory_space<vmem>>, vector<1x16xf32>
      tpu.vector_store %arg9[%c13, %c3_90], %68 {strides = array<i32>} : memref<22x22xf32, #tpu.memory_space<vmem>>, vector<1x16xf32>,
      %c1_91 = arith.constant 1 : index
      %c160_92 = arith.constant 160 : index
      %70 = vector.load %arg8[%c1_91, %c160_92] : memref<2x256xf32, #tpu.memory_space<vmem>>, vector<1x16xf32>
      %c13_93 = arith.constant 13 : index
      %c3_94 = arith.constant 3 : index
      %71 = vector.load %arg10[%c13_93, %c3_94] : memref<22x22xf32, #tpu.memory_space<vmem>>, vector<1x16xf32>
      tpu.vector_store %arg10[%c13_93, %c3_94], %70 {strides = array<i32>} : memref<22x22xf32, #tpu.memory_space<vmem>>, vector<1x16xf32>,
      %c0_95 = arith.constant 0 : index
      %c176 = arith.constant 176 : index
      %72 = vector.load %arg8[%c0_95, %c176] : memref<2x256xf32, #tpu.memory_space<vmem>>, vector<1x16xf32>
      %c14 = arith.constant 14 : index
      %c3_96 = arith.constant 3 : index
      %73 = vector.load %arg9[%c14, %c3_96] : memref<22x22xf32, #tpu.memory_space<vmem>>, vector<1x16xf32>
      tpu.vector_store %arg9[%c14, %c3_96], %72 {strides = array<i32>} : memref<22x22xf32, #tpu.memory_space<vmem>>, vector<1x16xf32>,
      %c1_97 = arith.constant 1 : index
      %c176_98 = arith.constant 176 : index
      %74 = vector.load %arg8[%c1_97, %c176_98] : memref<2x256xf32, #tpu.memory_space<vmem>>, vector<1x16xf32>
      %c14_99 = arith.constant 14 : index
      %c3_100 = arith.constant 3 : index
      %75 = vector.load %arg10[%c14_99, %c3_100] : memref<22x22xf32, #tpu.memory_space<vmem>>, vector<1x16xf32>
      tpu.vector_store %arg10[%c14_99, %c3_100], %74 {strides = array<i32>} : memref<22x22xf32, #tpu.memory_space<vmem>>, vector<1x16xf32>,
      %c0_101 = arith.constant 0 : index
      %c192 = arith.constant 192 : index
      %76 = vector.load %arg8[%c0_101, %c192] : memref<2x256xf32, #tpu.memory_space<vmem>>, vector<1x16xf32>
      %c15 = arith.constant 15 : index
      %c3_102 = arith.constant 3 : index
      %77 = vector.load %arg9[%c15, %c3_102] : memref<22x22xf32, #tpu.memory_space<vmem>>, vector<1x16xf32>
      tpu.vector_store %arg9[%c15, %c3_102], %76 {strides = array<i32>} : memref<22x22xf32, #tpu.memory_space<vmem>>, vector<1x16xf32>,
      %c1_103 = arith.constant 1 : index
      %c192_104 = arith.constant 192 : index
      %78 = vector.load %arg8[%c1_103, %c192_104] : memref<2x256xf32, #tpu.memory_space<vmem>>, vector<1x16xf32>
      %c15_105 = arith.constant 15 : index
      %c3_106 = arith.constant 3 : index
      %79 = vector.load %arg10[%c15_105, %c3_106] : memref<22x22xf32, #tpu.memory_space<vmem>>, vector<1x16xf32>
      tpu.vector_store %arg10[%c15_105, %c3_106], %78 {strides = array<i32>} : memref<22x22xf32, #tpu.memory_space<vmem>>, vector<1x16xf32>,
      %c0_107 = arith.constant 0 : index
      %c208 = arith.constant 208 : index
      %80 = vector.load %arg8[%c0_107, %c208] : memref<2x256xf32, #tpu.memory_space<vmem>>, vector<1x16xf32>
      %c16_108 = arith.constant 16 : index
      %c3_109 = arith.constant 3 : index
      %81 = vector.load %arg9[%c16_108, %c3_109] : memref<22x22xf32, #tpu.memory_space<vmem>>, vector<1x16xf32>
      tpu.vector_store %arg9[%c16_108, %c3_109], %80 {strides = array<i32>} : memref<22x22xf32, #tpu.memory_space<vmem>>, vector<1x16xf32>,
      %c1_110 = arith.constant 1 : index
      %c208_111 = arith.constant 208 : index
      %82 = vector.load %arg8[%c1_110, %c208_111] : memref<2x256xf32, #tpu.memory_space<vmem>>, vector<1x16xf32>
      %c16_112 = arith.constant 16 : index
      %c3_113 = arith.constant 3 : index
      %83 = vector.load %arg10[%c16_112, %c3_113] : memref<22x22xf32, #tpu.memory_space<vmem>>, vector<1x16xf32>
      tpu.vector_store %arg10[%c16_112, %c3_113], %82 {strides = array<i32>} : memref<22x22xf32, #tpu.memory_space<vmem>>, vector<1x16xf32>,
      %c0_114 = arith.constant 0 : index
      %c224 = arith.constant 224 : index
      %84 = vector.load %arg8[%c0_114, %c224] : memref<2x256xf32, #tpu.memory_space<vmem>>, vector<1x16xf32>
      %c17 = arith.constant 17 : index
      %c3_115 = arith.constant 3 : index
      %85 = vector.load %arg9[%c17, %c3_115] : memref<22x22xf32, #tpu.memory_space<vmem>>, vector<1x16xf32>
      tpu.vector_store %arg9[%c17, %c3_115], %84 {strides = array<i32>} : memref<22x22xf32, #tpu.memory_space<vmem>>, vector<1x16xf32>,
      %c1_116 = arith.constant 1 : index
      %c224_117 = arith.constant 224 : index
      %86 = vector.load %arg8[%c1_116, %c224_117] : memref<2x256xf32, #tpu.memory_space<vmem>>, vector<1x16xf32>
      %c17_118 = arith.constant 17 : index
      %c3_119 = arith.constant 3 : index
      %87 = vector.load %arg10[%c17_118, %c3_119] : memref<22x22xf32, #tpu.memory_space<vmem>>, vector<1x16xf32>
      tpu.vector_store %arg10[%c17_118, %c3_119], %86 {strides = array<i32>} : memref<22x22xf32, #tpu.memory_space<vmem>>, vector<1x16xf32>,
      %c0_120 = arith.constant 0 : index
      %c240 = arith.constant 240 : index
      %88 = vector.load %arg8[%c0_120, %c240] : memref<2x256xf32, #tpu.memory_space<vmem>>, vector<1x16xf32>
      %c18 = arith.constant 18 : index
      %c3_121 = arith.constant 3 : index
      %89 = vector.load %arg9[%c18, %c3_121] : memref<22x22xf32, #tpu.memory_space<vmem>>, vector<1x16xf32>
      tpu.vector_store %arg9[%c18, %c3_121], %88 {strides = array<i32>} : memref<22x22xf32, #tpu.memory_space<vmem>>, vector<1x16xf32>,
      %c1_122 = arith.constant 1 : index
      %c240_123 = arith.constant 240 : index
      %90 = vector.load %arg8[%c1_122, %c240_123] : memref<2x256xf32, #tpu.memory_space<vmem>>, vector<1x16xf32>
      %c18_124 = arith.constant 18 : index
      %c3_125 = arith.constant 3 : index
      %91 = vector.load %arg10[%c18_124, %c3_125] : memref<22x22xf32, #tpu.memory_space<vmem>>, vector<1x16xf32>
      tpu.vector_store %arg10[%c18_124, %c3_125], %90 {strides = array<i32>} : memref<22x22xf32, #tpu.memory_space<vmem>>, vector<1x16xf32>,
      %cst_126 = arith.constant 0.000000e+00 : f32
      %92 = vector.broadcast %cst_126 : f32 to vector<16x16xf32>
      %cst_127 = arith.constant 0.000000e+00 : f32
      %93 = vector.broadcast %cst_127 : f32 to vector<16x16xf32>
      %c0_128 = arith.constant 0 : index
      %c0_129 = arith.constant 0 : index
      %94 = vector.load %arg9[%c0_128, %c0_129] : memref<22x22xf32, #tpu.memory_space<vmem>>, vector<22x16xf32>
      %c0_130 = arith.constant 0 : index
      %c0_131 = arith.constant 0 : index
      %95 = vector.load %arg10[%c0_130, %c0_131] : memref<22x22xf32, #tpu.memory_space<vmem>>, vector<22x16xf32>
      %c0_132 = arith.constant 0 : index
      %96 = memref.load %arg2[%c0_132] : memref<98xf32, #tpu.memory_space<smem>>
      %c49 = arith.constant 49 : index
      %97 = memref.load %arg2[%c49] : memref<98xf32, #tpu.memory_space<smem>>
      %98 = vector.extract_strided_slice %94 {offsets = [0, 0], sizes = [16, 16], strides = [1, 1]} : vector<22x16xf32> to vector<16x16xf32>
      %99 = vector.broadcast %96 : f32 to vector<16x16xf32>
      %100 = arith.mulf %99, %98 : vector<16x16xf32>
      %101 = arith.addf %92, %100 : vector<16x16xf32>
      %102 = vector.extract_strided_slice %95 {offsets = [0, 0], sizes = [16, 16], strides = [1, 1]} : vector<22x16xf32> to vector<16x16xf32>
      %103 = vector.broadcast %97 : f32 to vector<16x16xf32>
      %104 = arith.mulf %103, %102 : vector<16x16xf32>
      %105 = arith.addf %93, %104 : vector<16x16xf32>
      %c7_133 = arith.constant 7 : index
      %106 = memref.load %arg2[%c7_133] : memref<98xf32, #tpu.memory_space<smem>>
      %c56 = arith.constant 56 : index
      %107 = memref.load %arg2[%c56] : memref<98xf32, #tpu.memory_space<smem>>
      %108 = vector.extract_strided_slice %94 {offsets = [1, 0], sizes = [16, 16], strides = [1, 1]} : vector<22x16xf32> to vector<16x16xf32>
      %109 = vector.broadcast %106 : f32 to vector<16x16xf32>
      %110 = arith.mulf %109, %108 : vector<16x16xf32>
      %111 = arith.addf %101, %110 : vector<16x16xf32>
      %112 = vector.extract_strided_slice %95 {offsets = [1, 0], sizes = [16, 16], strides = [1, 1]} : vector<22x16xf32> to vector<16x16xf32>
      %113 = vector.broadcast %107 : f32 to vector<16x16xf32>
      %114 = arith.mulf %113, %112 : vector<16x16xf32>
      %115 = arith.addf %105, %114 : vector<16x16xf32>
      %c14_134 = arith.constant 14 : index
      %116 = memref.load %arg2[%c14_134] : memref<98xf32, #tpu.memory_space<smem>>
      %c63 = arith.constant 63 : index
      %117 = memref.load %arg2[%c63] : memref<98xf32, #tpu.memory_space<smem>>
      %118 = vector.extract_strided_slice %94 {offsets = [2, 0], sizes = [16, 16], strides = [1, 1]} : vector<22x16xf32> to vector<16x16xf32>
      %119 = vector.broadcast %116 : f32 to vector<16x16xf32>
      %120 = arith.mulf %119, %118 : vector<16x16xf32>
      %121 = arith.addf %111, %120 : vector<16x16xf32>
      %122 = vector.extract_strided_slice %95 {offsets = [2, 0], sizes = [16, 16], strides = [1, 1]} : vector<22x16xf32> to vector<16x16xf32>
      %123 = vector.broadcast %117 : f32 to vector<16x16xf32>
      %124 = arith.mulf %123, %122 : vector<16x16xf32>
      %125 = arith.addf %115, %124 : vector<16x16xf32>
      %c21 = arith.constant 21 : index
      %126 = memref.load %arg2[%c21] : memref<98xf32, #tpu.memory_space<smem>>
      %c70 = arith.constant 70 : index
      %127 = memref.load %arg2[%c70] : memref<98xf32, #tpu.memory_space<smem>>
      %128 = vector.extract_strided_slice %94 {offsets = [3, 0], sizes = [16, 16], strides = [1, 1]} : vector<22x16xf32> to vector<16x16xf32>
      %129 = vector.broadcast %126 : f32 to vector<16x16xf32>
      %130 = arith.mulf %129, %128 : vector<16x16xf32>
      %131 = arith.addf %121, %130 : vector<16x16xf32>
      %132 = vector.extract_strided_slice %95 {offsets = [3, 0], sizes = [16, 16], strides = [1, 1]} : vector<22x16xf32> to vector<16x16xf32>
      %133 = vector.broadcast %127 : f32 to vector<16x16xf32>
      %134 = arith.mulf %133, %132 : vector<16x16xf32>
      %135 = arith.addf %125, %134 : vector<16x16xf32>
      %c28 = arith.constant 28 : index
      %136 = memref.load %arg2[%c28] : memref<98xf32, #tpu.memory_space<smem>>
      %c77 = arith.constant 77 : index
      %137 = memref.load %arg2[%c77] : memref<98xf32, #tpu.memory_space<smem>>
      %138 = vector.extract_strided_slice %94 {offsets = [4, 0], sizes = [16, 16], strides = [1, 1]} : vector<22x16xf32> to vector<16x16xf32>
      %139 = vector.broadcast %136 : f32 to vector<16x16xf32>
      %140 = arith.mulf %139, %138 : vector<16x16xf32>
      %141 = arith.addf %131, %140 : vector<16x16xf32>
      %142 = vector.extract_strided_slice %95 {offsets = [4, 0], sizes = [16, 16], strides = [1, 1]} : vector<22x16xf32> to vector<16x16xf32>
      %143 = vector.broadcast %137 : f32 to vector<16x16xf32>
      %144 = arith.mulf %143, %142 : vector<16x16xf32>
      %145 = arith.addf %135, %144 : vector<16x16xf32>
      %c35 = arith.constant 35 : index
      %146 = memref.load %arg2[%c35] : memref<98xf32, #tpu.memory_space<smem>>
      %c84 = arith.constant 84 : index
      %147 = memref.load %arg2[%c84] : memref<98xf32, #tpu.memory_space<smem>>
      %148 = vector.extract_strided_slice %94 {offsets = [5, 0], sizes = [16, 16], strides = [1, 1]} : vector<22x16xf32> to vector<16x16xf32>
      %149 = vector.broadcast %146 : f32 to vector<16x16xf32>
      %150 = arith.mulf %149, %148 : vector<16x16xf32>
      %151 = arith.addf %141, %150 : vector<16x16xf32>
      %152 = vector.extract_strided_slice %95 {offsets = [5, 0], sizes = [16, 16], strides = [1, 1]} : vector<22x16xf32> to vector<16x16xf32>
      %153 = vector.broadcast %147 : f32 to vector<16x16xf32>
      %154 = arith.mulf %153, %152 : vector<16x16xf32>
      %155 = arith.addf %145, %154 : vector<16x16xf32>
      %c42 = arith.constant 42 : index
      %156 = memref.load %arg2[%c42] : memref<98xf32, #tpu.memory_space<smem>>
      %c91 = arith.constant 91 : index
      %157 = memref.load %arg2[%c91] : memref<98xf32, #tpu.memory_space<smem>>
      %158 = vector.extract_strided_slice %94 {offsets = [6, 0], sizes = [16, 16], strides = [1, 1]} : vector<22x16xf32> to vector<16x16xf32>
      %159 = vector.broadcast %156 : f32 to vector<16x16xf32>
      %160 = arith.mulf %159, %158 : vector<16x16xf32>
      %161 = arith.addf %151, %160 : vector<16x16xf32>
      %162 = vector.extract_strided_slice %95 {offsets = [6, 0], sizes = [16, 16], strides = [1, 1]} : vector<22x16xf32> to vector<16x16xf32>
      %163 = vector.broadcast %157 : f32 to vector<16x16xf32>
      %164 = arith.mulf %163, %162 : vector<16x16xf32>
      %165 = arith.addf %155, %164 : vector<16x16xf32>
      %c0_135 = arith.constant 0 : index
      %c1_136 = arith.constant 1 : index
      %166 = vector.load %arg9[%c0_135, %c1_136] : memref<22x22xf32, #tpu.memory_space<vmem>>, vector<22x16xf32>
      %c0_137 = arith.constant 0 : index
      %c1_138 = arith.constant 1 : index
      %167 = vector.load %arg10[%c0_137, %c1_138] : memref<22x22xf32, #tpu.memory_space<vmem>>, vector<22x16xf32>
      %c1_139 = arith.constant 1 : index
      %168 = memref.load %arg2[%c1_139] : memref<98xf32, #tpu.memory_space<smem>>
      %c50 = arith.constant 50 : index
      %169 = memref.load %arg2[%c50] : memref<98xf32, #tpu.memory_space<smem>>
      %170 = vector.extract_strided_slice %166 {offsets = [0, 0], sizes = [16, 16], strides = [1, 1]} : vector<22x16xf32> to vector<16x16xf32>
      %171 = vector.broadcast %168 : f32 to vector<16x16xf32>
      %172 = arith.mulf %171, %170 : vector<16x16xf32>
      %173 = arith.addf %161, %172 : vector<16x16xf32>
      %174 = vector.extract_strided_slice %167 {offsets = [0, 0], sizes = [16, 16], strides = [1, 1]} : vector<22x16xf32> to vector<16x16xf32>
      %175 = vector.broadcast %169 : f32 to vector<16x16xf32>
      %176 = arith.mulf %175, %174 : vector<16x16xf32>
      %177 = arith.addf %165, %176 : vector<16x16xf32>
      %c8_140 = arith.constant 8 : index
      %178 = memref.load %arg2[%c8_140] : memref<98xf32, #tpu.memory_space<smem>>
      %c57 = arith.constant 57 : index
      %179 = memref.load %arg2[%c57] : memref<98xf32, #tpu.memory_space<smem>>
      %180 = vector.extract_strided_slice %166 {offsets = [1, 0], sizes = [16, 16], strides = [1, 1]} : vector<22x16xf32> to vector<16x16xf32>
      %181 = vector.broadcast %178 : f32 to vector<16x16xf32>
      %182 = arith.mulf %181, %180 : vector<16x16xf32>
      %183 = arith.addf %173, %182 : vector<16x16xf32>
      %184 = vector.extract_strided_slice %167 {offsets = [1, 0], sizes = [16, 16], strides = [1, 1]} : vector<22x16xf32> to vector<16x16xf32>
      %185 = vector.broadcast %179 : f32 to vector<16x16xf32>
      %186 = arith.mulf %185, %184 : vector<16x16xf32>
      %187 = arith.addf %177, %186 : vector<16x16xf32>
      %c15_141 = arith.constant 15 : index
      %188 = memref.load %arg2[%c15_141] : memref<98xf32, #tpu.memory_space<smem>>
      %c64_142 = arith.constant 64 : index
      %189 = memref.load %arg2[%c64_142] : memref<98xf32, #tpu.memory_space<smem>>
      %190 = vector.extract_strided_slice %166 {offsets = [2, 0], sizes = [16, 16], strides = [1, 1]} : vector<22x16xf32> to vector<16x16xf32>
      %191 = vector.broadcast %188 : f32 to vector<16x16xf32>
      %192 = arith.mulf %191, %190 : vector<16x16xf32>
      %193 = arith.addf %183, %192 : vector<16x16xf32>
      %194 = vector.extract_strided_slice %167 {offsets = [2, 0], sizes = [16, 16], strides = [1, 1]} : vector<22x16xf32> to vector<16x16xf32>
      %195 = vector.broadcast %189 : f32 to vector<16x16xf32>
      %196 = arith.mulf %195, %194 : vector<16x16xf32>
      %197 = arith.addf %187, %196 : vector<16x16xf32>
      %c22 = arith.constant 22 : index
      %198 = memref.load %arg2[%c22] : memref<98xf32, #tpu.memory_space<smem>>
      %c71 = arith.constant 71 : index
      %199 = memref.load %arg2[%c71] : memref<98xf32, #tpu.memory_space<smem>>
      %200 = vector.extract_strided_slice %166 {offsets = [3, 0], sizes = [16, 16], strides = [1, 1]} : vector<22x16xf32> to vector<16x16xf32>
      %201 = vector.broadcast %198 : f32 to vector<16x16xf32>
      %202 = arith.mulf %201, %200 : vector<16x16xf32>
      %203 = arith.addf %193, %202 : vector<16x16xf32>
      %204 = vector.extract_strided_slice %167 {offsets = [3, 0], sizes = [16, 16], strides = [1, 1]} : vector<22x16xf32> to vector<16x16xf32>
      %205 = vector.broadcast %199 : f32 to vector<16x16xf32>
      %206 = arith.mulf %205, %204 : vector<16x16xf32>
      %207 = arith.addf %197, %206 : vector<16x16xf32>
      %c29 = arith.constant 29 : index
      %208 = memref.load %arg2[%c29] : memref<98xf32, #tpu.memory_space<smem>>
      %c78 = arith.constant 78 : index
      %209 = memref.load %arg2[%c78] : memref<98xf32, #tpu.memory_space<smem>>
      %210 = vector.extract_strided_slice %166 {offsets = [4, 0], sizes = [16, 16], strides = [1, 1]} : vector<22x16xf32> to vector<16x16xf32>
      %211 = vector.broadcast %208 : f32 to vector<16x16xf32>
      %212 = arith.mulf %211, %210 : vector<16x16xf32>
      %213 = arith.addf %203, %212 : vector<16x16xf32>
      %214 = vector.extract_strided_slice %167 {offsets = [4, 0], sizes = [16, 16], strides = [1, 1]} : vector<22x16xf32> to vector<16x16xf32>
      %215 = vector.broadcast %209 : f32 to vector<16x16xf32>
      %216 = arith.mulf %215, %214 : vector<16x16xf32>
      %217 = arith.addf %207, %216 : vector<16x16xf32>
      %c36 = arith.constant 36 : index
      %218 = memref.load %arg2[%c36] : memref<98xf32, #tpu.memory_space<smem>>
      %c85 = arith.constant 85 : index
      %219 = memref.load %arg2[%c85] : memref<98xf32, #tpu.memory_space<smem>>
      %220 = vector.extract_strided_slice %166 {offsets = [5, 0], sizes = [16, 16], strides = [1, 1]} : vector<22x16xf32> to vector<16x16xf32>
      %221 = vector.broadcast %218 : f32 to vector<16x16xf32>
      %222 = arith.mulf %221, %220 : vector<16x16xf32>
      %223 = arith.addf %213, %222 : vector<16x16xf32>
      %224 = vector.extract_strided_slice %167 {offsets = [5, 0], sizes = [16, 16], strides = [1, 1]} : vector<22x16xf32> to vector<16x16xf32>
      %225 = vector.broadcast %219 : f32 to vector<16x16xf32>
      %226 = arith.mulf %225, %224 : vector<16x16xf32>
      %227 = arith.addf %217, %226 : vector<16x16xf32>
      %c43 = arith.constant 43 : index
      %228 = memref.load %arg2[%c43] : memref<98xf32, #tpu.memory_space<smem>>
      %c92 = arith.constant 92 : index
      %229 = memref.load %arg2[%c92] : memref<98xf32, #tpu.memory_space<smem>>
      %230 = vector.extract_strided_slice %166 {offsets = [6, 0], sizes = [16, 16], strides = [1, 1]} : vector<22x16xf32> to vector<16x16xf32>
      %231 = vector.broadcast %228 : f32 to vector<16x16xf32>
      %232 = arith.mulf %231, %230 : vector<16x16xf32>
      %233 = arith.addf %223, %232 : vector<16x16xf32>
      %234 = vector.extract_strided_slice %167 {offsets = [6, 0], sizes = [16, 16], strides = [1, 1]} : vector<22x16xf32> to vector<16x16xf32>
      %235 = vector.broadcast %229 : f32 to vector<16x16xf32>
      %236 = arith.mulf %235, %234 : vector<16x16xf32>
      %237 = arith.addf %227, %236 : vector<16x16xf32>
      %c0_143 = arith.constant 0 : index
      %c2 = arith.constant 2 : index
      %238 = vector.load %arg9[%c0_143, %c2] : memref<22x22xf32, #tpu.memory_space<vmem>>, vector<22x16xf32>
      %c0_144 = arith.constant 0 : index
      %c2_145 = arith.constant 2 : index
      %239 = vector.load %arg10[%c0_144, %c2_145] : memref<22x22xf32, #tpu.memory_space<vmem>>, vector<22x16xf32>
      %c2_146 = arith.constant 2 : index
      %240 = memref.load %arg2[%c2_146] : memref<98xf32, #tpu.memory_space<smem>>
      %c51 = arith.constant 51 : index
      %241 = memref.load %arg2[%c51] : memref<98xf32, #tpu.memory_space<smem>>
      %242 = vector.extract_strided_slice %238 {offsets = [0, 0], sizes = [16, 16], strides = [1, 1]} : vector<22x16xf32> to vector<16x16xf32>
      %243 = vector.broadcast %240 : f32 to vector<16x16xf32>
      %244 = arith.mulf %243, %242 : vector<16x16xf32>
      %245 = arith.addf %233, %244 : vector<16x16xf32>
      %246 = vector.extract_strided_slice %239 {offsets = [0, 0], sizes = [16, 16], strides = [1, 1]} : vector<22x16xf32> to vector<16x16xf32>
      %247 = vector.broadcast %241 : f32 to vector<16x16xf32>
      %248 = arith.mulf %247, %246 : vector<16x16xf32>
      %249 = arith.addf %237, %248 : vector<16x16xf32>
      %c9_147 = arith.constant 9 : index
      %250 = memref.load %arg2[%c9_147] : memref<98xf32, #tpu.memory_space<smem>>
      %c58 = arith.constant 58 : index
      %251 = memref.load %arg2[%c58] : memref<98xf32, #tpu.memory_space<smem>>
      %252 = vector.extract_strided_slice %238 {offsets = [1, 0], sizes = [16, 16], strides = [1, 1]} : vector<22x16xf32> to vector<16x16xf32>
      %253 = vector.broadcast %250 : f32 to vector<16x16xf32>
      %254 = arith.mulf %253, %252 : vector<16x16xf32>
      %255 = arith.addf %245, %254 : vector<16x16xf32>
      %256 = vector.extract_strided_slice %239 {offsets = [1, 0], sizes = [16, 16], strides = [1, 1]} : vector<22x16xf32> to vector<16x16xf32>
      %257 = vector.broadcast %251 : f32 to vector<16x16xf32>
      %258 = arith.mulf %257, %256 : vector<16x16xf32>
      %259 = arith.addf %249, %258 : vector<16x16xf32>
      %c16_148 = arith.constant 16 : index
      %260 = memref.load %arg2[%c16_148] : memref<98xf32, #tpu.memory_space<smem>>
      %c65 = arith.constant 65 : index
      %261 = memref.load %arg2[%c65] : memref<98xf32, #tpu.memory_space<smem>>
      %262 = vector.extract_strided_slice %238 {offsets = [2, 0], sizes = [16, 16], strides = [1, 1]} : vector<22x16xf32> to vector<16x16xf32>
      %263 = vector.broadcast %260 : f32 to vector<16x16xf32>
      %264 = arith.mulf %263, %262 : vector<16x16xf32>
      %265 = arith.addf %255, %264 : vector<16x16xf32>
      %266 = vector.extract_strided_slice %239 {offsets = [2, 0], sizes = [16, 16], strides = [1, 1]} : vector<22x16xf32> to vector<16x16xf32>
      %267 = vector.broadcast %261 : f32 to vector<16x16xf32>
      %268 = arith.mulf %267, %266 : vector<16x16xf32>
      %269 = arith.addf %259, %268 : vector<16x16xf32>
      %c23 = arith.constant 23 : index
      %270 = memref.load %arg2[%c23] : memref<98xf32, #tpu.memory_space<smem>>
      %c72 = arith.constant 72 : index
      %271 = memref.load %arg2[%c72] : memref<98xf32, #tpu.memory_space<smem>>
      %272 = vector.extract_strided_slice %238 {offsets = [3, 0], sizes = [16, 16], strides = [1, 1]} : vector<22x16xf32> to vector<16x16xf32>
      %273 = vector.broadcast %270 : f32 to vector<16x16xf32>
      %274 = arith.mulf %273, %272 : vector<16x16xf32>
      %275 = arith.addf %265, %274 : vector<16x16xf32>
      %276 = vector.extract_strided_slice %239 {offsets = [3, 0], sizes = [16, 16], strides = [1, 1]} : vector<22x16xf32> to vector<16x16xf32>
      %277 = vector.broadcast %271 : f32 to vector<16x16xf32>
      %278 = arith.mulf %277, %276 : vector<16x16xf32>
      %279 = arith.addf %269, %278 : vector<16x16xf32>
      %c30 = arith.constant 30 : index
      %280 = memref.load %arg2[%c30] : memref<98xf32, #tpu.memory_space<smem>>
      %c79 = arith.constant 79 : index
      %281 = memref.load %arg2[%c79] : memref<98xf32, #tpu.memory_space<smem>>
      %282 = vector.extract_strided_slice %238 {offsets = [4, 0], sizes = [16, 16], strides = [1, 1]} : vector<22x16xf32> to vector<16x16xf32>
      %283 = vector.broadcast %280 : f32 to vector<16x16xf32>
      %284 = arith.mulf %283, %282 : vector<16x16xf32>
      %285 = arith.addf %275, %284 : vector<16x16xf32>
      %286 = vector.extract_strided_slice %239 {offsets = [4, 0], sizes = [16, 16], strides = [1, 1]} : vector<22x16xf32> to vector<16x16xf32>
      %287 = vector.broadcast %281 : f32 to vector<16x16xf32>
      %288 = arith.mulf %287, %286 : vector<16x16xf32>
      %289 = arith.addf %279, %288 : vector<16x16xf32>
      %c37 = arith.constant 37 : index
      %290 = memref.load %arg2[%c37] : memref<98xf32, #tpu.memory_space<smem>>
      %c86 = arith.constant 86 : index
      %291 = memref.load %arg2[%c86] : memref<98xf32, #tpu.memory_space<smem>>
      %292 = vector.extract_strided_slice %238 {offsets = [5, 0], sizes = [16, 16], strides = [1, 1]} : vector<22x16xf32> to vector<16x16xf32>
      %293 = vector.broadcast %290 : f32 to vector<16x16xf32>
      %294 = arith.mulf %293, %292 : vector<16x16xf32>
      %295 = arith.addf %285, %294 : vector<16x16xf32>
      %296 = vector.extract_strided_slice %239 {offsets = [5, 0], sizes = [16, 16], strides = [1, 1]} : vector<22x16xf32> to vector<16x16xf32>
      %297 = vector.broadcast %291 : f32 to vector<16x16xf32>
      %298 = arith.mulf %297, %296 : vector<16x16xf32>
      %299 = arith.addf %289, %298 : vector<16x16xf32>
      %c44 = arith.constant 44 : index
      %300 = memref.load %arg2[%c44] : memref<98xf32, #tpu.memory_space<smem>>
      %c93 = arith.constant 93 : index
      %301 = memref.load %arg2[%c93] : memref<98xf32, #tpu.memory_space<smem>>
      %302 = vector.extract_strided_slice %238 {offsets = [6, 0], sizes = [16, 16], strides = [1, 1]} : vector<22x16xf32> to vector<16x16xf32>
      %303 = vector.broadcast %300 : f32 to vector<16x16xf32>
      %304 = arith.mulf %303, %302 : vector<16x16xf32>
      %305 = arith.addf %295, %304 : vector<16x16xf32>
      %306 = vector.extract_strided_slice %239 {offsets = [6, 0], sizes = [16, 16], strides = [1, 1]} : vector<22x16xf32> to vector<16x16xf32>
      %307 = vector.broadcast %301 : f32 to vector<16x16xf32>
      %308 = arith.mulf %307, %306 : vector<16x16xf32>
      %309 = arith.addf %299, %308 : vector<16x16xf32>
      %c0_149 = arith.constant 0 : index
      %c3_150 = arith.constant 3 : index
      %310 = vector.load %arg9[%c0_149, %c3_150] : memref<22x22xf32, #tpu.memory_space<vmem>>, vector<22x16xf32>
      %c0_151 = arith.constant 0 : index
      %c3_152 = arith.constant 3 : index
      %311 = vector.load %arg10[%c0_151, %c3_152] : memref<22x22xf32, #tpu.memory_space<vmem>>, vector<22x16xf32>
      %c3_153 = arith.constant 3 : index
      %312 = memref.load %arg2[%c3_153] : memref<98xf32, #tpu.memory_space<smem>>
      %c52 = arith.constant 52 : index
      %313 = memref.load %arg2[%c52] : memref<98xf32, #tpu.memory_space<smem>>
      %314 = vector.extract_strided_slice %310 {offsets = [0, 0], sizes = [16, 16], strides = [1, 1]} : vector<22x16xf32> to vector<16x16xf32>
      %315 = vector.broadcast %312 : f32 to vector<16x16xf32>
      %316 = arith.mulf %315, %314 : vector<16x16xf32>
      %317 = arith.addf %305, %316 : vector<16x16xf32>
      %318 = vector.extract_strided_slice %311 {offsets = [0, 0], sizes = [16, 16], strides = [1, 1]} : vector<22x16xf32> to vector<16x16xf32>
      %319 = vector.broadcast %313 : f32 to vector<16x16xf32>
      %320 = arith.mulf %319, %318 : vector<16x16xf32>
      %321 = arith.addf %309, %320 : vector<16x16xf32>
      %c10_154 = arith.constant 10 : index
      %322 = memref.load %arg2[%c10_154] : memref<98xf32, #tpu.memory_space<smem>>
      %c59 = arith.constant 59 : index
      %323 = memref.load %arg2[%c59] : memref<98xf32, #tpu.memory_space<smem>>
      %324 = vector.extract_strided_slice %310 {offsets = [1, 0], sizes = [16, 16], strides = [1, 1]} : vector<22x16xf32> to vector<16x16xf32>
      %325 = vector.broadcast %322 : f32 to vector<16x16xf32>
      %326 = arith.mulf %325, %324 : vector<16x16xf32>
      %327 = arith.addf %317, %326 : vector<16x16xf32>
      %328 = vector.extract_strided_slice %311 {offsets = [1, 0], sizes = [16, 16], strides = [1, 1]} : vector<22x16xf32> to vector<16x16xf32>
      %329 = vector.broadcast %323 : f32 to vector<16x16xf32>
      %330 = arith.mulf %329, %328 : vector<16x16xf32>
      %331 = arith.addf %321, %330 : vector<16x16xf32>
      %c17_155 = arith.constant 17 : index
      %332 = memref.load %arg2[%c17_155] : memref<98xf32, #tpu.memory_space<smem>>
      %c66 = arith.constant 66 : index
      %333 = memref.load %arg2[%c66] : memref<98xf32, #tpu.memory_space<smem>>
      %334 = vector.extract_strided_slice %310 {offsets = [2, 0], sizes = [16, 16], strides = [1, 1]} : vector<22x16xf32> to vector<16x16xf32>
      %335 = vector.broadcast %332 : f32 to vector<16x16xf32>
      %336 = arith.mulf %335, %334 : vector<16x16xf32>
      %337 = arith.addf %327, %336 : vector<16x16xf32>
      %338 = vector.extract_strided_slice %311 {offsets = [2, 0], sizes = [16, 16], strides = [1, 1]} : vector<22x16xf32> to vector<16x16xf32>
      %339 = vector.broadcast %333 : f32 to vector<16x16xf32>
      %340 = arith.mulf %339, %338 : vector<16x16xf32>
      %341 = arith.addf %331, %340 : vector<16x16xf32>
      %c24 = arith.constant 24 : index
      %342 = memref.load %arg2[%c24] : memref<98xf32, #tpu.memory_space<smem>>
      %c73 = arith.constant 73 : index
      %343 = memref.load %arg2[%c73] : memref<98xf32, #tpu.memory_space<smem>>
      %344 = vector.extract_strided_slice %310 {offsets = [3, 0], sizes = [16, 16], strides = [1, 1]} : vector<22x16xf32> to vector<16x16xf32>
      %345 = vector.broadcast %342 : f32 to vector<16x16xf32>
      %346 = arith.mulf %345, %344 : vector<16x16xf32>
      %347 = arith.addf %337, %346 : vector<16x16xf32>
      %348 = vector.extract_strided_slice %311 {offsets = [3, 0], sizes = [16, 16], strides = [1, 1]} : vector<22x16xf32> to vector<16x16xf32>
      %349 = vector.broadcast %343 : f32 to vector<16x16xf32>
      %350 = arith.mulf %349, %348 : vector<16x16xf32>
      %351 = arith.addf %341, %350 : vector<16x16xf32>
      %c31 = arith.constant 31 : index
      %352 = memref.load %arg2[%c31] : memref<98xf32, #tpu.memory_space<smem>>
      %c80_156 = arith.constant 80 : index
      %353 = memref.load %arg2[%c80_156] : memref<98xf32, #tpu.memory_space<smem>>
      %354 = vector.extract_strided_slice %310 {offsets = [4, 0], sizes = [16, 16], strides = [1, 1]} : vector<22x16xf32> to vector<16x16xf32>
      %355 = vector.broadcast %352 : f32 to vector<16x16xf32>
      %356 = arith.mulf %355, %354 : vector<16x16xf32>
      %357 = arith.addf %347, %356 : vector<16x16xf32>
      %358 = vector.extract_strided_slice %311 {offsets = [4, 0], sizes = [16, 16], strides = [1, 1]} : vector<22x16xf32> to vector<16x16xf32>
      %359 = vector.broadcast %353 : f32 to vector<16x16xf32>
      %360 = arith.mulf %359, %358 : vector<16x16xf32>
      %361 = arith.addf %351, %360 : vector<16x16xf32>
      %c38 = arith.constant 38 : index
      %362 = memref.load %arg2[%c38] : memref<98xf32, #tpu.memory_space<smem>>
      %c87 = arith.constant 87 : index
      %363 = memref.load %arg2[%c87] : memref<98xf32, #tpu.memory_space<smem>>
      %364 = vector.extract_strided_slice %310 {offsets = [5, 0], sizes = [16, 16], strides = [1, 1]} : vector<22x16xf32> to vector<16x16xf32>
      %365 = vector.broadcast %362 : f32 to vector<16x16xf32>
      %366 = arith.mulf %365, %364 : vector<16x16xf32>
      %367 = arith.addf %357, %366 : vector<16x16xf32>
      %368 = vector.extract_strided_slice %311 {offsets = [5, 0], sizes = [16, 16], strides = [1, 1]} : vector<22x16xf32> to vector<16x16xf32>
      %369 = vector.broadcast %363 : f32 to vector<16x16xf32>
      %370 = arith.mulf %369, %368 : vector<16x16xf32>
      %371 = arith.addf %361, %370 : vector<16x16xf32>
      %c45 = arith.constant 45 : index
      %372 = memref.load %arg2[%c45] : memref<98xf32, #tpu.memory_space<smem>>
      %c94 = arith.constant 94 : index
      %373 = memref.load %arg2[%c94] : memref<98xf32, #tpu.memory_space<smem>>
      %374 = vector.extract_strided_slice %310 {offsets = [6, 0], sizes = [16, 16], strides = [1, 1]} : vector<22x16xf32> to vector<16x16xf32>
      %375 = vector.broadcast %372 : f32 to vector<16x16xf32>
      %376 = arith.mulf %375, %374 : vector<16x16xf32>
      %377 = arith.addf %367, %376 : vector<16x16xf32>
      %378 = vector.extract_strided_slice %311 {offsets = [6, 0], sizes = [16, 16], strides = [1, 1]} : vector<22x16xf32> to vector<16x16xf32>
      %379 = vector.broadcast %373 : f32 to vector<16x16xf32>
      %380 = arith.mulf %379, %378 : vector<16x16xf32>
      %381 = arith.addf %371, %380 : vector<16x16xf32>
      %c0_157 = arith.constant 0 : index
      %c4_158 = arith.constant 4 : index
      %382 = vector.load %arg9[%c0_157, %c4_158] : memref<22x22xf32, #tpu.memory_space<vmem>>, vector<22x16xf32>
      %c0_159 = arith.constant 0 : index
      %c4_160 = arith.constant 4 : index
      %383 = vector.load %arg10[%c0_159, %c4_160] : memref<22x22xf32, #tpu.memory_space<vmem>>, vector<22x16xf32>
      %c4_161 = arith.constant 4 : index
      %384 = memref.load %arg2[%c4_161] : memref<98xf32, #tpu.memory_space<smem>>
      %c53 = arith.constant 53 : index
      %385 = memref.load %arg2[%c53] : memref<98xf32, #tpu.memory_space<smem>>
      %386 = vector.extract_strided_slice %382 {offsets = [0, 0], sizes = [16, 16], strides = [1, 1]} : vector<22x16xf32> to vector<16x16xf32>
      %387 = vector.broadcast %384 : f32 to vector<16x16xf32>
      %388 = arith.mulf %387, %386 : vector<16x16xf32>
      %389 = arith.addf %377, %388 : vector<16x16xf32>
      %390 = vector.extract_strided_slice %383 {offsets = [0, 0], sizes = [16, 16], strides = [1, 1]} : vector<22x16xf32> to vector<16x16xf32>
      %391 = vector.broadcast %385 : f32 to vector<16x16xf32>
      %392 = arith.mulf %391, %390 : vector<16x16xf32>
      %393 = arith.addf %381, %392 : vector<16x16xf32>
      %c11_162 = arith.constant 11 : index
      %394 = memref.load %arg2[%c11_162] : memref<98xf32, #tpu.memory_space<smem>>
      %c60 = arith.constant 60 : index
      %395 = memref.load %arg2[%c60] : memref<98xf32, #tpu.memory_space<smem>>
      %396 = vector.extract_strided_slice %382 {offsets = [1, 0], sizes = [16, 16], strides = [1, 1]} : vector<22x16xf32> to vector<16x16xf32>
      %397 = vector.broadcast %394 : f32 to vector<16x16xf32>
      %398 = arith.mulf %397, %396 : vector<16x16xf32>
      %399 = arith.addf %389, %398 : vector<16x16xf32>
      %400 = vector.extract_strided_slice %383 {offsets = [1, 0], sizes = [16, 16], strides = [1, 1]} : vector<22x16xf32> to vector<16x16xf32>
      %401 = vector.broadcast %395 : f32 to vector<16x16xf32>
      %402 = arith.mulf %401, %400 : vector<16x16xf32>
      %403 = arith.addf %393, %402 : vector<16x16xf32>
      %c18_163 = arith.constant 18 : index
      %404 = memref.load %arg2[%c18_163] : memref<98xf32, #tpu.memory_space<smem>>
      %c67 = arith.constant 67 : index
      %405 = memref.load %arg2[%c67] : memref<98xf32, #tpu.memory_space<smem>>
      %406 = vector.extract_strided_slice %382 {offsets = [2, 0], sizes = [16, 16], strides = [1, 1]} : vector<22x16xf32> to vector<16x16xf32>
      %407 = vector.broadcast %404 : f32 to vector<16x16xf32>
      %408 = arith.mulf %407, %406 : vector<16x16xf32>
      %409 = arith.addf %399, %408 : vector<16x16xf32>
      %410 = vector.extract_strided_slice %383 {offsets = [2, 0], sizes = [16, 16], strides = [1, 1]} : vector<22x16xf32> to vector<16x16xf32>
      %411 = vector.broadcast %405 : f32 to vector<16x16xf32>
      %412 = arith.mulf %411, %410 : vector<16x16xf32>
      %413 = arith.addf %403, %412 : vector<16x16xf32>
      %c25 = arith.constant 25 : index
      %414 = memref.load %arg2[%c25] : memref<98xf32, #tpu.memory_space<smem>>
      %c74 = arith.constant 74 : index
      %415 = memref.load %arg2[%c74] : memref<98xf32, #tpu.memory_space<smem>>
      %416 = vector.extract_strided_slice %382 {offsets = [3, 0], sizes = [16, 16], strides = [1, 1]} : vector<22x16xf32> to vector<16x16xf32>
      %417 = vector.broadcast %414 : f32 to vector<16x16xf32>
      %418 = arith.mulf %417, %416 : vector<16x16xf32>
      %419 = arith.addf %409, %418 : vector<16x16xf32>
      %420 = vector.extract_strided_slice %383 {offsets = [3, 0], sizes = [16, 16], strides = [1, 1]} : vector<22x16xf32> to vector<16x16xf32>
      %421 = vector.broadcast %415 : f32 to vector<16x16xf32>
      %422 = arith.mulf %421, %420 : vector<16x16xf32>
      %423 = arith.addf %413, %422 : vector<16x16xf32>
      %c32_164 = arith.constant 32 : index
      %424 = memref.load %arg2[%c32_164] : memref<98xf32, #tpu.memory_space<smem>>
      %c81 = arith.constant 81 : index
      %425 = memref.load %arg2[%c81] : memref<98xf32, #tpu.memory_space<smem>>
      %426 = vector.extract_strided_slice %382 {offsets = [4, 0], sizes = [16, 16], strides = [1, 1]} : vector<22x16xf32> to vector<16x16xf32>
      %427 = vector.broadcast %424 : f32 to vector<16x16xf32>
      %428 = arith.mulf %427, %426 : vector<16x16xf32>
      %429 = arith.addf %419, %428 : vector<16x16xf32>
      %430 = vector.extract_strided_slice %383 {offsets = [4, 0], sizes = [16, 16], strides = [1, 1]} : vector<22x16xf32> to vector<16x16xf32>
      %431 = vector.broadcast %425 : f32 to vector<16x16xf32>
      %432 = arith.mulf %431, %430 : vector<16x16xf32>
      %433 = arith.addf %423, %432 : vector<16x16xf32>
      %c39 = arith.constant 39 : index
      %434 = memref.load %arg2[%c39] : memref<98xf32, #tpu.memory_space<smem>>
      %c88 = arith.constant 88 : index
      %435 = memref.load %arg2[%c88] : memref<98xf32, #tpu.memory_space<smem>>
      %436 = vector.extract_strided_slice %382 {offsets = [5, 0], sizes = [16, 16], strides = [1, 1]} : vector<22x16xf32> to vector<16x16xf32>
      %437 = vector.broadcast %434 : f32 to vector<16x16xf32>
      %438 = arith.mulf %437, %436 : vector<16x16xf32>
      %439 = arith.addf %429, %438 : vector<16x16xf32>
      %440 = vector.extract_strided_slice %383 {offsets = [5, 0], sizes = [16, 16], strides = [1, 1]} : vector<22x16xf32> to vector<16x16xf32>
      %441 = vector.broadcast %435 : f32 to vector<16x16xf32>
      %442 = arith.mulf %441, %440 : vector<16x16xf32>
      %443 = arith.addf %433, %442 : vector<16x16xf32>
      %c46 = arith.constant 46 : index
      %444 = memref.load %arg2[%c46] : memref<98xf32, #tpu.memory_space<smem>>
      %c95 = arith.constant 95 : index
      %445 = memref.load %arg2[%c95] : memref<98xf32, #tpu.memory_space<smem>>
      %446 = vector.extract_strided_slice %382 {offsets = [6, 0], sizes = [16, 16], strides = [1, 1]} : vector<22x16xf32> to vector<16x16xf32>
      %447 = vector.broadcast %444 : f32 to vector<16x16xf32>
      %448 = arith.mulf %447, %446 : vector<16x16xf32>
      %449 = arith.addf %439, %448 : vector<16x16xf32>
      %450 = vector.extract_strided_slice %383 {offsets = [6, 0], sizes = [16, 16], strides = [1, 1]} : vector<22x16xf32> to vector<16x16xf32>
      %451 = vector.broadcast %445 : f32 to vector<16x16xf32>
      %452 = arith.mulf %451, %450 : vector<16x16xf32>
      %453 = arith.addf %443, %452 : vector<16x16xf32>
      %c0_165 = arith.constant 0 : index
      %c5_166 = arith.constant 5 : index
      %454 = vector.load %arg9[%c0_165, %c5_166] : memref<22x22xf32, #tpu.memory_space<vmem>>, vector<22x16xf32>
      %c0_167 = arith.constant 0 : index
      %c5_168 = arith.constant 5 : index
      %455 = vector.load %arg10[%c0_167, %c5_168] : memref<22x22xf32, #tpu.memory_space<vmem>>, vector<22x16xf32>
      %c5_169 = arith.constant 5 : index
      %456 = memref.load %arg2[%c5_169] : memref<98xf32, #tpu.memory_space<smem>>
      %c54 = arith.constant 54 : index
      %457 = memref.load %arg2[%c54] : memref<98xf32, #tpu.memory_space<smem>>
      %458 = vector.extract_strided_slice %454 {offsets = [0, 0], sizes = [16, 16], strides = [1, 1]} : vector<22x16xf32> to vector<16x16xf32>
      %459 = vector.broadcast %456 : f32 to vector<16x16xf32>
      %460 = arith.mulf %459, %458 : vector<16x16xf32>
      %461 = arith.addf %449, %460 : vector<16x16xf32>
      %462 = vector.extract_strided_slice %455 {offsets = [0, 0], sizes = [16, 16], strides = [1, 1]} : vector<22x16xf32> to vector<16x16xf32>
      %463 = vector.broadcast %457 : f32 to vector<16x16xf32>
      %464 = arith.mulf %463, %462 : vector<16x16xf32>
      %465 = arith.addf %453, %464 : vector<16x16xf32>
      %c12_170 = arith.constant 12 : index
      %466 = memref.load %arg2[%c12_170] : memref<98xf32, #tpu.memory_space<smem>>
      %c61 = arith.constant 61 : index
      %467 = memref.load %arg2[%c61] : memref<98xf32, #tpu.memory_space<smem>>
      %468 = vector.extract_strided_slice %454 {offsets = [1, 0], sizes = [16, 16], strides = [1, 1]} : vector<22x16xf32> to vector<16x16xf32>
      %469 = vector.broadcast %466 : f32 to vector<16x16xf32>
      %470 = arith.mulf %469, %468 : vector<16x16xf32>
      %471 = arith.addf %461, %470 : vector<16x16xf32>
      %472 = vector.extract_strided_slice %455 {offsets = [1, 0], sizes = [16, 16], strides = [1, 1]} : vector<22x16xf32> to vector<16x16xf32>
      %473 = vector.broadcast %467 : f32 to vector<16x16xf32>
      %474 = arith.mulf %473, %472 : vector<16x16xf32>
      %475 = arith.addf %465, %474 : vector<16x16xf32>
      %c19 = arith.constant 19 : index
      %476 = memref.load %arg2[%c19] : memref<98xf32, #tpu.memory_space<smem>>
      %c68 = arith.constant 68 : index
      %477 = memref.load %arg2[%c68] : memref<98xf32, #tpu.memory_space<smem>>
      %478 = vector.extract_strided_slice %454 {offsets = [2, 0], sizes = [16, 16], strides = [1, 1]} : vector<22x16xf32> to vector<16x16xf32>
      %479 = vector.broadcast %476 : f32 to vector<16x16xf32>
      %480 = arith.mulf %479, %478 : vector<16x16xf32>
      %481 = arith.addf %471, %480 : vector<16x16xf32>
      %482 = vector.extract_strided_slice %455 {offsets = [2, 0], sizes = [16, 16], strides = [1, 1]} : vector<22x16xf32> to vector<16x16xf32>
      %483 = vector.broadcast %477 : f32 to vector<16x16xf32>
      %484 = arith.mulf %483, %482 : vector<16x16xf32>
      %485 = arith.addf %475, %484 : vector<16x16xf32>
      %c26 = arith.constant 26 : index
      %486 = memref.load %arg2[%c26] : memref<98xf32, #tpu.memory_space<smem>>
      %c75 = arith.constant 75 : index
      %487 = memref.load %arg2[%c75] : memref<98xf32, #tpu.memory_space<smem>>
      %488 = vector.extract_strided_slice %454 {offsets = [3, 0], sizes = [16, 16], strides = [1, 1]} : vector<22x16xf32> to vector<16x16xf32>
      %489 = vector.broadcast %486 : f32 to vector<16x16xf32>
      %490 = arith.mulf %489, %488 : vector<16x16xf32>
      %491 = arith.addf %481, %490 : vector<16x16xf32>
      %492 = vector.extract_strided_slice %455 {offsets = [3, 0], sizes = [16, 16], strides = [1, 1]} : vector<22x16xf32> to vector<16x16xf32>
      %493 = vector.broadcast %487 : f32 to vector<16x16xf32>
      %494 = arith.mulf %493, %492 : vector<16x16xf32>
      %495 = arith.addf %485, %494 : vector<16x16xf32>
      %c33 = arith.constant 33 : index
      %496 = memref.load %arg2[%c33] : memref<98xf32, #tpu.memory_space<smem>>
      %c82 = arith.constant 82 : index
      %497 = memref.load %arg2[%c82] : memref<98xf32, #tpu.memory_space<smem>>
      %498 = vector.extract_strided_slice %454 {offsets = [4, 0], sizes = [16, 16], strides = [1, 1]} : vector<22x16xf32> to vector<16x16xf32>
      %499 = vector.broadcast %496 : f32 to vector<16x16xf32>
      %500 = arith.mulf %499, %498 : vector<16x16xf32>
      %501 = arith.addf %491, %500 : vector<16x16xf32>
      %502 = vector.extract_strided_slice %455 {offsets = [4, 0], sizes = [16, 16], strides = [1, 1]} : vector<22x16xf32> to vector<16x16xf32>
      %503 = vector.broadcast %497 : f32 to vector<16x16xf32>
      %504 = arith.mulf %503, %502 : vector<16x16xf32>
      %505 = arith.addf %495, %504 : vector<16x16xf32>
      %c40 = arith.constant 40 : index
      %506 = memref.load %arg2[%c40] : memref<98xf32, #tpu.memory_space<smem>>
      %c89 = arith.constant 89 : index
      %507 = memref.load %arg2[%c89] : memref<98xf32, #tpu.memory_space<smem>>
      %508 = vector.extract_strided_slice %454 {offsets = [5, 0], sizes = [16, 16], strides = [1, 1]} : vector<22x16xf32> to vector<16x16xf32>
      %509 = vector.broadcast %506 : f32 to vector<16x16xf32>
      %510 = arith.mulf %509, %508 : vector<16x16xf32>
      %511 = arith.addf %501, %510 : vector<16x16xf32>
      %512 = vector.extract_strided_slice %455 {offsets = [5, 0], sizes = [16, 16], strides = [1, 1]} : vector<22x16xf32> to vector<16x16xf32>
      %513 = vector.broadcast %507 : f32 to vector<16x16xf32>
      %514 = arith.mulf %513, %512 : vector<16x16xf32>
      %515 = arith.addf %505, %514 : vector<16x16xf32>
      %c47 = arith.constant 47 : index
      %516 = memref.load %arg2[%c47] : memref<98xf32, #tpu.memory_space<smem>>
      %c96_171 = arith.constant 96 : index
      %517 = memref.load %arg2[%c96_171] : memref<98xf32, #tpu.memory_space<smem>>
      %518 = vector.extract_strided_slice %454 {offsets = [6, 0], sizes = [16, 16], strides = [1, 1]} : vector<22x16xf32> to vector<16x16xf32>
      %519 = vector.broadcast %516 : f32 to vector<16x16xf32>
      %520 = arith.mulf %519, %518 : vector<16x16xf32>
      %521 = arith.addf %511, %520 : vector<16x16xf32>
      %522 = vector.extract_strided_slice %455 {offsets = [6, 0], sizes = [16, 16], strides = [1, 1]} : vector<22x16xf32> to vector<16x16xf32>
      %523 = vector.broadcast %517 : f32 to vector<16x16xf32>
      %524 = arith.mulf %523, %522 : vector<16x16xf32>
      %525 = arith.addf %515, %524 : vector<16x16xf32>
      %c0_172 = arith.constant 0 : index
      %c6_173 = arith.constant 6 : index
      %526 = vector.load %arg9[%c0_172, %c6_173] : memref<22x22xf32, #tpu.memory_space<vmem>>, vector<22x16xf32>
      %c0_174 = arith.constant 0 : index
      %c6_175 = arith.constant 6 : index
      %527 = vector.load %arg10[%c0_174, %c6_175] : memref<22x22xf32, #tpu.memory_space<vmem>>, vector<22x16xf32>
      %c6_176 = arith.constant 6 : index
      %528 = memref.load %arg2[%c6_176] : memref<98xf32, #tpu.memory_space<smem>>
      %c55 = arith.constant 55 : index
      %529 = memref.load %arg2[%c55] : memref<98xf32, #tpu.memory_space<smem>>
      %530 = vector.extract_strided_slice %526 {offsets = [0, 0], sizes = [16, 16], strides = [1, 1]} : vector<22x16xf32> to vector<16x16xf32>
      %531 = vector.broadcast %528 : f32 to vector<16x16xf32>
      %532 = arith.mulf %531, %530 : vector<16x16xf32>
      %533 = arith.addf %521, %532 : vector<16x16xf32>
      %534 = vector.extract_strided_slice %527 {offsets = [0, 0], sizes = [16, 16], strides = [1, 1]} : vector<22x16xf32> to vector<16x16xf32>
      %535 = vector.broadcast %529 : f32 to vector<16x16xf32>
      %536 = arith.mulf %535, %534 : vector<16x16xf32>
      %537 = arith.addf %525, %536 : vector<16x16xf32>
      %c13_177 = arith.constant 13 : index
      %538 = memref.load %arg2[%c13_177] : memref<98xf32, #tpu.memory_space<smem>>
      %c62 = arith.constant 62 : index
      %539 = memref.load %arg2[%c62] : memref<98xf32, #tpu.memory_space<smem>>
      %540 = vector.extract_strided_slice %526 {offsets = [1, 0], sizes = [16, 16], strides = [1, 1]} : vector<22x16xf32> to vector<16x16xf32>
      %541 = vector.broadcast %538 : f32 to vector<16x16xf32>
      %542 = arith.mulf %541, %540 : vector<16x16xf32>
      %543 = arith.addf %533, %542 : vector<16x16xf32>
      %544 = vector.extract_strided_slice %527 {offsets = [1, 0], sizes = [16, 16], strides = [1, 1]} : vector<22x16xf32> to vector<16x16xf32>
      %545 = vector.broadcast %539 : f32 to vector<16x16xf32>
      %546 = arith.mulf %545, %544 : vector<16x16xf32>
      %547 = arith.addf %537, %546 : vector<16x16xf32>
      %c20 = arith.constant 20 : index
      %548 = memref.load %arg2[%c20] : memref<98xf32, #tpu.memory_space<smem>>
      %c69 = arith.constant 69 : index
      %549 = memref.load %arg2[%c69] : memref<98xf32, #tpu.memory_space<smem>>
      %550 = vector.extract_strided_slice %526 {offsets = [2, 0], sizes = [16, 16], strides = [1, 1]} : vector<22x16xf32> to vector<16x16xf32>
      %551 = vector.broadcast %548 : f32 to vector<16x16xf32>
      %552 = arith.mulf %551, %550 : vector<16x16xf32>
      %553 = arith.addf %543, %552 : vector<16x16xf32>
      %554 = vector.extract_strided_slice %527 {offsets = [2, 0], sizes = [16, 16], strides = [1, 1]} : vector<22x16xf32> to vector<16x16xf32>
      %555 = vector.broadcast %549 : f32 to vector<16x16xf32>
      %556 = arith.mulf %555, %554 : vector<16x16xf32>
      %557 = arith.addf %547, %556 : vector<16x16xf32>
      %c27 = arith.constant 27 : index
      %558 = memref.load %arg2[%c27] : memref<98xf32, #tpu.memory_space<smem>>
      %c76 = arith.constant 76 : index
      %559 = memref.load %arg2[%c76] : memref<98xf32, #tpu.memory_space<smem>>
      %560 = vector.extract_strided_slice %526 {offsets = [3, 0], sizes = [16, 16], strides = [1, 1]} : vector<22x16xf32> to vector<16x16xf32>
      %561 = vector.broadcast %558 : f32 to vector<16x16xf32>
      %562 = arith.mulf %561, %560 : vector<16x16xf32>
      %563 = arith.addf %553, %562 : vector<16x16xf32>
      %564 = vector.extract_strided_slice %527 {offsets = [3, 0], sizes = [16, 16], strides = [1, 1]} : vector<22x16xf32> to vector<16x16xf32>
      %565 = vector.broadcast %559 : f32 to vector<16x16xf32>
      %566 = arith.mulf %565, %564 : vector<16x16xf32>
      %567 = arith.addf %557, %566 : vector<16x16xf32>
      %c34 = arith.constant 34 : index
      %568 = memref.load %arg2[%c34] : memref<98xf32, #tpu.memory_space<smem>>
      %c83 = arith.constant 83 : index
      %569 = memref.load %arg2[%c83] : memref<98xf32, #tpu.memory_space<smem>>
      %570 = vector.extract_strided_slice %526 {offsets = [4, 0], sizes = [16, 16], strides = [1, 1]} : vector<22x16xf32> to vector<16x16xf32>
      %571 = vector.broadcast %568 : f32 to vector<16x16xf32>
      %572 = arith.mulf %571, %570 : vector<16x16xf32>
      %573 = arith.addf %563, %572 : vector<16x16xf32>
      %574 = vector.extract_strided_slice %527 {offsets = [4, 0], sizes = [16, 16], strides = [1, 1]} : vector<22x16xf32> to vector<16x16xf32>
      %575 = vector.broadcast %569 : f32 to vector<16x16xf32>
      %576 = arith.mulf %575, %574 : vector<16x16xf32>
      %577 = arith.addf %567, %576 : vector<16x16xf32>
      %c41 = arith.constant 41 : index
      %578 = memref.load %arg2[%c41] : memref<98xf32, #tpu.memory_space<smem>>
      %c90 = arith.constant 90 : index
      %579 = memref.load %arg2[%c90] : memref<98xf32, #tpu.memory_space<smem>>
      %580 = vector.extract_strided_slice %526 {offsets = [5, 0], sizes = [16, 16], strides = [1, 1]} : vector<22x16xf32> to vector<16x16xf32>
      %581 = vector.broadcast %578 : f32 to vector<16x16xf32>
      %582 = arith.mulf %581, %580 : vector<16x16xf32>
      %583 = arith.addf %573, %582 : vector<16x16xf32>
      %584 = vector.extract_strided_slice %527 {offsets = [5, 0], sizes = [16, 16], strides = [1, 1]} : vector<22x16xf32> to vector<16x16xf32>
      %585 = vector.broadcast %579 : f32 to vector<16x16xf32>
      %586 = arith.mulf %585, %584 : vector<16x16xf32>
      %587 = arith.addf %577, %586 : vector<16x16xf32>
      %c48_178 = arith.constant 48 : index
      %588 = memref.load %arg2[%c48_178] : memref<98xf32, #tpu.memory_space<smem>>
      %c97 = arith.constant 97 : index
      %589 = memref.load %arg2[%c97] : memref<98xf32, #tpu.memory_space<smem>>
      %590 = vector.extract_strided_slice %526 {offsets = [6, 0], sizes = [16, 16], strides = [1, 1]} : vector<22x16xf32> to vector<16x16xf32>
      %591 = vector.broadcast %588 : f32 to vector<16x16xf32>
      %592 = arith.mulf %591, %590 : vector<16x16xf32>
      %593 = arith.addf %583, %592 : vector<16x16xf32>
      %594 = vector.extract_strided_slice %527 {offsets = [6, 0], sizes = [16, 16], strides = [1, 1]} : vector<22x16xf32> to vector<16x16xf32>
      %595 = vector.broadcast %589 : f32 to vector<16x16xf32>
      %596 = arith.mulf %595, %594 : vector<16x16xf32>
      %597 = arith.addf %587, %596 : vector<16x16xf32>
      %598 = arith.addf %593, %597 : vector<16x16xf32>
      %c0_179 = arith.constant 0 : index
      %599 = memref.load %arg3[%c0_179] : memref<1xf32, #tpu.memory_space<smem>>
      %600 = vector.broadcast %599 : f32 to vector<16x16xf32>
      %601 = arith.addf %598, %600 : vector<16x16xf32>
      %602 = arith.negf %601 : vector<16x16xf32>
      %603 = math.exp %602 : vector<16x16xf32>
      %cst_180 = arith.constant 1.000000e+00 : f32
      %604 = vector.broadcast %cst_180 : f32 to vector<16x16xf32>
      %605 = arith.addf %604, %603 : vector<16x16xf32>
      %606 = arith.divf %604, %605 : vector<16x16xf32>
      %607 = vector.extract_strided_slice %606 {offsets = [0, 0], sizes = [1, 16], strides = [1, 1]} : vector<16x16xf32> to vector<1x16xf32>
      %c0_181 = arith.constant 0 : index
      %c0_182 = arith.constant 0 : index
      %c0_183 = arith.constant 0 : index
      %608 = vector.load %arg5[%c0_181, %c0_182, %c0_183] : memref<1x1x256xf32, #tpu.memory_space<vmem>>, vector<1x1x16xf32>
      %609 = vector.shape_cast %608 : vector<1x1x16xf32> to vector<1x16xf32>
      %610 = vector.shape_cast %607 : vector<1x16xf32> to vector<1x1x16xf32>
      tpu.vector_store %arg5[%c0_181, %c0_182, %c0_183], %610 {strides = array<i32>} : memref<1x1x256xf32, #tpu.memory_space<vmem>>, vector<1x1x16xf32>,
      %611 = vector.extract_strided_slice %606 {offsets = [1, 0], sizes = [1, 16], strides = [1, 1]} : vector<16x16xf32> to vector<1x16xf32>
      %c0_184 = arith.constant 0 : index
      %c0_185 = arith.constant 0 : index
      %c16_186 = arith.constant 16 : index
      %612 = vector.load %arg5[%c0_184, %c0_185, %c16_186] : memref<1x1x256xf32, #tpu.memory_space<vmem>>, vector<1x1x16xf32>
      %613 = vector.shape_cast %612 : vector<1x1x16xf32> to vector<1x16xf32>
      %614 = vector.shape_cast %611 : vector<1x16xf32> to vector<1x1x16xf32>
      tpu.vector_store %arg5[%c0_184, %c0_185, %c16_186], %614 {strides = array<i32>} : memref<1x1x256xf32, #tpu.memory_space<vmem>>, vector<1x1x16xf32>,
      %615 = vector.extract_strided_slice %606 {offsets = [2, 0], sizes = [1, 16], strides = [1, 1]} : vector<16x16xf32> to vector<1x16xf32>
      %c0_187 = arith.constant 0 : index
      %c0_188 = arith.constant 0 : index
      %c32_189 = arith.constant 32 : index
      %616 = vector.load %arg5[%c0_187, %c0_188, %c32_189] : memref<1x1x256xf32, #tpu.memory_space<vmem>>, vector<1x1x16xf32>
      %617 = vector.shape_cast %616 : vector<1x1x16xf32> to vector<1x16xf32>
      %618 = vector.shape_cast %615 : vector<1x16xf32> to vector<1x1x16xf32>
      tpu.vector_store %arg5[%c0_187, %c0_188, %c32_189], %618 {strides = array<i32>} : memref<1x1x256xf32, #tpu.memory_space<vmem>>, vector<1x1x16xf32>,
      %619 = vector.extract_strided_slice %606 {offsets = [3, 0], sizes = [1, 16], strides = [1, 1]} : vector<16x16xf32> to vector<1x16xf32>
      %c0_190 = arith.constant 0 : index
      %c0_191 = arith.constant 0 : index
      %c48_192 = arith.constant 48 : index
      %620 = vector.load %arg5[%c0_190, %c0_191, %c48_192] : memref<1x1x256xf32, #tpu.memory_space<vmem>>, vector<1x1x16xf32>
      %621 = vector.shape_cast %620 : vector<1x1x16xf32> to vector<1x16xf32>
      %622 = vector.shape_cast %619 : vector<1x16xf32> to vector<1x1x16xf32>
      tpu.vector_store %arg5[%c0_190, %c0_191, %c48_192], %622 {strides = array<i32>} : memref<1x1x256xf32, #tpu.memory_space<vmem>>, vector<1x1x16xf32>,
      %623 = vector.extract_strided_slice %606 {offsets = [4, 0], sizes = [1, 16], strides = [1, 1]} : vector<16x16xf32> to vector<1x16xf32>
      %c0_193 = arith.constant 0 : index
      %c0_194 = arith.constant 0 : index
      %c64_195 = arith.constant 64 : index
      %624 = vector.load %arg5[%c0_193, %c0_194, %c64_195] : memref<1x1x256xf32, #tpu.memory_space<vmem>>, vector<1x1x16xf32>
      %625 = vector.shape_cast %624 : vector<1x1x16xf32> to vector<1x16xf32>
      %626 = vector.shape_cast %623 : vector<1x16xf32> to vector<1x1x16xf32>
      tpu.vector_store %arg5[%c0_193, %c0_194, %c64_195], %626 {strides = array<i32>} : memref<1x1x256xf32, #tpu.memory_space<vmem>>, vector<1x1x16xf32>,
      %627 = vector.extract_strided_slice %606 {offsets = [5, 0], sizes = [1, 16], strides = [1, 1]} : vector<16x16xf32> to vector<1x16xf32>
      %c0_196 = arith.constant 0 : index
      %c0_197 = arith.constant 0 : index
      %c80_198 = arith.constant 80 : index
      %628 = vector.load %arg5[%c0_196, %c0_197, %c80_198] : memref<1x1x256xf32, #tpu.memory_space<vmem>>, vector<1x1x16xf32>
      %629 = vector.shape_cast %628 : vector<1x1x16xf32> to vector<1x16xf32>
      %630 = vector.shape_cast %627 : vector<1x16xf32> to vector<1x1x16xf32>
      tpu.vector_store %arg5[%c0_196, %c0_197, %c80_198], %630 {strides = array<i32>} : memref<1x1x256xf32, #tpu.memory_space<vmem>>, vector<1x1x16xf32>,
      %631 = vector.extract_strided_slice %606 {offsets = [6, 0], sizes = [1, 16], strides = [1, 1]} : vector<16x16xf32> to vector<1x16xf32>
      %c0_199 = arith.constant 0 : index
      %c0_200 = arith.constant 0 : index
      %c96_201 = arith.constant 96 : index
      %632 = vector.load %arg5[%c0_199, %c0_200, %c96_201] : memref<1x1x256xf32, #tpu.memory_space<vmem>>, vector<1x1x16xf32>
      %633 = vector.shape_cast %632 : vector<1x1x16xf32> to vector<1x16xf32>
      %634 = vector.shape_cast %631 : vector<1x16xf32> to vector<1x1x16xf32>
      tpu.vector_store %arg5[%c0_199, %c0_200, %c96_201], %634 {strides = array<i32>} : memref<1x1x256xf32, #tpu.memory_space<vmem>>, vector<1x1x16xf32>,
      %635 = vector.extract_strided_slice %606 {offsets = [7, 0], sizes = [1, 16], strides = [1, 1]} : vector<16x16xf32> to vector<1x16xf32>
      %c0_202 = arith.constant 0 : index
      %c0_203 = arith.constant 0 : index
      %c112_204 = arith.constant 112 : index
      %636 = vector.load %arg5[%c0_202, %c0_203, %c112_204] : memref<1x1x256xf32, #tpu.memory_space<vmem>>, vector<1x1x16xf32>
      %637 = vector.shape_cast %636 : vector<1x1x16xf32> to vector<1x16xf32>
      %638 = vector.shape_cast %635 : vector<1x16xf32> to vector<1x1x16xf32>
      tpu.vector_store %arg5[%c0_202, %c0_203, %c112_204], %638 {strides = array<i32>} : memref<1x1x256xf32, #tpu.memory_space<vmem>>, vector<1x1x16xf32>,
      %639 = vector.extract_strided_slice %606 {offsets = [8, 0], sizes = [1, 16], strides = [1, 1]} : vector<16x16xf32> to vector<1x16xf32>
      %c0_205 = arith.constant 0 : index
      %c0_206 = arith.constant 0 : index
      %c128_207 = arith.constant 128 : index
      %640 = vector.load %arg5[%c0_205, %c0_206, %c128_207] : memref<1x1x256xf32, #tpu.memory_space<vmem>>, vector<1x1x16xf32>
      %641 = vector.shape_cast %640 : vector<1x1x16xf32> to vector<1x16xf32>
      %642 = vector.shape_cast %639 : vector<1x16xf32> to vector<1x1x16xf32>
      tpu.vector_store %arg5[%c0_205, %c0_206, %c128_207], %642 {strides = array<i32>} : memref<1x1x256xf32, #tpu.memory_space<vmem>>, vector<1x1x16xf32>,
      %643 = vector.extract_strided_slice %606 {offsets = [9, 0], sizes = [1, 16], strides = [1, 1]} : vector<16x16xf32> to vector<1x16xf32>
      %c0_208 = arith.constant 0 : index
      %c0_209 = arith.constant 0 : index
      %c144_210 = arith.constant 144 : index
      %644 = vector.load %arg5[%c0_208, %c0_209, %c144_210] : memref<1x1x256xf32, #tpu.memory_space<vmem>>, vector<1x1x16xf32>
      %645 = vector.shape_cast %644 : vector<1x1x16xf32> to vector<1x16xf32>
      %646 = vector.shape_cast %643 : vector<1x16xf32> to vector<1x1x16xf32>
      tpu.vector_store %arg5[%c0_208, %c0_209, %c144_210], %646 {strides = array<i32>} : memref<1x1x256xf32, #tpu.memory_space<vmem>>, vector<1x1x16xf32>,
      %647 = vector.extract_strided_slice %606 {offsets = [10, 0], sizes = [1, 16], strides = [1, 1]} : vector<16x16xf32> to vector<1x16xf32>
      %c0_211 = arith.constant 0 : index
      %c0_212 = arith.constant 0 : index
      %c160_213 = arith.constant 160 : index
      %648 = vector.load %arg5[%c0_211, %c0_212, %c160_213] : memref<1x1x256xf32, #tpu.memory_space<vmem>>, vector<1x1x16xf32>
      %649 = vector.shape_cast %648 : vector<1x1x16xf32> to vector<1x16xf32>
      %650 = vector.shape_cast %647 : vector<1x16xf32> to vector<1x1x16xf32>
      tpu.vector_store %arg5[%c0_211, %c0_212, %c160_213], %650 {strides = array<i32>} : memref<1x1x256xf32, #tpu.memory_space<vmem>>, vector<1x1x16xf32>,
      %651 = vector.extract_strided_slice %606 {offsets = [11, 0], sizes = [1, 16], strides = [1, 1]} : vector<16x16xf32> to vector<1x16xf32>
      %c0_214 = arith.constant 0 : index
      %c0_215 = arith.constant 0 : index
      %c176_216 = arith.constant 176 : index
      %652 = vector.load %arg5[%c0_214, %c0_215, %c176_216] : memref<1x1x256xf32, #tpu.memory_space<vmem>>, vector<1x1x16xf32>
      %653 = vector.shape_cast %652 : vector<1x1x16xf32> to vector<1x16xf32>
      %654 = vector.shape_cast %651 : vector<1x16xf32> to vector<1x1x16xf32>
      tpu.vector_store %arg5[%c0_214, %c0_215, %c176_216], %654 {strides = array<i32>} : memref<1x1x256xf32, #tpu.memory_space<vmem>>, vector<1x1x16xf32>,
      %655 = vector.extract_strided_slice %606 {offsets = [12, 0], sizes = [1, 16], strides = [1, 1]} : vector<16x16xf32> to vector<1x16xf32>
      %c0_217 = arith.constant 0 : index
      %c0_218 = arith.constant 0 : index
      %c192_219 = arith.constant 192 : index
      %656 = vector.load %arg5[%c0_217, %c0_218, %c192_219] : memref<1x1x256xf32, #tpu.memory_space<vmem>>, vector<1x1x16xf32>
      %657 = vector.shape_cast %656 : vector<1x1x16xf32> to vector<1x16xf32>
      %658 = vector.shape_cast %655 : vector<1x16xf32> to vector<1x1x16xf32>
      tpu.vector_store %arg5[%c0_217, %c0_218, %c192_219], %658 {strides = array<i32>} : memref<1x1x256xf32, #tpu.memory_space<vmem>>, vector<1x1x16xf32>,
      %659 = vector.extract_strided_slice %606 {offsets = [13, 0], sizes = [1, 16], strides = [1, 1]} : vector<16x16xf32> to vector<1x16xf32>
      %c0_220 = arith.constant 0 : index
      %c0_221 = arith.constant 0 : index
      %c208_222 = arith.constant 208 : index
      %660 = vector.load %arg5[%c0_220, %c0_221, %c208_222] : memref<1x1x256xf32, #tpu.memory_space<vmem>>, vector<1x1x16xf32>
      %661 = vector.shape_cast %660 : vector<1x1x16xf32> to vector<1x16xf32>
      %662 = vector.shape_cast %659 : vector<1x16xf32> to vector<1x1x16xf32>
      tpu.vector_store %arg5[%c0_220, %c0_221, %c208_222], %662 {strides = array<i32>} : memref<1x1x256xf32, #tpu.memory_space<vmem>>, vector<1x1x16xf32>,
      %663 = vector.extract_strided_slice %606 {offsets = [14, 0], sizes = [1, 16], strides = [1, 1]} : vector<16x16xf32> to vector<1x16xf32>
      %c0_223 = arith.constant 0 : index
      %c0_224 = arith.constant 0 : index
      %c224_225 = arith.constant 224 : index
      %664 = vector.load %arg5[%c0_223, %c0_224, %c224_225] : memref<1x1x256xf32, #tpu.memory_space<vmem>>, vector<1x1x16xf32>
      %665 = vector.shape_cast %664 : vector<1x1x16xf32> to vector<1x16xf32>
      %666 = vector.shape_cast %663 : vector<1x16xf32> to vector<1x1x16xf32>
      tpu.vector_store %arg5[%c0_223, %c0_224, %c224_225], %666 {strides = array<i32>} : memref<1x1x256xf32, #tpu.memory_space<vmem>>, vector<1x1x16xf32>,
      %667 = vector.extract_strided_slice %606 {offsets = [15, 0], sizes = [1, 16], strides = [1, 1]} : vector<16x16xf32> to vector<1x16xf32>
      %c0_226 = arith.constant 0 : index
      %c0_227 = arith.constant 0 : index
      %c240_228 = arith.constant 240 : index
      %668 = vector.load %arg5[%c0_226, %c0_227, %c240_228] : memref<1x1x256xf32, #tpu.memory_space<vmem>>, vector<1x1x16xf32>
      %669 = vector.shape_cast %668 : vector<1x1x16xf32> to vector<1x16xf32>
      %670 = vector.shape_cast %667 : vector<1x16xf32> to vector<1x1x16xf32>
      tpu.vector_store %arg5[%c0_226, %c0_227, %c240_228], %670 {strides = array<i32>} : memref<1x1x256xf32, #tpu.memory_space<vmem>>, vector<1x1x16xf32>,
    } else {
    }
    return
  }
  func.func @transform_0(%arg0: i32, %arg1: i32) -> i32 {
    %c0_i32 = arith.constant 0 : i32
    %c0_i32_0 = arith.constant 0 : i32
    return %c0_i32 : i32
  }
  func.func @transform_1(%arg0: i32, %arg1: i32) -> i32 {
    %c0_i32 = arith.constant 0 : i32
    %c0_i32_0 = arith.constant 0 : i32
    return %c0_i32 : i32
  }
  func.func @transform_2(%arg0: i32, %arg1: i32) -> (i32, i32, i32) {
    %c0_i32 = arith.constant 0 : i32
    %c0_i32_0 = arith.constant 0 : i32
    return %arg0, %arg1, %c0_i32 : i32, i32, i32
  }
  func.func @transform_3(%arg0: i32, %arg1: i32) -> (i32, i32, i32) {
    %c0_i32 = arith.constant 0 : i32
    %c0_i32_0 = arith.constant 0 : i32
    %c0_i32_1 = arith.constant 0 : i32
    return %arg0, %c0_i32, %c0_i32_0 : i32, i32, i32
  }
}

</mosaic_0001>

<llo_original>
// kernel: tpu_custom_call.1
$region0: #{tpu_custom_call.1}
  #allocation0 [shape = 'u32[]', space=smem, size = 0x4, offset = 0x4, fixed_abs, tag = 'smem constant byte address 0x4 - core index']
  #allocation1 [shape = 'u32[144,128]{1,0:T(1,128)}', space=vmem, size = 0x12000, scoped, tag = 'internal scratch']
  #allocation2 [shape = 'f32[8,256]{1,0:T(8,128)}', space=vmem, size = 0x2000, scoped, tag = 'scratch operand']
  #allocation3 [shape = 'f32[8,256]{1,0:T(8,128)}', space=vmem, size = 0x2000, scoped, tag = 'scratch operand']
  #allocation4 [shape = 'f32[2,256]{1,0:T(2,128)}', space=vmem, size = 0x800, scoped, tag = 'scratch operand']
  #allocation5 [shape = 'f32[22,22]{1,0:T(8,128)}', space=vmem, size = 0x3000, scoped, tag = 'scratch operand']
  #allocation6 [shape = 'f32[22,22]{1,0:T(8,128)}', space=vmem, size = 0x3000, scoped, tag = 'scratch operand']
  #allocation7 [shape = 'f32[1]{0:T(128)S(6)}', space=smem, size = 0x200, scoped, tag = 'scoped memory for tpu_custom_call.1']
  %s0 = inlined_call_operand.vmem [shape: f32[98], index: 0, kind: input, shape index: {}]
  %s1 = inlined_call_operand.<no memory space> [shape: f32[1], index: 1, kind: input, shape index: {}]
  %s2 = inlined_call_operand.hbm [shape: f32[2,4,256], index: 2, kind: input, shape index: {}]
  %s3 = inlined_call_operand.hbm [shape: f32[2,1,256], index: 3, kind: output, shape index: {}]
  %s4 = sld [smem:[#allocation0]]
  $region61: #{tpu_custom_call.1} parent=0
    _
  %s6 = ssub.s32 1, %s4
  %s7 = scalar_select 0, %s6, %s4
  %8 = sst [smem:[#allocation7]] %s1
  $region1: #{tpu_custom_call.1} parent=0
    #allocation8 [shape = 'u8[512]{0}', space=smem, size = 0x200, scoped, tag = 'input window, operand 0, single buffered']
    #allocation9 [shape = 's32[2]{0}', space=sflag, size = 0x8, scoped, tag = 'scoped memory for tpu_custom_call.1']
    #allocation10 [shape = 's32[2]{0}', space=sflag, size = 0x8, scoped, tag = 'scoped memory for tpu_custom_call.1']
    #allocation11 [shape = 's32[2]{0}', space=sflag, size = 0x8, scoped, tag = 'scoped memory for tpu_custom_call.1']
    #allocation12 [shape = 'u8[8192]{0}', space=vmem, size = 0x2000, scoped, tag = 'input window, operand 2']
    #allocation13 [shape = 'u8[2048]{0}', space=vmem, size = 0x800, scoped, tag = 'output window, operand 0']
    %9 = vsyncpa [#allocation11], 0
    %10 = vsyncpa [#allocation9], 0
    %s11 = scalar_lea.sflag [#allocation9], 1
    %12 = vsyncpa %s11, 0
    %13 = vsyncpa [#allocation10], 0
    %s14 = scalar_lea.sflag [#allocation10], 1
    %15 = vsyncpa %s14, 0
    loop: start=0, step=1, limit=4
    $region2: #{tpu_custom_call.1} parent=1 // loop_pre_header
      _
    $region3: #{tpu_custom_call.1} parent=1 // loop_header
      %s17 = sphi 0, %s21
      %p18 = scmp.ge.s32.totalorder %s17, 4
      %s24 = sphi 0, %s36
      %s25 = sphi 0, %s32
      %s26 = sphi 0, %s24
      %s27 = sphi 0, %s25
      %s28 = sphi 0, %s26
      %s29 = sphi 0, %s27
      %s37 = sphi 0, %s37
      %s39 = sphi 0, %s37
      %s40 = sphi 0, %s39
      %s54 = sphi 0, %s40
      %s58 = sphi 0, %s58
      %s60 = sphi 0, %s58
      %s61 = sphi 0, %s60
      %s75 = sphi 0, %s61
      %s83 = sphi 0, %s85
      %s86 = sphi 0, %s83
      %s87 = sphi 0, %s86
      %s103 = sphi 0, %s87
      %s109 = sphi 0, %s111
      %s112 = sphi 0, %s109
      %s113 = sphi 0, %s112
      %s129 = sphi 0, %s113
    $region4: #{tpu_custom_call.1} parent=1 // loop_header_branch
      %20 = sbr.rel (%p18) target = $region8
    $region5: #{tpu_custom_call.1} parent=1 // loop_body
      %s22 = ssub.s32 %s17, 1
      %s23 = ssub.s32 %s17, 2
      %s30 = sadd.s32 1, %s25
      %p31 = scmp.ge.s32.totalorder %s30, 1
      %s32 = scalar_select %p31, 0, %s30
      %s33 = sadd.s32 1, %s24
      %s34 = scalar_select %p31, %s33, %s24
      %p35 = scmp.ge.s32.totalorder %s34, 2
      %s36 = scalar_select %p35, 0, %s34
      %s38 = sadd.s32 %s37, 1
      %p41 = scmp.eq.s32.totalorder %s17, 1
      %p42 = scmp.ne.s32.totalorder %s37, %s39
      %p43 = scmp.eq.s32.totalorder %s17, 0
      %p44 = por %p42, %p43
      %p45 = scmp.ne.s32.totalorder %s37, %s39
      %p46 = scmp.eq.s32.totalorder %s22, 1
      %p47 = por %p45, %p46
      %p48 = scmp.ne.s32.totalorder %s39, %s40
      %p49 = scmp.eq.s32.totalorder %s22, 0
      %p50 = por %p48, %p49
      %p51 = scmp.ne.s32.totalorder %s39, %s40
      %p52 = scmp.eq.s32.totalorder %s23, 1
      %p53 = por %p51, %p52
      %p55 = scmp.ne.s32.totalorder %s40, %s54
      %p56 = scmp.eq.s32.totalorder %s23, 0
      %p57 = por %p55, %p56
      %s59 = sadd.s32 %s58, 1
      %p62 = scmp.eq.s32.totalorder %s17, 1
      %p63 = scmp.ne.s32.totalorder %s58, %s60
      %p64 = scmp.eq.s32.totalorder %s17, 0
      %p65 = por %p63, %p64
      %p66 = scmp.ne.s32.totalorder %s58, %s60
      %p67 = scmp.eq.s32.totalorder %s22, 1
      %p68 = por %p66, %p67
      %p69 = scmp.ne.s32.totalorder %s60, %s61
      %p70 = scmp.eq.s32.totalorder %s22, 0
      %p71 = por %p69, %p70
      %p72 = scmp.ne.s32.totalorder %s60, %s61
      %p73 = scmp.eq.s32.totalorder %s23, 1
      %p74 = por %p72, %p73
      %p76 = scmp.ne.s32.totalorder %s61, %s75
      %p77 = scmp.eq.s32.totalorder %s23, 0
      %p78 = por %p76, %p77
      %s79 = ssub.s32 %s24, %s36
      %s80 = ssub.s32 %s25, %s32
      %s81 = sor.u32 %s79, %s80
      %p82 = scmp.eq.s32.totalorder %s81, 0
      %s84 = sadd.s32 %s83, 1
      %s85 = scalar_select %p82, %s83, %s84
      %p88 = pneg %p82
      %p89 = scmp.eq.s32.totalorder %s17, 1
      %p90 = por %p88, %p89
      %p91 = scmp.ne.s32.totalorder %s83, %s86
      %p92 = scmp.eq.s32.totalorder %s17, 0
      %p93 = por %p91, %p92
      %p94 = scmp.ne.s32.totalorder %s83, %s86
      %p95 = scmp.eq.s32.totalorder %s22, 1
      %p96 = por %p94, %p95
      %p97 = scmp.ne.s32.totalorder %s86, %s87
      %p98 = scmp.eq.s32.totalorder %s22, 0
      %p99 = por %p97, %p98
      %p100 = scmp.ne.s32.totalorder %s86, %s87
      %p101 = scmp.eq.s32.totalorder %s23, 1
      %p102 = por %p100, %p101
      %p104 = scmp.ne.s32.totalorder %s87, %s103
      %p105 = scmp.eq.s32.totalorder %s23, 0
      %p106 = por %p104, %p105
      %s107 = ssub.s32 %s24, %s36
      %p108 = scmp.eq.s32.totalorder %s107, 0
      %s110 = sadd.s32 %s109, 1
      %s111 = scalar_select %p108, %s109, %s110
      %p114 = pneg %p108
      %p115 = scmp.eq.s32.totalorder %s17, 1
      %p116 = por %p114, %p115
      %p117 = scmp.ne.s32.totalorder %s109, %s112
      %p118 = scmp.eq.s32.totalorder %s17, 0
      %p119 = por %p117, %p118
      %p120 = scmp.ne.s32.totalorder %s109, %s112
      %p121 = scmp.eq.s32.totalorder %s22, 1
      %p122 = por %p120, %p121
      %p123 = scmp.ne.s32.totalorder %s112, %s113
      %p124 = scmp.eq.s32.totalorder %s22, 0
      %p125 = por %p123, %p124
      %p126 = scmp.ne.s32.totalorder %s112, %s113
      %p127 = scmp.eq.s32.totalorder %s23, 1
      %p128 = por %p126, %p127
      %p130 = scmp.ne.s32.totalorder %s113, %s129
      %p131 = scmp.eq.s32.totalorder %s23, 0
      %p132 = por %p130, %p131
      %p133 = scmp.le.s32.totalorder 1, %s17
      %p134 = scmp.lt.s32.totalorder %s17, 3
      %p135 = pnand %p133, %p134
      %p136 = pneg %p135
      // Predicated region
      $region9: #{tpu_custom_call.1} parent=5 // pred_check
        _
      $region10: #{tpu_custom_call.1} parent=5 // pred_check_branch
        %138 = sbr.rel (%p135) target = $region12
      $region11: #{tpu_custom_call.1} parent=5 // pred_region
        %s139 = ssub.s32 %s17, 1
        // Predicated region
        $region13: #{tpu_custom_call.1} parent=11 // pred_check
          %p140 = pneg %p50
        $region14: #{tpu_custom_call.1} parent=11 // pred_check_branch
          %142 = sbr.rel (%p140) target = $region16
        $region15: #{tpu_custom_call.1} parent=11 // pred_region
          %s144 = ssub.s32 16, 16
          %145 = vsyncadd [#allocation11], %s144
          %s147 = sshll.u32 %s0, 4
          %s148 = int_to_ptr.vmem [resolvable:$true] %s147
          %150 = dma.vmem_to_smem %s148, 16, [#allocation8], [#allocation11]
        $region16: #{tpu_custom_call.1} parent=11 // pred_fallthru
          _
        // Predicated region
        $region17: #{tpu_custom_call.1} parent=11 // pred_check
          %p151 = pneg %p71
        $region18: #{tpu_custom_call.1} parent=11 // pred_check_branch
          %153 = sbr.rel (%p151) target = $region20
        $region19: #{tpu_custom_call.1} parent=11 // pred_region
          _
        $region20: #{tpu_custom_call.1} parent=11 // pred_fallthru
          _
      $region12: #{tpu_custom_call.1} parent=5 // pred_fallthru
        _
      %p154 = scmp.lt.s32.totalorder %s17, 2
      // Predicated region
      $region21: #{tpu_custom_call.1} parent=5 // pred_check
        %p155 = pneg %p154
      $region22: #{tpu_custom_call.1} parent=5 // pred_check_branch
        %157 = sbr.rel (%p155) target = $region24
      $region23: #{tpu_custom_call.1} parent=5 // pred_region
        // Predicated region
        $region25: #{tpu_custom_call.1} parent=23 // pred_check
          %p158 = pneg %p93
        $region26: #{tpu_custom_call.1} parent=23 // pred_check_branch
          %160 = sbr.rel (%p158) target = $region28
        $region27: #{tpu_custom_call.1} parent=23 // pred_region
          %s161 = sand.u32 %s83, 1
          %s162 = scalar_lea.sflag [#allocation9], %s161
          %s163 = sand.u32 %s83, 1
          %s164 = smul.addr %s163, 8
          %s165 = scalar_lea.vmem [#allocation12], %s164
          %s167 = ssub.s32 128, 128
          %168 = vsyncadd %s162, %s167
          %s169 = smul.addr %s25, 2
          %s170 = smul.addr %s24, 2
          %s171 = sadd.s32 %s169, %s170
          %s172 = smul.addr %s171, 64
          %s173 = scalar_lea.hbm %s2, %s172
          %s175 = sshll.u32 %s165, 4
          %s176 = int_to_ptr.vmem [resolvable:$true] %s175
          %178 = dma.hbm_to_vmem [thread:$0]  %s173, 128, %s176, %s162
        $region28: #{tpu_custom_call.1} parent=23 // pred_fallthru
          _
      $region24: #{tpu_custom_call.1} parent=5 // pred_fallthru
        _
      %p179 = scmp.le.s32.totalorder 1, %s17
      %p180 = scmp.lt.s32.totalorder %s17, 3
      %p181 = pnand %p179, %p180
      %p182 = pneg %p181
      // Predicated region
      $region29: #{tpu_custom_call.1} parent=5 // pred_check
        _
      $region30: #{tpu_custom_call.1} parent=5 // pred_check_branch
        %184 = sbr.rel (%p181) target = $region32
      $region31: #{tpu_custom_call.1} parent=5 // pred_region
        %s185 = ssub.s32 %s17, 1
        // Predicated region
        $region33: #{tpu_custom_call.1} parent=31 // pred_check
          %p186 = pneg %p50
        $region34: #{tpu_custom_call.1} parent=31 // pred_check_branch
          %188 = sbr.rel (%p186) target = $region36
        $region35: #{tpu_custom_call.1} parent=31 // pred_region
          %189 = dma.done [#allocation11], 16
        $region36: #{tpu_custom_call.1} parent=31 // pred_fallthru
          _
        %s190 = sand.u32 %s86, 1
        %s191 = scalar_lea.sflag [#allocation9], %s190
        %s192 = sand.u32 %s86, 1
        %s193 = smul.addr %s192, 8
        %s194 = scalar_lea.vmem [#allocation12], %s193
        // Predicated region
        $region37: #{tpu_custom_call.1} parent=31 // pred_check
          %p195 = pneg %p99
        $region38: #{tpu_custom_call.1} parent=31 // pred_check_branch
          %197 = sbr.rel (%p195) target = $region40
        $region39: #{tpu_custom_call.1} parent=31 // pred_region
          %198 = dma.done %s191, 128
        $region40: #{tpu_custom_call.1} parent=31 // pred_fallthru
          _
        %199 = sfence
        %p200 = pneg %p50
        %p201 = pneg %p47
        %p202 = pneg %p71
        %p203 = pneg %p68
        %s204 = sand.u32 %s86, 1
        %s205 = scalar_lea.sflag [#allocation9], %s204
        %s206 = sand.u32 %s86, 1
        %s207 = smul.addr %s206, 8
        %s208 = scalar_lea.vmem [#allocation12], %s207
        %p209 = pneg %p99
        %p210 = pneg %p96
        %p211 = pneg %p125
        %p212 = pneg %p122
        %s213 = sand.u32 %s112, 1
        %s214 = scalar_lea.sflag [#allocation10], %s213
        %s215 = sand.u32 %s112, 1
        %s216 = smul.addr %s215, 2
        %s217 = scalar_lea.vmem [#allocation13], %s216
        %p218 = scmp.eq.s32.totalorder %s27, 0
        // Predicated region
        $region41: #{tpu_custom_call.1} parent=31 // pred_check
          %p219 = pneg %p218
        $region42: #{tpu_custom_call.1} parent=31 // pred_check_branch
          %221 = sbr.rel (%p219) target = $region44
        $region43: #{tpu_custom_call.1} parent=31 // pred_region
          %222 = vst [vmem:[#allocation2] sm:$0xff] -inf
          %223 = vst [vmem:[#allocation2 + $0x8] sm:$0xff] -inf
          %224 = vst [vmem:[#allocation3] sm:$0xff] 0.0
          %225 = vst [vmem:[#allocation3 + $0x8] sm:$0xff] 0.0
        $region44: #{tpu_custom_call.1} parent=31 // pred_fallthru
          _
        %v226 = vld [vmem:[%s194] sm:$0xff]
        %v227 = vld [vmem:[#allocation2] sm:$0xf]
        %v228 = vld [vmem:[#allocation2 + $0x8] sm:$0xf]
        %v230 = vcombine.high %v226, %v226
        %v232 = vmax.f32 %v227, %v226
        %v233 = vmax.f32 %v228, %v230
        %234 = vst [vmem:[#allocation2] sm:$0xf] %v232
        %235 = vst [vmem:[#allocation2 + $0x8] sm:$0xf] %v233
        %v236 = vld [vmem:[#allocation3] sm:$0xf]
        %v237 = vld [vmem:[#allocation3 + $0x8] sm:$0xf]
        %v238 = vadd.f32 %v236, %v226
        %v239 = vadd.f32 %v237, %v230
        %240 = vst [vmem:[#allocation3] sm:$0xf] %v238
        %241 = vst [vmem:[#allocation3 + $0x8] sm:$0xf] %v239
        // Predicated region
        $region45: #{tpu_custom_call.1} parent=31 // pred_check
          %p242 = pneg %p218
        $region46: #{tpu_custom_call.1} parent=31 // pred_check_branch
          %244 = sbr.rel (%p242) target = $region48
        $region47: #{tpu_custom_call.1} parent=31 // pred_region
          %v245 = vld [vmem:[#allocation2] sm:$0xff]
          %v246 = vld [vmem:[#allocation2 + $0x8] sm:$0xff]
          %v247 = vrot.slane %v245, 4
          %v248 = vmax.f32 %v245, %v247
          %v249 = vrot.slane %v248, 2
          %v250 = vmax.f32 %v248, %v249
          %v251 = vrot.slane %v250, 1
          %v252 = vmax.f32 %v250, %v251
          %v253 = vrot.slane %v246, 4
          %v254 = vmax.f32 %v246, %v253
          %v255 = vrot.slane %v254, 2
          %v256 = vmax.f32 %v254, %v255
          %v257 = vrot.slane %v256, 1
          %v258 = vmax.f32 %v256, %v257
          %v261 = vcombine.low %v252, %v258
          %v263 = vunpack.c.l.s4 1966171168
          %v264 = vunpack.c.0.s8 %v263
          %v265 = vlaneseq
          %v266 = vshrl.u32 %v265, 7
          %v267 = vsub.s32 %v264, %v266
          %v268 = vrot.slane %v261, %v267
          %v270 = vunpack.c.l.s4 1966171168
          %v271 = vunpack.c.0.s8 %v270
          %v272 = vlaneseq
          %v273 = vshrl.u32 %v272, 7
          %v274 = vsub.s32 %v271, %v273
          %v275 = vrot.slane %v268, %v274
          %v277 = vlaneseq
          %vm278 = vcmp.ge.s32.totalorder %v277, 0
          %vm279 = vcmp.lt.s32.totalorder %v277, 256
          %vm280 = vmand %vm278, %vm279
          %281 = vst.msk [vmem:[#allocation4] ss:$2 sm:$0x3] %vm280, %v275
          %v282 = vld [vmem:[#allocation3] sm:$0xff]
          %v283 = vld [vmem:[#allocation3 + $0x8] sm:$0xff]
          %v284 = vrot.slane %v282, 4
          %v285 = vadd.f32 %v282, %v284
          %v286 = vrot.slane %v285, 2
          %v287 = vadd.f32 %v285, %v286
          %v288 = vrot.slane %v287, 1
          %v289 = vadd.f32 %v287, %v288
          %v290 = vrot.slane %v283, 4
          %v291 = vadd.f32 %v283, %v290
          %v292 = vrot.slane %v291, 2
          %v293 = vadd.f32 %v291, %v292
          %v294 = vrot.slane %v293, 1
          %v295 = vadd.f32 %v293, %v294
          %v296 = vmul.f32 %v289, 0.25
          %v297 = vmul.f32 %v295, 0.25
          %v300 = vcombine.low %v296, %v297
          %v302 = vunpack.c.l.s4 1966171168
          %v303 = vunpack.c.0.s8 %v302
          %v304 = vlaneseq
          %v305 = vshrl.u32 %v304, 7
          %v306 = vsub.s32 %v303, %v305
          %v307 = vrot.slane %v300, %v306
          %v309 = vunpack.c.l.s4 1966171168
          %v310 = vunpack.c.0.s8 %v309
          %v311 = vlaneseq
          %v312 = vshrl.u32 %v311, 7
          %v313 = vsub.s32 %v310, %v312
          %v314 = vrot.slane %v307, %v313
          %s316 = scalar_lea.vmem [#allocation4], 1
          %317 = vst.msk [vmem:[%s316] ss:$2 sm:$0x3] %vm280, %v314
          %vm318 = vcmask 179200
          %319 = vst.msk [vmem:[#allocation5] sm:$0xff] %vm318, 0.0
          %320 = vst.msk [vmem:[#allocation5 + $0x8] sm:$0xff] %vm318, 0.0
          %vm321 = vcmask 177152
          %322 = vst.msk [vmem:[#allocation5 + $0x10] sm:$0x3f] %vm321, 0.0
          %323 = vst.msk [vmem:[#allocation6] sm:$0xff] %vm318, 0.0
          %324 = vst.msk [vmem:[#allocation6 + $0x8] sm:$0xff] %vm318, 0.0
          %325 = vst.msk [vmem:[#allocation6 + $0x10] sm:$0x3f] %vm321, 0.0
          %v326 = vld [vmem:[#allocation4] sm:$0x1]
          %v328 = vlaneseq
          %v329 = vshrl.u32 %v328, 7
          %v330 = vsub.s32 0, %v329
          %v331 = vrot.slane %v326, %v330
          %332 = vrot.lane.b32.xlu0 %v331, 3
          %v333 = vpop.permute.xlu0 %332
          %vm335 = vcmask 147480
          %336 = vst.msk [vmem:[#allocation5 + $0x3] sm:$0x1] %vm335, %v333
          %v337 = vld [vmem:[#allocation4 + $0x1] sm:$0x1]
          %v339 = vlaneseq
          %v340 = vshrl.u32 %v339, 7
          %v341 = vsub.s32 0, %v340
          %v342 = vrot.slane %v337, %v341
          %343 = vrot.lane.b32.xlu0 %v342, 3
          %v344 = vpop.permute.xlu0 %343
          %346 = vst.msk [vmem:[#allocation6 + $0x3] sm:$0x1] %vm335, %v344
          %v347 = vld [vmem:[#allocation4] sm:$0x1]
          %v349 = vlaneseq
          %v350 = vshrl.u32 %v349, 7
          %v351 = vsub.s32 0, %v350
          %v352 = vrot.slane %v347, %v351
          %353 = vrot.lane.b32.xlu0 %v352, 115
          %v354 = vpop.permute.xlu0 %353
          %356 = vst.msk [vmem:[#allocation5 + $0x4] sm:$0x1] %vm335, %v354
          %v357 = vld [vmem:[#allocation4 + $0x1] sm:$0x1]
          %v359 = vlaneseq
          %v360 = vshrl.u32 %v359, 7
          %v361 = vsub.s32 0, %v360
          %v362 = vrot.slane %v357, %v361
          %363 = vrot.lane.b32.xlu0 %v362, 115
          %v364 = vpop.permute.xlu0 %363
          %366 = vst.msk [vmem:[#allocation6 + $0x4] sm:$0x1] %vm335, %v364
          %v367 = vld [vmem:[#allocation4] sm:$0x1]
          %v369 = vlaneseq
          %v370 = vshrl.u32 %v369, 7
          %v371 = vsub.s32 0, %v370
          %v372 = vrot.slane %v367, %v371
          %373 = vrot.lane.b32.xlu0 %v372, 99
          %v374 = vpop.permute.xlu0 %373
          %376 = vst.msk [vmem:[#allocation5 + $0x5] sm:$0x1] %vm335, %v374
          %v377 = vld [vmem:[#allocation4 + $0x1] sm:$0x1]
          %v379 = vlaneseq
          %v380 = vshrl.u32 %v379, 7
          %v381 = vsub.s32 0, %v380
          %v382 = vrot.slane %v377, %v381
          %383 = vrot.lane.b32.xlu0 %v382, 99
          %v384 = vpop.permute.xlu0 %383
          %386 = vst.msk [vmem:[#allocation6 + $0x5] sm:$0x1] %vm335, %v384
          %v387 = vld [vmem:[#allocation4] sm:$0x1]
          %v389 = vlaneseq
          %v390 = vshrl.u32 %v389, 7
          %v391 = vsub.s32 0, %v390
          %v392 = vrot.slane %v387, %v391
          %393 = vrot.lane.b32.xlu0 %v392, 83
          %v394 = vpop.permute.xlu0 %393
          %396 = vst.msk [vmem:[#allocation5 + $0x6] sm:$0x1] %vm335, %v394
          %v397 = vld [vmem:[#allocation4 + $0x1] sm:$0x1]
          %v399 = vlaneseq
          %v400 = vshrl.u32 %v399, 7
          %v401 = vsub.s32 0, %v400
          %v402 = vrot.slane %v397, %v401
          %403 = vrot.lane.b32.xlu0 %v402, 83
          %v404 = vpop.permute.xlu0 %403
          %406 = vst.msk [vmem:[#allocation6 + $0x6] sm:$0x1] %vm335, %v404
          %v407 = vld [vmem:[#allocation4] sm:$0x1]
          %v409 = vlaneseq
          %v410 = vshrl.u32 %v409, 7
          %v411 = vsub.s32 0, %v410
          %v412 = vrot.slane %v407, %v411
          %413 = vrot.lane.b32.xlu0 %v412, 67
          %v414 = vpop.permute.xlu0 %413
          %416 = vst.msk [vmem:[#allocation5 + $0x7] sm:$0x1] %vm335, %v414
          %v417 = vld [vmem:[#allocation4 + $0x1] sm:$0x1]
          %v419 = vlaneseq
          %v420 = vshrl.u32 %v419, 7
          %v421 = vsub.s32 0, %v420
          %v422 = vrot.slane %v417, %v421
          %423 = vrot.lane.b32.xlu0 %v422, 67
          %v424 = vpop.permute.xlu0 %423
          %426 = vst.msk [vmem:[#allocation6 + $0x7] sm:$0x1] %vm335, %v424
          %v427 = vld [vmem:[#allocation4] sm:$0x1]
          %v429 = vlaneseq
          %v430 = vshrl.u32 %v429, 7
          %v431 = vsub.s32 0, %v430
          %v432 = vrot.slane %v427, %v431
          %433 = vrot.lane.b32.xlu0 %v432, 51
          %v434 = vpop.permute.xlu0 %433
          %436 = vst.msk [vmem:[#allocation5 + $0x8] sm:$0x1] %vm335, %v434
          %v437 = vld [vmem:[#allocation4 + $0x1] sm:$0x1]
          %v439 = vlaneseq
          %v440 = vshrl.u32 %v439, 7
          %v441 = vsub.s32 0, %v440
          %v442 = vrot.slane %v437, %v441
          %443 = vrot.lane.b32.xlu0 %v442, 51
          %v444 = vpop.permute.xlu0 %443
          %446 = vst.msk [vmem:[#allocation6 + $0x8] sm:$0x1] %vm335, %v444
          %v447 = vld [vmem:[#allocation4] sm:$0x1]
          %v449 = vlaneseq
          %v450 = vshrl.u32 %v449, 7
          %v451 = vsub.s32 0, %v450
          %v452 = vrot.slane %v447, %v451
          %453 = vrot.lane.b32.xlu0 %v452, 35
          %v454 = vpop.permute.xlu0 %453
          %456 = vst.msk [vmem:[#allocation5 + $0x9] sm:$0x1] %vm335, %v454
          %v457 = vld [vmem:[#allocation4 + $0x1] sm:$0x1]
          %v459 = vlaneseq
          %v460 = vshrl.u32 %v459, 7
          %v461 = vsub.s32 0, %v460
          %v462 = vrot.slane %v457, %v461
          %463 = vrot.lane.b32.xlu0 %v462, 35
          %v464 = vpop.permute.xlu0 %463
          %466 = vst.msk [vmem:[#allocation6 + $0x9] sm:$0x1] %vm335, %v464
          %v467 = vld [vmem:[#allocation4] sm:$0x1]
          %v469 = vlaneseq
          %v470 = vshrl.u32 %v469, 7
          %v471 = vsub.s32 0, %v470
          %v472 = vrot.slane %v467, %v471
          %473 = vrot.lane.b32.xlu0 %v472, 19
          %v474 = vpop.permute.xlu0 %473
          %476 = vst.msk [vmem:[#allocation5 + $0xa] sm:$0x1] %vm335, %v474
          %v477 = vld [vmem:[#allocation4 + $0x1] sm:$0x1]
          %v479 = vlaneseq
          %v480 = vshrl.u32 %v479, 7
          %v481 = vsub.s32 0, %v480
          %v482 = vrot.slane %v477, %v481
          %483 = vrot.lane.b32.xlu0 %v482, 19
          %v484 = vpop.permute.xlu0 %483
          %486 = vst.msk [vmem:[#allocation6 + $0xa] sm:$0x1] %vm335, %v484
          %v487 = vld [vmem:[#allocation4 + $0x2] sm:$0x1]
          %v489 = vlaneseq
          %v490 = vshrl.u32 %v489, 7
          %v491 = vsub.s32 0, %v490
          %v492 = vrot.slane %v487, %v491
          %493 = vrot.lane.b32.xlu0 %v492, 3
          %v494 = vpop.permute.xlu0 %493
          %496 = vst.msk [vmem:[#allocation5 + $0xb] sm:$0x1] %vm335, %v494
          %v497 = vld [vmem:[#allocation4 + $0x3] sm:$0x1]
          %v499 = vlaneseq
          %v500 = vshrl.u32 %v499, 7
          %v501 = vsub.s32 0, %v500
          %v502 = vrot.slane %v497, %v501
          %503 = vrot.lane.b32.xlu0 %v502, 3
          %v504 = vpop.permute.xlu0 %503
          %506 = vst.msk [vmem:[#allocation6 + $0xb] sm:$0x1] %vm335, %v504
          %v507 = vld [vmem:[#allocation4 + $0x2] sm:$0x1]
          %v509 = vlaneseq
          %v510 = vshrl.u32 %v509, 7
          %v511 = vsub.s32 0, %v510
          %v512 = vrot.slane %v507, %v511
          %513 = vrot.lane.b32.xlu0 %v512, 115
          %v514 = vpop.permute.xlu0 %513
          %516 = vst.msk [vmem:[#allocation5 + $0xc] sm:$0x1] %vm335, %v514
          %v517 = vld [vmem:[#allocation4 + $0x3] sm:$0x1]
          %v519 = vlaneseq
          %v520 = vshrl.u32 %v519, 7
          %v521 = vsub.s32 0, %v520
          %v522 = vrot.slane %v517, %v521
          %523 = vrot.lane.b32.xlu0 %v522, 115
          %v524 = vpop.permute.xlu0 %523
          %526 = vst.msk [vmem:[#allocation6 + $0xc] sm:$0x1] %vm335, %v524
          %v527 = vld [vmem:[#allocation4 + $0x2] sm:$0x1]
          %v529 = vlaneseq
          %v530 = vshrl.u32 %v529, 7
          %v531 = vsub.s32 0, %v530
          %v532 = vrot.slane %v527, %v531
          %533 = vrot.lane.b32.xlu0 %v532, 99
          %v534 = vpop.permute.xlu0 %533
          %536 = vst.msk [vmem:[#allocation5 + $0xd] sm:$0x1] %vm335, %v534
          %v537 = vld [vmem:[#allocation4 + $0x3] sm:$0x1]
          %v539 = vlaneseq
          %v540 = vshrl.u32 %v539, 7
          %v541 = vsub.s32 0, %v540
          %v542 = vrot.slane %v537, %v541
          %543 = vrot.lane.b32.xlu0 %v542, 99
          %v544 = vpop.permute.xlu0 %543
          %546 = vst.msk [vmem:[#allocation6 + $0xd] sm:$0x1] %vm335, %v544
          %v547 = vld [vmem:[#allocation4 + $0x2] sm:$0x1]
          %v549 = vlaneseq
          %v550 = vshrl.u32 %v549, 7
          %v551 = vsub.s32 0, %v550
          %v552 = vrot.slane %v547, %v551
          %553 = vrot.lane.b32.xlu0 %v552, 83
          %v554 = vpop.permute.xlu0 %553
          %556 = vst.msk [vmem:[#allocation5 + $0xe] sm:$0x1] %vm335, %v554
          %v557 = vld [vmem:[#allocation4 + $0x3] sm:$0x1]
          %v559 = vlaneseq
          %v560 = vshrl.u32 %v559, 7
          %v561 = vsub.s32 0, %v560
          %v562 = vrot.slane %v557, %v561
          %563 = vrot.lane.b32.xlu0 %v562, 83
          %v564 = vpop.permute.xlu0 %563
          %566 = vst.msk [vmem:[#allocation6 + $0xe] sm:$0x1] %vm335, %v564
          %v567 = vld [vmem:[#allocation4 + $0x2] sm:$0x1]
          %v569 = vlaneseq
          %v570 = vshrl.u32 %v569, 7
          %v571 = vsub.s32 0, %v570
          %v572 = vrot.slane %v567, %v571
          %573 = vrot.lane.b32.xlu0 %v572, 67
          %v574 = vpop.permute.xlu0 %573
          %576 = vst.msk [vmem:[#allocation5 + $0xf] sm:$0x1] %vm335, %v574
          %v577 = vld [vmem:[#allocation4 + $0x3] sm:$0x1]
          %v579 = vlaneseq
          %v580 = vshrl.u32 %v579, 7
          %v581 = vsub.s32 0, %v580
          %v582 = vrot.slane %v577, %v581
          %583 = vrot.lane.b32.xlu0 %v582, 67
          %v584 = vpop.permute.xlu0 %583
          %586 = vst.msk [vmem:[#allocation6 + $0xf] sm:$0x1] %vm335, %v584
          %v587 = vld [vmem:[#allocation4 + $0x2] sm:$0x1]
          %v589 = vlaneseq
          %v590 = vshrl.u32 %v589, 7
          %v591 = vsub.s32 0, %v590
          %v592 = vrot.slane %v587, %v591
          %593 = vrot.lane.b32.xlu0 %v592, 51
          %v594 = vpop.permute.xlu0 %593
          %596 = vst.msk [vmem:[#allocation5 + $0x10] sm:$0x1] %vm335, %v594
          %v597 = vld [vmem:[#allocation4 + $0x3] sm:$0x1]
          %v599 = vlaneseq
          %v600 = vshrl.u32 %v599, 7
          %v601 = vsub.s32 0, %v600
          %v602 = vrot.slane %v597, %v601
          %603 = vrot.lane.b32.xlu0 %v602, 51
          %v604 = vpop.permute.xlu0 %603
          %606 = vst.msk [vmem:[#allocation6 + $0x10] sm:$0x1] %vm335, %v604
          %v607 = vld [vmem:[#allocation4 + $0x2] sm:$0x1]
          %v609 = vlaneseq
          %v610 = vshrl.u32 %v609, 7
          %v611 = vsub.s32 0, %v610
          %v612 = vrot.slane %v607, %v611
          %613 = vrot.lane.b32.xlu0 %v612, 35
          %v614 = vpop.permute.xlu0 %613
          %616 = vst.msk [vmem:[#allocation5 + $0x11] sm:$0x1] %vm335, %v614
          %v617 = vld [vmem:[#allocation4 + $0x3] sm:$0x1]
          %v619 = vlaneseq
          %v620 = vshrl.u32 %v619, 7
          %v621 = vsub.s32 0, %v620
          %v622 = vrot.slane %v617, %v621
          %623 = vrot.lane.b32.xlu0 %v622, 35
          %v624 = vpop.permute.xlu0 %623
          %626 = vst.msk [vmem:[#allocation6 + $0x11] sm:$0x1] %vm335, %v624
          %v627 = vld [vmem:[#allocation4 + $0x2] sm:$0x1]
          %v629 = vlaneseq
          %v630 = vshrl.u32 %v629, 7
          %v631 = vsub.s32 0, %v630
          %v632 = vrot.slane %v627, %v631
          %633 = vrot.lane.b32.xlu0 %v632, 19
          %v634 = vpop.permute.xlu0 %633
          %636 = vst.msk [vmem:[#allocation5 + $0x12] sm:$0x1] %vm335, %v634
          %v637 = vld [vmem:[#allocation4 + $0x3] sm:$0x1]
          %v639 = vlaneseq
          %v640 = vshrl.u32 %v639, 7
          %v641 = vsub.s32 0, %v640
          %v642 = vrot.slane %v637, %v641
          %643 = vrot.lane.b32.xlu0 %v642, 19
          %v644 = vpop.permute.xlu0 %643
          %646 = vst.msk [vmem:[#allocation6 + $0x12] sm:$0x1] %vm335, %v644
          %v647 = vld [vmem:[#allocation5] sm:$0xff]
          %v648 = vld [vmem:[#allocation5 + $0x8] sm:$0xff]
          %v649 = vld [vmem:[#allocation5 + $0x10] sm:$0x3f]
          %v650 = vld [vmem:[#allocation6] sm:$0xff]
          %v651 = vld [vmem:[#allocation6 + $0x8] sm:$0xff]
          %v652 = vld [vmem:[#allocation6 + $0x10] sm:$0x3f]
          %s653 = sld [smem:[#allocation8]]
          %s654 = sld [smem:[#allocation8 + $0x31]]
          %v655 = vstv %s653
          %v656 = vmul.f32 %v655, %v647
          %v657 = vmul.f32 %v655, %v648
          %v658 = vadd.f32 %v656, 0.0
          %v659 = vadd.f32 %v657, 0.0
          %v660 = vstv %s654
          %v661 = vmul.f32 %v660, %v650
          %v662 = vmul.f32 %v660, %v651
          %v663 = vadd.f32 %v661, 0.0
          %v664 = vadd.f32 %v662, 0.0
          %s665 = sld [smem:[#allocation8 + $0x7]]
          %s666 = sld [smem:[#allocation8 + $0x38]]
          %v667 = vstv %s665
          %v668 = vmul.f32 %v667, %v647
          %v669 = vmul.f32 %v667, %v648
          %v670 = vmul.f32 %v667, %v649
          %vm674 = vcmask 1046528
          %v675 = vrot.slane %v668, 1
          %v676 = vrot.slane %v669, 1
          %v677 = vsel %vm674, %v675, %v676
          %v678 = vrot.slane %v670, 1
          %v679 = vsel %vm674, %v676, %v678
          %v682 = vadd.f32 %v658, %v677
          %v683 = vadd.f32 %v659, %v679
          %v684 = vstv %s666
          %v685 = vmul.f32 %v684, %v650
          %v686 = vmul.f32 %v684, %v651
          %v687 = vmul.f32 %v684, %v652
          %v691 = vrot.slane %v685, 1
          %v692 = vrot.slane %v686, 1
          %v693 = vsel %vm674, %v691, %v692
          %v694 = vrot.slane %v687, 1
          %v695 = vsel %vm674, %v692, %v694
          %v698 = vadd.f32 %v663, %v693
          %v699 = vadd.f32 %v664, %v695
          %s700 = sld [smem:[#allocation8 + $0xe]]
          %s701 = sld [smem:[#allocation8 + $0x3f]]
          %v702 = vstv %s700
          %v703 = vmul.f32 %v702, %v647
          %v704 = vmul.f32 %v702, %v648
          %v705 = vmul.f32 %v702, %v649
          %vm709 = vcmask 1045504
          %v710 = vrot.slane %v703, 2
          %v711 = vrot.slane %v704, 2
          %v712 = vsel %vm709, %v710, %v711
          %v713 = vrot.slane %v705, 2
          %v714 = vsel %vm709, %v711, %v713
          %v717 = vadd.f32 %v682, %v712
          %v718 = vadd.f32 %v683, %v714
          %v719 = vstv %s701
          %v720 = vmul.f32 %v719, %v650
          %v721 = vmul.f32 %v719, %v651
          %v722 = vmul.f32 %v719, %v652
          %v726 = vrot.slane %v720, 2
          %v727 = vrot.slane %v721, 2
          %v728 = vsel %vm709, %v726, %v727
          %v729 = vrot.slane %v722, 2
          %v730 = vsel %vm709, %v727, %v729
          %v733 = vadd.f32 %v698, %v728
          %v734 = vadd.f32 %v699, %v730
          %s735 = sld [smem:[#allocation8 + $0x15]]
          %s736 = sld [smem:[#allocation8 + $0x46]]
          %v737 = vstv %s735
          %v738 = vmul.f32 %v737, %v647
          %v739 = vmul.f32 %v737, %v648
          %v740 = vmul.f32 %v737, %v649
          %vm744 = vcmask 1044480
          %v745 = vrot.slane %v738, 3
          %v746 = vrot.slane %v739, 3
          %v747 = vsel %vm744, %v745, %v746
          %v748 = vrot.slane %v740, 3
          %v749 = vsel %vm744, %v746, %v748
          %v752 = vadd.f32 %v717, %v747
          %v753 = vadd.f32 %v718, %v749
          %v754 = vstv %s736
          %v755 = vmul.f32 %v754, %v650
          %v756 = vmul.f32 %v754, %v651
          %v757 = vmul.f32 %v754, %v652
          %v761 = vrot.slane %v755, 3
          %v762 = vrot.slane %v756, 3
          %v763 = vsel %vm744, %v761, %v762
          %v764 = vrot.slane %v757, 3
          %v765 = vsel %vm744, %v762, %v764
          %v768 = vadd.f32 %v733, %v763
          %v769 = vadd.f32 %v734, %v765
          %s770 = sld [smem:[#allocation8 + $0x1c]]
          %s771 = sld [smem:[#allocation8 + $0x4d]]
          %v772 = vstv %s770
          %v773 = vmul.f32 %v772, %v647
          %v774 = vmul.f32 %v772, %v648
          %v775 = vmul.f32 %v772, %v649
          %vm779 = vcmask 1043456
          %v780 = vrot.slane %v773, 4
          %v781 = vrot.slane %v774, 4
          %v782 = vsel %vm779, %v780, %v781
          %v783 = vrot.slane %v775, 4
          %v784 = vsel %vm779, %v781, %v783
          %v787 = vadd.f32 %v752, %v782
          %v788 = vadd.f32 %v753, %v784
          %v789 = vstv %s771
          %v790 = vmul.f32 %v789, %v650
          %v791 = vmul.f32 %v789, %v651
          %v792 = vmul.f32 %v789, %v652
          %v796 = vrot.slane %v790, 4
          %v797 = vrot.slane %v791, 4
          %v798 = vsel %vm779, %v796, %v797
          %v799 = vrot.slane %v792, 4
          %v800 = vsel %vm779, %v797, %v799
          %v803 = vadd.f32 %v768, %v798
          %v804 = vadd.f32 %v769, %v800
          %s805 = sld [smem:[#allocation8 + $0x23]]
          %s806 = sld [smem:[#allocation8 + $0x54]]
          %v807 = vstv %s805
          %v808 = vmul.f32 %v807, %v647
          %v809 = vmul.f32 %v807, %v648
          %v810 = vmul.f32 %v807, %v649
          %vm814 = vcmask 1042432
          %v815 = vrot.slane %v808, 5
          %v816 = vrot.slane %v809, 5
          %v817 = vsel %vm814, %v815, %v816
          %v818 = vrot.slane %v810, 5
          %v819 = vsel %vm814, %v816, %v818
          %v822 = vadd.f32 %v787, %v817
          %v823 = vadd.f32 %v788, %v819
          %v824 = vstv %s806
          %v825 = vmul.f32 %v824, %v650
          %v826 = vmul.f32 %v824, %v651
          %v827 = vmul.f32 %v824, %v652
          %v831 = vrot.slane %v825, 5
          %v832 = vrot.slane %v826, 5
          %v833 = vsel %vm814, %v831, %v832
          %v834 = vrot.slane %v827, 5
          %v835 = vsel %vm814, %v832, %v834
          %v838 = vadd.f32 %v803, %v833
          %v839 = vadd.f32 %v804, %v835
          %s840 = sld [smem:[#allocation8 + $0x2a]]
          %s841 = sld [smem:[#allocation8 + $0x5b]]
          %v842 = vstv %s840
          %v843 = vmul.f32 %v842, %v647
          %v844 = vmul.f32 %v842, %v648
          %v845 = vmul.f32 %v842, %v649
          %vm849 = vcmask 1041408
          %v850 = vrot.slane %v843, 6
          %v851 = vrot.slane %v844, 6
          %v852 = vsel %vm849, %v850, %v851
          %v853 = vrot.slane %v845, 6
          %v854 = vsel %vm849, %v851, %v853
          %v857 = vadd.f32 %v822, %v852
          %v858 = vadd.f32 %v823, %v854
          %v859 = vstv %s841
          %v860 = vmul.f32 %v859, %v650
          %v861 = vmul.f32 %v859, %v651
          %v862 = vmul.f32 %v859, %v652
          %v866 = vrot.slane %v860, 6
          %v867 = vrot.slane %v861, 6
          %v868 = vsel %vm849, %v866, %v867
          %v869 = vrot.slane %v862, 6
          %v870 = vsel %vm849, %v867, %v869
          %v873 = vadd.f32 %v838, %v868
          %v874 = vadd.f32 %v839, %v870
          %s875 = sld [smem:[#allocation8 + $0x1]]
          %s876 = sld [smem:[#allocation8 + $0x32]]
          %v877 = vstv %s875
          %v878 = vmul.f32 %v877, %v647
          %v879 = vmul.f32 %v877, %v648
          %882 = vrot.lane.b32.xlu0 %v878, 127
          %v883 = vpop.permute.xlu0 %882
          %884 = vrot.lane.b32.xlu0 %v879, 127
          %v885 = vpop.permute.xlu0 %884
          %v888 = vadd.f32 %v857, %v883
          %v889 = vadd.f32 %v858, %v885
          %v890 = vstv %s876
          %v891 = vmul.f32 %v890, %v650
          %v892 = vmul.f32 %v890, %v651
          %895 = vrot.lane.b32.xlu0 %v891, 127
          %v896 = vpop.permute.xlu0 %895
          %897 = vrot.lane.b32.xlu0 %v892, 127
          %v898 = vpop.permute.xlu0 %897
          %v901 = vadd.f32 %v873, %v896
          %v902 = vadd.f32 %v874, %v898
          %s903 = sld [smem:[#allocation8 + $0x8]]
          %s904 = sld [smem:[#allocation8 + $0x39]]
          %v905 = vstv %s903
          %v906 = vmul.f32 %v905, %v647
          %v907 = vmul.f32 %v905, %v648
          %v908 = vmul.f32 %v905, %v649
          %v912 = vrot.slane %v906, 1
          %v913 = vrot.slane %v907, 1
          %v914 = vsel %vm674, %v912, %v913
          %v915 = vrot.slane %v908, 1
          %v916 = vsel %vm674, %v913, %v915
          %917 = vrot.lane.b32.xlu0 %v914, 127
          %v918 = vpop.permute.xlu0 %917
          %919 = vrot.lane.b32.xlu0 %v916, 127
          %v920 = vpop.permute.xlu0 %919
          %v923 = vadd.f32 %v888, %v918
          %v924 = vadd.f32 %v889, %v920
          %v925 = vstv %s904
          %v926 = vmul.f32 %v925, %v650
          %v927 = vmul.f32 %v925, %v651
          %v928 = vmul.f32 %v925, %v652
          %v932 = vrot.slane %v926, 1
          %v933 = vrot.slane %v927, 1
          %v934 = vsel %vm674, %v932, %v933
          %v935 = vrot.slane %v928, 1
          %v936 = vsel %vm674, %v933, %v935
          %937 = vrot.lane.b32.xlu0 %v934, 127
          %v938 = vpop.permute.xlu0 %937
          %939 = vrot.lane.b32.xlu0 %v936, 127
          %v940 = vpop.permute.xlu0 %939
          %v943 = vadd.f32 %v901, %v938
          %v944 = vadd.f32 %v902, %v940
          %s945 = sld [smem:[#allocation8 + $0xf]]
          %s946 = sld [smem:[#allocation8 + $0x40]]
          %v947 = vstv %s945
          %v948 = vmul.f32 %v947, %v647
          %v949 = vmul.f32 %v947, %v648
          %v950 = vmul.f32 %v947, %v649
          %v954 = vrot.slane %v948, 2
          %v955 = vrot.slane %v949, 2
          %v956 = vsel %vm709, %v954, %v955
          %v957 = vrot.slane %v950, 2
          %v958 = vsel %vm709, %v955, %v957
          %959 = vrot.lane.b32.xlu0 %v956, 127
          %v960 = vpop.permute.xlu0 %959
          %961 = vrot.lane.b32.xlu0 %v958, 127
          %v962 = vpop.permute.xlu0 %961
          %v965 = vadd.f32 %v923, %v960
          %v966 = vadd.f32 %v924, %v962
          %v967 = vstv %s946
          %v968 = vmul.f32 %v967, %v650
          %v969 = vmul.f32 %v967, %v651
          %v970 = vmul.f32 %v967, %v652
          %v974 = vrot.slane %v968, 2
          %v975 = vrot.slane %v969, 2
          %v976 = vsel %vm709, %v974, %v975
          %v977 = vrot.slane %v970, 2
          %v978 = vsel %vm709, %v975, %v977
          %979 = vrot.lane.b32.xlu0 %v976, 127
          %v980 = vpop.permute.xlu0 %979
          %981 = vrot.lane.b32.xlu0 %v978, 127
          %v982 = vpop.permute.xlu0 %981
          %v985 = vadd.f32 %v943, %v980
          %v986 = vadd.f32 %v944, %v982
          %s987 = sld [smem:[#allocation8 + $0x16]]
          %s988 = sld [smem:[#allocation8 + $0x47]]
          %v989 = vstv %s987
          %v990 = vmul.f32 %v989, %v647
          %v991 = vmul.f32 %v989, %v648
          %v992 = vmul.f32 %v989, %v649
          %v996 = vrot.slane %v990, 3
          %v997 = vrot.slane %v991, 3
          %v998 = vsel %vm744, %v996, %v997
          %v999 = vrot.slane %v992, 3
          %v1000 = vsel %vm744, %v997, %v999
          %1001 = vrot.lane.b32.xlu0 %v998, 127
          %v1002 = vpop.permute.xlu0 %1001
          %1003 = vrot.lane.b32.xlu0 %v1000, 127
          %v1004 = vpop.permute.xlu0 %1003
          %v1007 = vadd.f32 %v965, %v1002
          %v1008 = vadd.f32 %v966, %v1004
          %v1009 = vstv %s988
          %v1010 = vmul.f32 %v1009, %v650
          %v1011 = vmul.f32 %v1009, %v651
          %v1012 = vmul.f32 %v1009, %v652
          %v1016 = vrot.slane %v1010, 3
          %v1017 = vrot.slane %v1011, 3
          %v1018 = vsel %vm744, %v1016, %v1017
          %v1019 = vrot.slane %v1012, 3
          %v1020 = vsel %vm744, %v1017, %v1019
          %1021 = vrot.lane.b32.xlu0 %v1018, 127
          %v1022 = vpop.permute.xlu0 %1021
          %1023 = vrot.lane.b32.xlu0 %v1020, 127
          %v1024 = vpop.permute.xlu0 %1023
          %v1027 = vadd.f32 %v985, %v1022
          %v1028 = vadd.f32 %v986, %v1024
          %s1029 = sld [smem:[#allocation8 + $0x1d]]
          %s1030 = sld [smem:[#allocation8 + $0x4e]]
          %v1031 = vstv %s1029
          %v1032 = vmul.f32 %v1031, %v647
          %v1033 = vmul.f32 %v1031, %v648
          %v1034 = vmul.f32 %v1031, %v649
          %v1038 = vrot.slane %v1032, 4
          %v1039 = vrot.slane %v1033, 4
          %v1040 = vsel %vm779, %v1038, %v1039
          %v1041 = vrot.slane %v1034, 4
          %v1042 = vsel %vm779, %v1039, %v1041
          %1043 = vrot.lane.b32.xlu0 %v1040, 127
          %v1044 = vpop.permute.xlu0 %1043
          %1045 = vrot.lane.b32.xlu0 %v1042, 127
          %v1046 = vpop.permute.xlu0 %1045
          %v1049 = vadd.f32 %v1007, %v1044
          %v1050 = vadd.f32 %v1008, %v1046
          %v1051 = vstv %s1030
          %v1052 = vmul.f32 %v1051, %v650
          %v1053 = vmul.f32 %v1051, %v651
          %v1054 = vmul.f32 %v1051, %v652
          %v1058 = vrot.slane %v1052, 4
          %v1059 = vrot.slane %v1053, 4
          %v1060 = vsel %vm779, %v1058, %v1059
          %v1061 = vrot.slane %v1054, 4
          %v1062 = vsel %vm779, %v1059, %v1061
          %1063 = vrot.lane.b32.xlu0 %v1060, 127
          %v1064 = vpop.permute.xlu0 %1063
          %1065 = vrot.lane.b32.xlu0 %v1062, 127
          %v1066 = vpop.permute.xlu0 %1065
          %v1069 = vadd.f32 %v1027, %v1064
          %v1070 = vadd.f32 %v1028, %v1066
          %s1071 = sld [smem:[#allocation8 + $0x24]]
          %s1072 = sld [smem:[#allocation8 + $0x55]]
          %v1073 = vstv %s1071
          %v1074 = vmul.f32 %v1073, %v647
          %v1075 = vmul.f32 %v1073, %v648
          %v1076 = vmul.f32 %v1073, %v649
          %v1080 = vrot.slane %v1074, 5
          %v1081 = vrot.slane %v1075, 5
          %v1082 = vsel %vm814, %v1080, %v1081
          %v1083 = vrot.slane %v1076, 5
          %v1084 = vsel %vm814, %v1081, %v1083
          %1085 = vrot.lane.b32.xlu0 %v1082, 127
          %v1086 = vpop.permute.xlu0 %1085
          %1087 = vrot.lane.b32.xlu0 %v1084, 127
          %v1088 = vpop.permute.xlu0 %1087
          %v1091 = vadd.f32 %v1049, %v1086
          %v1092 = vadd.f32 %v1050, %v1088
          %v1093 = vstv %s1072
          %v1094 = vmul.f32 %v1093, %v650
          %v1095 = vmul.f32 %v1093, %v651
          %v1096 = vmul.f32 %v1093, %v652
          %v1100 = vrot.slane %v1094, 5
          %v1101 = vrot.slane %v1095, 5
          %v1102 = vsel %vm814, %v1100, %v1101
          %v1103 = vrot.slane %v1096, 5
          %v1104 = vsel %vm814, %v1101, %v1103
          %1105 = vrot.lane.b32.xlu0 %v1102, 127
          %v1106 = vpop.permute.xlu0 %1105
          %1107 = vrot.lane.b32.xlu0 %v1104, 127
          %v1108 = vpop.permute.xlu0 %1107
          %v1111 = vadd.f32 %v1069, %v1106
          %v1112 = vadd.f32 %v1070, %v1108
          %s1113 = sld [smem:[#allocation8 + $0x2b]]
          %s1114 = sld [smem:[#allocation8 + $0x5c]]
          %v1115 = vstv %s1113
          %v1116 = vmul.f32 %v1115, %v647
          %v1117 = vmul.f32 %v1115, %v648
          %v1118 = vmul.f32 %v1115, %v649
          %v1122 = vrot.slane %v1116, 6
          %v1123 = vrot.slane %v1117, 6
          %v1124 = vsel %vm849, %v1122, %v1123
          %v1125 = vrot.slane %v1118, 6
          %v1126 = vsel %vm849, %v1123, %v1125
          %1127 = vrot.lane.b32.xlu0 %v1124, 127
          %v1128 = vpop.permute.xlu0 %1127
          %1129 = vrot.lane.b32.xlu0 %v1126, 127
          %v1130 = vpop.permute.xlu0 %1129
          %v1133 = vadd.f32 %v1091, %v1128
          %v1134 = vadd.f32 %v1092, %v1130
          %v1135 = vstv %s1114
          %v1136 = vmul.f32 %v1135, %v650
          %v1137 = vmul.f32 %v1135, %v651
          %v1138 = vmul.f32 %v1135, %v652
          %v1142 = vrot.slane %v1136, 6
          %v1143 = vrot.slane %v1137, 6
          %v1144 = vsel %vm849, %v1142, %v1143
          %v1145 = vrot.slane %v1138, 6
          %v1146 = vsel %vm849, %v1143, %v1145
          %1147 = vrot.lane.b32.xlu0 %v1144, 127
          %v1148 = vpop.permute.xlu0 %1147
          %1149 = vrot.lane.b32.xlu0 %v1146, 127
          %v1150 = vpop.permute.xlu0 %1149
          %v1153 = vadd.f32 %v1111, %v1148
          %v1154 = vadd.f32 %v1112, %v1150
          %s1155 = sld [smem:[#allocation8 + $0x2]]
          %s1156 = sld [smem:[#allocation8 + $0x33]]
          %v1157 = vstv %s1155
          %v1158 = vmul.f32 %v1157, %v647
          %v1159 = vmul.f32 %v1157, %v648
          %1162 = vrot.lane.b32.xlu0 %v1158, 126
          %v1163 = vpop.permute.xlu0 %1162
          %1164 = vrot.lane.b32.xlu0 %v1159, 126
          %v1165 = vpop.permute.xlu0 %1164
          %v1168 = vadd.f32 %v1133, %v1163
          %v1169 = vadd.f32 %v1134, %v1165
          %v1170 = vstv %s1156
          %v1171 = vmul.f32 %v1170, %v650
          %v1172 = vmul.f32 %v1170, %v651
          %1175 = vrot.lane.b32.xlu0 %v1171, 126
          %v1176 = vpop.permute.xlu0 %1175
          %1177 = vrot.lane.b32.xlu0 %v1172, 126
          %v1178 = vpop.permute.xlu0 %1177
          %v1181 = vadd.f32 %v1153, %v1176
          %v1182 = vadd.f32 %v1154, %v1178
          %s1183 = sld [smem:[#allocation8 + $0x9]]
          %s1184 = sld [smem:[#allocation8 + $0x3a]]
          %v1185 = vstv %s1183
          %v1186 = vmul.f32 %v1185, %v647
          %v1187 = vmul.f32 %v1185, %v648
          %v1188 = vmul.f32 %v1185, %v649
          %v1192 = vrot.slane %v1186, 1
          %v1193 = vrot.slane %v1187, 1
          %v1194 = vsel %vm674, %v1192, %v1193
          %v1195 = vrot.slane %v1188, 1
          %v1196 = vsel %vm674, %v1193, %v1195
          %1197 = vrot.lane.b32.xlu0 %v1194, 126
          %v1198 = vpop.permute.xlu0 %1197
          %1199 = vrot.lane.b32.xlu0 %v1196, 126
          %v1200 = vpop.permute.xlu0 %1199
          %v1203 = vadd.f32 %v1168, %v1198
          %v1204 = vadd.f32 %v1169, %v1200
          %v1205 = vstv %s1184
          %v1206 = vmul.f32 %v1205, %v650
          %v1207 = vmul.f32 %v1205, %v651
          %v1208 = vmul.f32 %v1205, %v652
          %v1212 = vrot.slane %v1206, 1
          %v1213 = vrot.slane %v1207, 1
          %v1214 = vsel %vm674, %v1212, %v1213
          %v1215 = vrot.slane %v1208, 1
          %v1216 = vsel %vm674, %v1213, %v1215
          %1217 = vrot.lane.b32.xlu0 %v1214, 126
          %v1218 = vpop.permute.xlu0 %1217
          %1219 = vrot.lane.b32.xlu0 %v1216, 126
          %v1220 = vpop.permute.xlu0 %1219
          %v1223 = vadd.f32 %v1181, %v1218
          %v1224 = vadd.f32 %v1182, %v1220
          %s1225 = sld [smem:[#allocation8 + $0x10]]
          %s1226 = sld [smem:[#allocation8 + $0x41]]
          %v1227 = vstv %s1225
          %v1228 = vmul.f32 %v1227, %v647
          %v1229 = vmul.f32 %v1227, %v648
          %v1230 = vmul.f32 %v1227, %v649
          %v1234 = vrot.slane %v1228, 2
          %v1235 = vrot.slane %v1229, 2
          %v1236 = vsel %vm709, %v1234, %v1235
          %v1237 = vrot.slane %v1230, 2
          %v1238 = vsel %vm709, %v1235, %v1237
          %1239 = vrot.lane.b32.xlu0 %v1236, 126
          %v1240 = vpop.permute.xlu0 %1239
          %1241 = vrot.lane.b32.xlu0 %v1238, 126
          %v1242 = vpop.permute.xlu0 %1241
          %v1245 = vadd.f32 %v1203, %v1240
          %v1246 = vadd.f32 %v1204, %v1242
          %v1247 = vstv %s1226
          %v1248 = vmul.f32 %v1247, %v650
          %v1249 = vmul.f32 %v1247, %v651
          %v1250 = vmul.f32 %v1247, %v652
          %v1254 = vrot.slane %v1248, 2
          %v1255 = vrot.slane %v1249, 2
          %v1256 = vsel %vm709, %v1254, %v1255
          %v1257 = vrot.slane %v1250, 2
          %v1258 = vsel %vm709, %v1255, %v1257
          %1259 = vrot.lane.b32.xlu0 %v1256, 126
          %v1260 = vpop.permute.xlu0 %1259
          %1261 = vrot.lane.b32.xlu0 %v1258, 126
          %v1262 = vpop.permute.xlu0 %1261
          %v1265 = vadd.f32 %v1223, %v1260
          %v1266 = vadd.f32 %v1224, %v1262
          %s1267 = sld [smem:[#allocation8 + $0x17]]
          %s1268 = sld [smem:[#allocation8 + $0x48]]
          %v1269 = vstv %s1267
          %v1270 = vmul.f32 %v1269, %v647
          %v1271 = vmul.f32 %v1269, %v648
          %v1272 = vmul.f32 %v1269, %v649
          %v1276 = vrot.slane %v1270, 3
          %v1277 = vrot.slane %v1271, 3
          %v1278 = vsel %vm744, %v1276, %v1277
          %v1279 = vrot.slane %v1272, 3
          %v1280 = vsel %vm744, %v1277, %v1279
          %1281 = vrot.lane.b32.xlu0 %v1278, 126
          %v1282 = vpop.permute.xlu0 %1281
          %1283 = vrot.lane.b32.xlu0 %v1280, 126
          %v1284 = vpop.permute.xlu0 %1283
          %v1287 = vadd.f32 %v1245, %v1282
          %v1288 = vadd.f32 %v1246, %v1284
          %v1289 = vstv %s1268
          %v1290 = vmul.f32 %v1289, %v650
          %v1291 = vmul.f32 %v1289, %v651
          %v1292 = vmul.f32 %v1289, %v652
          %v1296 = vrot.slane %v1290, 3
          %v1297 = vrot.slane %v1291, 3
          %v1298 = vsel %vm744, %v1296, %v1297
          %v1299 = vrot.slane %v1292, 3
          %v1300 = vsel %vm744, %v1297, %v1299
          %1301 = vrot.lane.b32.xlu0 %v1298, 126
          %v1302 = vpop.permute.xlu0 %1301
          %1303 = vrot.lane.b32.xlu0 %v1300, 126
          %v1304 = vpop.permute.xlu0 %1303
          %v1307 = vadd.f32 %v1265, %v1302
          %v1308 = vadd.f32 %v1266, %v1304
          %s1309 = sld [smem:[#allocation8 + $0x1e]]
          %s1310 = sld [smem:[#allocation8 + $0x4f]]
          %v1311 = vstv %s1309
          %v1312 = vmul.f32 %v1311, %v647
          %v1313 = vmul.f32 %v1311, %v648
          %v1314 = vmul.f32 %v1311, %v649
          %v1318 = vrot.slane %v1312, 4
          %v1319 = vrot.slane %v1313, 4
          %v1320 = vsel %vm779, %v1318, %v1319
          %v1321 = vrot.slane %v1314, 4
          %v1322 = vsel %vm779, %v1319, %v1321
          %1323 = vrot.lane.b32.xlu0 %v1320, 126
          %v1324 = vpop.permute.xlu0 %1323
          %1325 = vrot.lane.b32.xlu0 %v1322, 126
          %v1326 = vpop.permute.xlu0 %1325
          %v1329 = vadd.f32 %v1287, %v1324
          %v1330 = vadd.f32 %v1288, %v1326
          %v1331 = vstv %s1310
          %v1332 = vmul.f32 %v1331, %v650
          %v1333 = vmul.f32 %v1331, %v651
          %v1334 = vmul.f32 %v1331, %v652
          %v1338 = vrot.slane %v1332, 4
          %v1339 = vrot.slane %v1333, 4
          %v1340 = vsel %vm779, %v1338, %v1339
          %v1341 = vrot.slane %v1334, 4
          %v1342 = vsel %vm779, %v1339, %v1341
          %1343 = vrot.lane.b32.xlu0 %v1340, 126
          %v1344 = vpop.permute.xlu0 %1343
          %1345 = vrot.lane.b32.xlu0 %v1342, 126
          %v1346 = vpop.permute.xlu0 %1345
          %v1349 = vadd.f32 %v1307, %v1344
          %v1350 = vadd.f32 %v1308, %v1346
          %s1351 = sld [smem:[#allocation8 + $0x25]]
          %s1352 = sld [smem:[#allocation8 + $0x56]]
          %v1353 = vstv %s1351
          %v1354 = vmul.f32 %v1353, %v647
          %v1355 = vmul.f32 %v1353, %v648
          %v1356 = vmul.f32 %v1353, %v649
          %v1360 = vrot.slane %v1354, 5
          %v1361 = vrot.slane %v1355, 5
          %v1362 = vsel %vm814, %v1360, %v1361
          %v1363 = vrot.slane %v1356, 5
          %v1364 = vsel %vm814, %v1361, %v1363
          %1365 = vrot.lane.b32.xlu0 %v1362, 126
          %v1366 = vpop.permute.xlu0 %1365
          %1367 = vrot.lane.b32.xlu0 %v1364, 126
          %v1368 = vpop.permute.xlu0 %1367
          %v1371 = vadd.f32 %v1329, %v1366
          %v1372 = vadd.f32 %v1330, %v1368
          %v1373 = vstv %s1352
          %v1374 = vmul.f32 %v1373, %v650
          %v1375 = vmul.f32 %v1373, %v651
          %v1376 = vmul.f32 %v1373, %v652
          %v1380 = vrot.slane %v1374, 5
          %v1381 = vrot.slane %v1375, 5
          %v1382 = vsel %vm814, %v1380, %v1381
          %v1383 = vrot.slane %v1376, 5
          %v1384 = vsel %vm814, %v1381, %v1383
          %1385 = vrot.lane.b32.xlu0 %v1382, 126
          %v1386 = vpop.permute.xlu0 %1385
          %1387 = vrot.lane.b32.xlu0 %v1384, 126
          %v1388 = vpop.permute.xlu0 %1387
          %v1391 = vadd.f32 %v1349, %v1386
          %v1392 = vadd.f32 %v1350, %v1388
          %s1393 = sld [smem:[#allocation8 + $0x2c]]
          %s1394 = sld [smem:[#allocation8 + $0x5d]]
          %v1395 = vstv %s1393
          %v1396 = vmul.f32 %v1395, %v647
          %v1397 = vmul.f32 %v1395, %v648
          %v1398 = vmul.f32 %v1395, %v649
          %v1402 = vrot.slane %v1396, 6
          %v1403 = vrot.slane %v1397, 6
          %v1404 = vsel %vm849, %v1402, %v1403
          %v1405 = vrot.slane %v1398, 6
          %v1406 = vsel %vm849, %v1403, %v1405
          %1407 = vrot.lane.b32.xlu0 %v1404, 126
          %v1408 = vpop.permute.xlu0 %1407
          %1409 = vrot.lane.b32.xlu0 %v1406, 126
          %v1410 = vpop.permute.xlu0 %1409
          %v1413 = vadd.f32 %v1371, %v1408
          %v1414 = vadd.f32 %v1372, %v1410
          %v1415 = vstv %s1394
          %v1416 = vmul.f32 %v1415, %v650
          %v1417 = vmul.f32 %v1415, %v651
          %v1418 = vmul.f32 %v1415, %v652
          %v1422 = vrot.slane %v1416, 6
          %v1423 = vrot.slane %v1417, 6
          %v1424 = vsel %vm849, %v1422, %v1423
          %v1425 = vrot.slane %v1418, 6
          %v1426 = vsel %vm849, %v1423, %v1425
          %1427 = vrot.lane.b32.xlu0 %v1424, 126
          %v1428 = vpop.permute.xlu0 %1427
          %1429 = vrot.lane.b32.xlu0 %v1426, 126
          %v1430 = vpop.permute.xlu0 %1429
          %v1433 = vadd.f32 %v1391, %v1428
          %v1434 = vadd.f32 %v1392, %v1430
          %s1435 = sld [smem:[#allocation8 + $0x3]]
          %s1436 = sld [smem:[#allocation8 + $0x34]]
          %v1437 = vstv %s1435
          %v1438 = vmul.f32 %v1437, %v647
          %v1439 = vmul.f32 %v1437, %v648
          %1442 = vrot.lane.b32.xlu0 %v1438, 125
          %v1443 = vpop.permute.xlu0 %1442
          %1444 = vrot.lane.b32.xlu0 %v1439, 125
          %v1445 = vpop.permute.xlu0 %1444
          %v1448 = vadd.f32 %v1413, %v1443
          %v1449 = vadd.f32 %v1414, %v1445
          %v1450 = vstv %s1436
          %v1451 = vmul.f32 %v1450, %v650
          %v1452 = vmul.f32 %v1450, %v651
          %1455 = vrot.lane.b32.xlu0 %v1451, 125
          %v1456 = vpop.permute.xlu0 %1455
          %1457 = vrot.lane.b32.xlu0 %v1452, 125
          %v1458 = vpop.permute.xlu0 %1457
          %v1461 = vadd.f32 %v1433, %v1456
          %v1462 = vadd.f32 %v1434, %v1458
          %s1463 = sld [smem:[#allocation8 + $0xa]]
          %s1464 = sld [smem:[#allocation8 + $0x3b]]
          %v1465 = vstv %s1463
          %v1466 = vmul.f32 %v1465, %v647
          %v1467 = vmul.f32 %v1465, %v648
          %v1468 = vmul.f32 %v1465, %v649
          %v1472 = vrot.slane %v1466, 1
          %v1473 = vrot.slane %v1467, 1
          %v1474 = vsel %vm674, %v1472, %v1473
          %v1475 = vrot.slane %v1468, 1
          %v1476 = vsel %vm674, %v1473, %v1475
          %1477 = vrot.lane.b32.xlu0 %v1474, 125
          %v1478 = vpop.permute.xlu0 %1477
          %1479 = vrot.lane.b32.xlu0 %v1476, 125
          %v1480 = vpop.permute.xlu0 %1479
          %v1483 = vadd.f32 %v1448, %v1478
          %v1484 = vadd.f32 %v1449, %v1480
          %v1485 = vstv %s1464
          %v1486 = vmul.f32 %v1485, %v650
          %v1487 = vmul.f32 %v1485, %v651
          %v1488 = vmul.f32 %v1485, %v652
          %v1492 = vrot.slane %v1486, 1
          %v1493 = vrot.slane %v1487, 1
          %v1494 = vsel %vm674, %v1492, %v1493
          %v1495 = vrot.slane %v1488, 1
          %v1496 = vsel %vm674, %v1493, %v1495
          %1497 = vrot.lane.b32.xlu0 %v1494, 125
          %v1498 = vpop.permute.xlu0 %1497
          %1499 = vrot.lane.b32.xlu0 %v1496, 125
          %v1500 = vpop.permute.xlu0 %1499
          %v1503 = vadd.f32 %v1461, %v1498
          %v1504 = vadd.f32 %v1462, %v1500
          %s1505 = sld [smem:[#allocation8 + $0x11]]
          %s1506 = sld [smem:[#allocation8 + $0x42]]
          %v1507 = vstv %s1505
          %v1508 = vmul.f32 %v1507, %v647
          %v1509 = vmul.f32 %v1507, %v648
          %v1510 = vmul.f32 %v1507, %v649
          %v1514 = vrot.slane %v1508, 2
          %v1515 = vrot.slane %v1509, 2
          %v1516 = vsel %vm709, %v1514, %v1515
          %v1517 = vrot.slane %v1510, 2
          %v1518 = vsel %vm709, %v1515, %v1517
          %1519 = vrot.lane.b32.xlu0 %v1516, 125
          %v1520 = vpop.permute.xlu0 %1519
          %1521 = vrot.lane.b32.xlu0 %v1518, 125
          %v1522 = vpop.permute.xlu0 %1521
          %v1525 = vadd.f32 %v1483, %v1520
          %v1526 = vadd.f32 %v1484, %v1522
          %v1527 = vstv %s1506
          %v1528 = vmul.f32 %v1527, %v650
          %v1529 = vmul.f32 %v1527, %v651
          %v1530 = vmul.f32 %v1527, %v652
          %v1534 = vrot.slane %v1528, 2
          %v1535 = vrot.slane %v1529, 2
          %v1536 = vsel %vm709, %v1534, %v1535
          %v1537 = vrot.slane %v1530, 2
          %v1538 = vsel %vm709, %v1535, %v1537
          %1539 = vrot.lane.b32.xlu0 %v1536, 125
          %v1540 = vpop.permute.xlu0 %1539
          %1541 = vrot.lane.b32.xlu0 %v1538, 125
          %v1542 = vpop.permute.xlu0 %1541
          %v1545 = vadd.f32 %v1503, %v1540
          %v1546 = vadd.f32 %v1504, %v1542
          %s1547 = sld [smem:[#allocation8 + $0x18]]
          %s1548 = sld [smem:[#allocation8 + $0x49]]
          %v1549 = vstv %s1547
          %v1550 = vmul.f32 %v1549, %v647
          %v1551 = vmul.f32 %v1549, %v648
          %v1552 = vmul.f32 %v1549, %v649
          %v1556 = vrot.slane %v1550, 3
          %v1557 = vrot.slane %v1551, 3
          %v1558 = vsel %vm744, %v1556, %v1557
          %v1559 = vrot.slane %v1552, 3
          %v1560 = vsel %vm744, %v1557, %v1559
          %1561 = vrot.lane.b32.xlu0 %v1558, 125
          %v1562 = vpop.permute.xlu0 %1561
          %1563 = vrot.lane.b32.xlu0 %v1560, 125
          %v1564 = vpop.permute.xlu0 %1563
          %v1567 = vadd.f32 %v1525, %v1562
          %v1568 = vadd.f32 %v1526, %v1564
          %v1569 = vstv %s1548
          %v1570 = vmul.f32 %v1569, %v650
          %v1571 = vmul.f32 %v1569, %v651
          %v1572 = vmul.f32 %v1569, %v652
          %v1576 = vrot.slane %v1570, 3
          %v1577 = vrot.slane %v1571, 3
          %v1578 = vsel %vm744, %v1576, %v1577
          %v1579 = vrot.slane %v1572, 3
          %v1580 = vsel %vm744, %v1577, %v1579
          %1581 = vrot.lane.b32.xlu0 %v1578, 125
          %v1582 = vpop.permute.xlu0 %1581
          %1583 = vrot.lane.b32.xlu0 %v1580, 125
          %v1584 = vpop.permute.xlu0 %1583
          %v1587 = vadd.f32 %v1545, %v1582
          %v1588 = vadd.f32 %v1546, %v1584
          %s1589 = sld [smem:[#allocation8 + $0x1f]]
          %s1590 = sld [smem:[#allocation8 + $0x50]]
          %v1591 = vstv %s1589
          %v1592 = vmul.f32 %v1591, %v647
          %v1593 = vmul.f32 %v1591, %v648
          %v1594 = vmul.f32 %v1591, %v649
          %v1598 = vrot.slane %v1592, 4
          %v1599 = vrot.slane %v1593, 4
          %v1600 = vsel %vm779, %v1598, %v1599
          %v1601 = vrot.slane %v1594, 4
          %v1602 = vsel %vm779, %v1599, %v1601
          %1603 = vrot.lane.b32.xlu0 %v1600, 125
          %v1604 = vpop.permute.xlu0 %1603
          %1605 = vrot.lane.b32.xlu0 %v1602, 125
          %v1606 = vpop.permute.xlu0 %1605
          %v1609 = vadd.f32 %v1567, %v1604
          %v1610 = vadd.f32 %v1568, %v1606
          %v1611 = vstv %s1590
          %v1612 = vmul.f32 %v1611, %v650
          %v1613 = vmul.f32 %v1611, %v651
          %v1614 = vmul.f32 %v1611, %v652
          %v1618 = vrot.slane %v1612, 4
          %v1619 = vrot.slane %v1613, 4
          %v1620 = vsel %vm779, %v1618, %v1619
          %v1621 = vrot.slane %v1614, 4
          %v1622 = vsel %vm779, %v1619, %v1621
          %1623 = vrot.lane.b32.xlu0 %v1620, 125
          %v1624 = vpop.permute.xlu0 %1623
          %1625 = vrot.lane.b32.xlu0 %v1622, 125
          %v1626 = vpop.permute.xlu0 %1625
          %v1629 = vadd.f32 %v1587, %v1624
          %v1630 = vadd.f32 %v1588, %v1626
          %s1631 = sld [smem:[#allocation8 + $0x26]]
          %s1632 = sld [smem:[#allocation8 + $0x57]]
          %v1633 = vstv %s1631
          %v1634 = vmul.f32 %v1633, %v647
          %v1635 = vmul.f32 %v1633, %v648
          %v1636 = vmul.f32 %v1633, %v649
          %v1640 = vrot.slane %v1634, 5
          %v1641 = vrot.slane %v1635, 5
          %v1642 = vsel %vm814, %v1640, %v1641
          %v1643 = vrot.slane %v1636, 5
          %v1644 = vsel %vm814, %v1641, %v1643
          %1645 = vrot.lane.b32.xlu0 %v1642, 125
          %v1646 = vpop.permute.xlu0 %1645
          %1647 = vrot.lane.b32.xlu0 %v1644, 125
          %v1648 = vpop.permute.xlu0 %1647
          %v1651 = vadd.f32 %v1609, %v1646
          %v1652 = vadd.f32 %v1610, %v1648
          %v1653 = vstv %s1632
          %v1654 = vmul.f32 %v1653, %v650
          %v1655 = vmul.f32 %v1653, %v651
          %v1656 = vmul.f32 %v1653, %v652
          %v1660 = vrot.slane %v1654, 5
          %v1661 = vrot.slane %v1655, 5
          %v1662 = vsel %vm814, %v1660, %v1661
          %v1663 = vrot.slane %v1656, 5
          %v1664 = vsel %vm814, %v1661, %v1663
          %1665 = vrot.lane.b32.xlu0 %v1662, 125
          %v1666 = vpop.permute.xlu0 %1665
          %1667 = vrot.lane.b32.xlu0 %v1664, 125
          %v1668 = vpop.permute.xlu0 %1667
          %v1671 = vadd.f32 %v1629, %v1666
          %v1672 = vadd.f32 %v1630, %v1668
          %s1673 = sld [smem:[#allocation8 + $0x2d]]
          %s1674 = sld [smem:[#allocation8 + $0x5e]]
          %v1675 = vstv %s1673
          %v1676 = vmul.f32 %v1675, %v647
          %v1677 = vmul.f32 %v1675, %v648
          %v1678 = vmul.f32 %v1675, %v649
          %v1682 = vrot.slane %v1676, 6
          %v1683 = vrot.slane %v1677, 6
          %v1684 = vsel %vm849, %v1682, %v1683
          %v1685 = vrot.slane %v1678, 6
          %v1686 = vsel %vm849, %v1683, %v1685
          %1687 = vrot.lane.b32.xlu0 %v1684, 125
          %v1688 = vpop.permute.xlu0 %1687
          %1689 = vrot.lane.b32.xlu0 %v1686, 125
          %v1690 = vpop.permute.xlu0 %1689
          %v1693 = vadd.f32 %v1651, %v1688
          %v1694 = vadd.f32 %v1652, %v1690
          %v1695 = vstv %s1674
          %v1696 = vmul.f32 %v1695, %v650
          %v1697 = vmul.f32 %v1695, %v651
          %v1698 = vmul.f32 %v1695, %v652
          %v1702 = vrot.slane %v1696, 6
          %v1703 = vrot.slane %v1697, 6
          %v1704 = vsel %vm849, %v1702, %v1703
          %v1705 = vrot.slane %v1698, 6
          %v1706 = vsel %vm849, %v1703, %v1705
          %1707 = vrot.lane.b32.xlu0 %v1704, 125
          %v1708 = vpop.permute.xlu0 %1707
          %1709 = vrot.lane.b32.xlu0 %v1706, 125
          %v1710 = vpop.permute.xlu0 %1709
          %v1713 = vadd.f32 %v1671, %v1708
          %v1714 = vadd.f32 %v1672, %v1710
          %s1715 = sld [smem:[#allocation8 + $0x4]]
          %s1716 = sld [smem:[#allocation8 + $0x35]]
          %v1717 = vstv %s1715
          %v1718 = vmul.f32 %v1717, %v647
          %v1719 = vmul.f32 %v1717, %v648
          %1722 = vrot.lane.b32.xlu0 %v1718, 124
          %v1723 = vpop.permute.xlu0 %1722
          %1724 = vrot.lane.b32.xlu0 %v1719, 124
          %v1725 = vpop.permute.xlu0 %1724
          %v1728 = vadd.f32 %v1693, %v1723
          %v1729 = vadd.f32 %v1694, %v1725
          %v1730 = vstv %s1716
          %v1731 = vmul.f32 %v1730, %v650
          %v1732 = vmul.f32 %v1730, %v651
          %1735 = vrot.lane.b32.xlu0 %v1731, 124
          %v1736 = vpop.permute.xlu0 %1735
          %1737 = vrot.lane.b32.xlu0 %v1732, 124
          %v1738 = vpop.permute.xlu0 %1737
          %v1741 = vadd.f32 %v1713, %v1736
          %v1742 = vadd.f32 %v1714, %v1738
          %s1743 = sld [smem:[#allocation8 + $0xb]]
          %s1744 = sld [smem:[#allocation8 + $0x3c]]
          %v1745 = vstv %s1743
          %v1746 = vmul.f32 %v1745, %v647
          %v1747 = vmul.f32 %v1745, %v648
          %v1748 = vmul.f32 %v1745, %v649
          %v1752 = vrot.slane %v1746, 1
          %v1753 = vrot.slane %v1747, 1
          %v1754 = vsel %vm674, %v1752, %v1753
          %v1755 = vrot.slane %v1748, 1
          %v1756 = vsel %vm674, %v1753, %v1755
          %1757 = vrot.lane.b32.xlu0 %v1754, 124
          %v1758 = vpop.permute.xlu0 %1757
          %1759 = vrot.lane.b32.xlu0 %v1756, 124
          %v1760 = vpop.permute.xlu0 %1759
          %v1763 = vadd.f32 %v1728, %v1758
          %v1764 = vadd.f32 %v1729, %v1760
          %v1765 = vstv %s1744
          %v1766 = vmul.f32 %v1765, %v650
          %v1767 = vmul.f32 %v1765, %v651
          %v1768 = vmul.f32 %v1765, %v652
          %v1772 = vrot.slane %v1766, 1
          %v1773 = vrot.slane %v1767, 1
          %v1774 = vsel %vm674, %v1772, %v1773
          %v1775 = vrot.slane %v1768, 1
          %v1776 = vsel %vm674, %v1773, %v1775
          %1777 = vrot.lane.b32.xlu0 %v1774, 124
          %v1778 = vpop.permute.xlu0 %1777
          %1779 = vrot.lane.b32.xlu0 %v1776, 124
          %v1780 = vpop.permute.xlu0 %1779
          %v1783 = vadd.f32 %v1741, %v1778
          %v1784 = vadd.f32 %v1742, %v1780
          %s1785 = sld [smem:[#allocation8 + $0x12]]
          %s1786 = sld [smem:[#allocation8 + $0x43]]
          %v1787 = vstv %s1785
          %v1788 = vmul.f32 %v1787, %v647
          %v1789 = vmul.f32 %v1787, %v648
          %v1790 = vmul.f32 %v1787, %v649
          %v1794 = vrot.slane %v1788, 2
          %v1795 = vrot.slane %v1789, 2
          %v1796 = vsel %vm709, %v1794, %v1795
          %v1797 = vrot.slane %v1790, 2
          %v1798 = vsel %vm709, %v1795, %v1797
          %1799 = vrot.lane.b32.xlu0 %v1796, 124
          %v1800 = vpop.permute.xlu0 %1799
          %1801 = vrot.lane.b32.xlu0 %v1798, 124
          %v1802 = vpop.permute.xlu0 %1801
          %v1805 = vadd.f32 %v1763, %v1800
          %v1806 = vadd.f32 %v1764, %v1802
          %v1807 = vstv %s1786
          %v1808 = vmul.f32 %v1807, %v650
          %v1809 = vmul.f32 %v1807, %v651
          %v1810 = vmul.f32 %v1807, %v652
          %v1814 = vrot.slane %v1808, 2
          %v1815 = vrot.slane %v1809, 2
          %v1816 = vsel %vm709, %v1814, %v1815
          %v1817 = vrot.slane %v1810, 2
          %v1818 = vsel %vm709, %v1815, %v1817
          %1819 = vrot.lane.b32.xlu0 %v1816, 124
          %v1820 = vpop.permute.xlu0 %1819
          %1821 = vrot.lane.b32.xlu0 %v1818, 124
          %v1822 = vpop.permute.xlu0 %1821
          %v1825 = vadd.f32 %v1783, %v1820
          %v1826 = vadd.f32 %v1784, %v1822
          %s1827 = sld [smem:[#allocation8 + $0x19]]
          %s1828 = sld [smem:[#allocation8 + $0x4a]]
          %v1829 = vstv %s1827
          %v1830 = vmul.f32 %v1829, %v647
          %v1831 = vmul.f32 %v1829, %v648
          %v1832 = vmul.f32 %v1829, %v649
          %v1836 = vrot.slane %v1830, 3
          %v1837 = vrot.slane %v1831, 3
          %v1838 = vsel %vm744, %v1836, %v1837
          %v1839 = vrot.slane %v1832, 3
          %v1840 = vsel %vm744, %v1837, %v1839
          %1841 = vrot.lane.b32.xlu0 %v1838, 124
          %v1842 = vpop.permute.xlu0 %1841
          %1843 = vrot.lane.b32.xlu0 %v1840, 124
          %v1844 = vpop.permute.xlu0 %1843
          %v1847 = vadd.f32 %v1805, %v1842
          %v1848 = vadd.f32 %v1806, %v1844
          %v1849 = vstv %s1828
          %v1850 = vmul.f32 %v1849, %v650
          %v1851 = vmul.f32 %v1849, %v651
          %v1852 = vmul.f32 %v1849, %v652
          %v1856 = vrot.slane %v1850, 3
          %v1857 = vrot.slane %v1851, 3
          %v1858 = vsel %vm744, %v1856, %v1857
          %v1859 = vrot.slane %v1852, 3
          %v1860 = vsel %vm744, %v1857, %v1859
          %1861 = vrot.lane.b32.xlu0 %v1858, 124
          %v1862 = vpop.permute.xlu0 %1861
          %1863 = vrot.lane.b32.xlu0 %v1860, 124
          %v1864 = vpop.permute.xlu0 %1863
          %v1867 = vadd.f32 %v1825, %v1862
          %v1868 = vadd.f32 %v1826, %v1864
          %s1869 = sld [smem:[#allocation8 + $0x20]]
          %s1870 = sld [smem:[#allocation8 + $0x51]]
          %v1871 = vstv %s1869
          %v1872 = vmul.f32 %v1871, %v647
          %v1873 = vmul.f32 %v1871, %v648
          %v1874 = vmul.f32 %v1871, %v649
          %v1878 = vrot.slane %v1872, 4
          %v1879 = vrot.slane %v1873, 4
          %v1880 = vsel %vm779, %v1878, %v1879
          %v1881 = vrot.slane %v1874, 4
          %v1882 = vsel %vm779, %v1879, %v1881
          %1883 = vrot.lane.b32.xlu0 %v1880, 124
          %v1884 = vpop.permute.xlu0 %1883
          %1885 = vrot.lane.b32.xlu0 %v1882, 124
          %v1886 = vpop.permute.xlu0 %1885
          %v1889 = vadd.f32 %v1847, %v1884
          %v1890 = vadd.f32 %v1848, %v1886
          %v1891 = vstv %s1870
          %v1892 = vmul.f32 %v1891, %v650
          %v1893 = vmul.f32 %v1891, %v651
          %v1894 = vmul.f32 %v1891, %v652
          %v1898 = vrot.slane %v1892, 4
          %v1899 = vrot.slane %v1893, 4
          %v1900 = vsel %vm779, %v1898, %v1899
          %v1901 = vrot.slane %v1894, 4
          %v1902 = vsel %vm779, %v1899, %v1901
          %1903 = vrot.lane.b32.xlu0 %v1900, 124
          %v1904 = vpop.permute.xlu0 %1903
          %1905 = vrot.lane.b32.xlu0 %v1902, 124
          %v1906 = vpop.permute.xlu0 %1905
          %v1909 = vadd.f32 %v1867, %v1904
          %v1910 = vadd.f32 %v1868, %v1906
          %s1911 = sld [smem:[#allocation8 + $0x27]]
          %s1912 = sld [smem:[#allocation8 + $0x58]]
          %v1913 = vstv %s1911
          %v1914 = vmul.f32 %v1913, %v647
          %v1915 = vmul.f32 %v1913, %v648
          %v1916 = vmul.f32 %v1913, %v649
          %v1920 = vrot.slane %v1914, 5
          %v1921 = vrot.slane %v1915, 5
          %v1922 = vsel %vm814, %v1920, %v1921
          %v1923 = vrot.slane %v1916, 5
          %v1924 = vsel %vm814, %v1921, %v1923
          %1925 = vrot.lane.b32.xlu0 %v1922, 124
          %v1926 = vpop.permute.xlu0 %1925
          %1927 = vrot.lane.b32.xlu0 %v1924, 124
          %v1928 = vpop.permute.xlu0 %1927
          %v1931 = vadd.f32 %v1889, %v1926
          %v1932 = vadd.f32 %v1890, %v1928
          %v1933 = vstv %s1912
          %v1934 = vmul.f32 %v1933, %v650
          %v1935 = vmul.f32 %v1933, %v651
          %v1936 = vmul.f32 %v1933, %v652
          %v1940 = vrot.slane %v1934, 5
          %v1941 = vrot.slane %v1935, 5
          %v1942 = vsel %vm814, %v1940, %v1941
          %v1943 = vrot.slane %v1936, 5
          %v1944 = vsel %vm814, %v1941, %v1943
          %1945 = vrot.lane.b32.xlu0 %v1942, 124
          %v1946 = vpop.permute.xlu0 %1945
          %1947 = vrot.lane.b32.xlu0 %v1944, 124
          %v1948 = vpop.permute.xlu0 %1947
          %v1951 = vadd.f32 %v1909, %v1946
          %v1952 = vadd.f32 %v1910, %v1948
          %s1953 = sld [smem:[#allocation8 + $0x2e]]
          %s1954 = sld [smem:[#allocation8 + $0x5f]]
          %v1955 = vstv %s1953
          %v1956 = vmul.f32 %v1955, %v647
          %v1957 = vmul.f32 %v1955, %v648
          %v1958 = vmul.f32 %v1955, %v649
          %v1962 = vrot.slane %v1956, 6
          %v1963 = vrot.slane %v1957, 6
          %v1964 = vsel %vm849, %v1962, %v1963
          %v1965 = vrot.slane %v1958, 6
          %v1966 = vsel %vm849, %v1963, %v1965
          %1967 = vrot.lane.b32.xlu0 %v1964, 124
          %v1968 = vpop.permute.xlu0 %1967
          %1969 = vrot.lane.b32.xlu0 %v1966, 124
          %v1970 = vpop.permute.xlu0 %1969
          %v1973 = vadd.f32 %v1931, %v1968
          %v1974 = vadd.f32 %v1932, %v1970
          %v1975 = vstv %s1954
          %v1976 = vmul.f32 %v1975, %v650
          %v1977 = vmul.f32 %v1975, %v651
          %v1978 = vmul.f32 %v1975, %v652
          %v1982 = vrot.slane %v1976, 6
          %v1983 = vrot.slane %v1977, 6
          %v1984 = vsel %vm849, %v1982, %v1983
          %v1985 = vrot.slane %v1978, 6
          %v1986 = vsel %vm849, %v1983, %v1985
          %1987 = vrot.lane.b32.xlu0 %v1984, 124
          %v1988 = vpop.permute.xlu0 %1987
          %1989 = vrot.lane.b32.xlu0 %v1986, 124
          %v1990 = vpop.permute.xlu0 %1989
          %v1993 = vadd.f32 %v1951, %v1988
          %v1994 = vadd.f32 %v1952, %v1990
          %s1995 = sld [smem:[#allocation8 + $0x5]]
          %s1996 = sld [smem:[#allocation8 + $0x36]]
          %v1997 = vstv %s1995
          %v1998 = vmul.f32 %v1997, %v647
          %v1999 = vmul.f32 %v1997, %v648
          %2002 = vrot.lane.b32.xlu0 %v1998, 123
          %v2003 = vpop.permute.xlu0 %2002
          %2004 = vrot.lane.b32.xlu0 %v1999, 123
          %v2005 = vpop.permute.xlu0 %2004
          %v2008 = vadd.f32 %v1973, %v2003
          %v2009 = vadd.f32 %v1974, %v2005
          %v2010 = vstv %s1996
          %v2011 = vmul.f32 %v2010, %v650
          %v2012 = vmul.f32 %v2010, %v651
          %2015 = vrot.lane.b32.xlu0 %v2011, 123
          %v2016 = vpop.permute.xlu0 %2015
          %2017 = vrot.lane.b32.xlu0 %v2012, 123
          %v2018 = vpop.permute.xlu0 %2017
          %v2021 = vadd.f32 %v1993, %v2016
          %v2022 = vadd.f32 %v1994, %v2018
          %s2023 = sld [smem:[#allocation8 + $0xc]]
          %s2024 = sld [smem:[#allocation8 + $0x3d]]
          %v2025 = vstv %s2023
          %v2026 = vmul.f32 %v2025, %v647
          %v2027 = vmul.f32 %v2025, %v648
          %v2028 = vmul.f32 %v2025, %v649
          %v2032 = vrot.slane %v2026, 1
          %v2033 = vrot.slane %v2027, 1
          %v2034 = vsel %vm674, %v2032, %v2033
          %v2035 = vrot.slane %v2028, 1
          %v2036 = vsel %vm674, %v2033, %v2035
          %2037 = vrot.lane.b32.xlu0 %v2034, 123
          %v2038 = vpop.permute.xlu0 %2037
          %2039 = vrot.lane.b32.xlu0 %v2036, 123
          %v2040 = vpop.permute.xlu0 %2039
          %v2043 = vadd.f32 %v2008, %v2038
          %v2044 = vadd.f32 %v2009, %v2040
          %v2045 = vstv %s2024
          %v2046 = vmul.f32 %v2045, %v650
          %v2047 = vmul.f32 %v2045, %v651
          %v2048 = vmul.f32 %v2045, %v652
          %v2052 = vrot.slane %v2046, 1
          %v2053 = vrot.slane %v2047, 1
          %v2054 = vsel %vm674, %v2052, %v2053
          %v2055 = vrot.slane %v2048, 1
          %v2056 = vsel %vm674, %v2053, %v2055
          %2057 = vrot.lane.b32.xlu0 %v2054, 123
          %v2058 = vpop.permute.xlu0 %2057
          %2059 = vrot.lane.b32.xlu0 %v2056, 123
          %v2060 = vpop.permute.xlu0 %2059
          %v2063 = vadd.f32 %v2021, %v2058
          %v2064 = vadd.f32 %v2022, %v2060
          %s2065 = sld [smem:[#allocation8 + $0x13]]
          %s2066 = sld [smem:[#allocation8 + $0x44]]
          %v2067 = vstv %s2065
          %v2068 = vmul.f32 %v2067, %v647
          %v2069 = vmul.f32 %v2067, %v648
          %v2070 = vmul.f32 %v2067, %v649
          %v2074 = vrot.slane %v2068, 2
          %v2075 = vrot.slane %v2069, 2
          %v2076 = vsel %vm709, %v2074, %v2075
          %v2077 = vrot.slane %v2070, 2
          %v2078 = vsel %vm709, %v2075, %v2077
          %2079 = vrot.lane.b32.xlu0 %v2076, 123
          %v2080 = vpop.permute.xlu0 %2079
          %2081 = vrot.lane.b32.xlu0 %v2078, 123
          %v2082 = vpop.permute.xlu0 %2081
          %v2085 = vadd.f32 %v2043, %v2080
          %v2086 = vadd.f32 %v2044, %v2082
          %v2087 = vstv %s2066
          %v2088 = vmul.f32 %v2087, %v650
          %v2089 = vmul.f32 %v2087, %v651
          %v2090 = vmul.f32 %v2087, %v652
          %v2094 = vrot.slane %v2088, 2
          %v2095 = vrot.slane %v2089, 2
          %v2096 = vsel %vm709, %v2094, %v2095
          %v2097 = vrot.slane %v2090, 2
          %v2098 = vsel %vm709, %v2095, %v2097
          %2099 = vrot.lane.b32.xlu0 %v2096, 123
          %v2100 = vpop.permute.xlu0 %2099
          %2101 = vrot.lane.b32.xlu0 %v2098, 123
          %v2102 = vpop.permute.xlu0 %2101
          %v2105 = vadd.f32 %v2063, %v2100
          %v2106 = vadd.f32 %v2064, %v2102
          %s2107 = sld [smem:[#allocation8 + $0x1a]]
          %s2108 = sld [smem:[#allocation8 + $0x4b]]
          %v2109 = vstv %s2107
          %v2110 = vmul.f32 %v2109, %v647
          %v2111 = vmul.f32 %v2109, %v648
          %v2112 = vmul.f32 %v2109, %v649
          %v2116 = vrot.slane %v2110, 3
          %v2117 = vrot.slane %v2111, 3
          %v2118 = vsel %vm744, %v2116, %v2117
          %v2119 = vrot.slane %v2112, 3
          %v2120 = vsel %vm744, %v2117, %v2119
          %2121 = vrot.lane.b32.xlu0 %v2118, 123
          %v2122 = vpop.permute.xlu0 %2121
          %2123 = vrot.lane.b32.xlu0 %v2120, 123
          %v2124 = vpop.permute.xlu0 %2123
          %v2127 = vadd.f32 %v2085, %v2122
          %v2128 = vadd.f32 %v2086, %v2124
          %v2129 = vstv %s2108
          %v2130 = vmul.f32 %v2129, %v650
          %v2131 = vmul.f32 %v2129, %v651
          %v2132 = vmul.f32 %v2129, %v652
          %v2136 = vrot.slane %v2130, 3
          %v2137 = vrot.slane %v2131, 3
          %v2138 = vsel %vm744, %v2136, %v2137
          %v2139 = vrot.slane %v2132, 3
          %v2140 = vsel %vm744, %v2137, %v2139
          %2141 = vrot.lane.b32.xlu0 %v2138, 123
          %v2142 = vpop.permute.xlu0 %2141
          %2143 = vrot.lane.b32.xlu0 %v2140, 123
          %v2144 = vpop.permute.xlu0 %2143
          %v2147 = vadd.f32 %v2105, %v2142
          %v2148 = vadd.f32 %v2106, %v2144
          %s2149 = sld [smem:[#allocation8 + $0x21]]
          %s2150 = sld [smem:[#allocation8 + $0x52]]
          %v2151 = vstv %s2149
          %v2152 = vmul.f32 %v2151, %v647
          %v2153 = vmul.f32 %v2151, %v648
          %v2154 = vmul.f32 %v2151, %v649
          %v2158 = vrot.slane %v2152, 4
          %v2159 = vrot.slane %v2153, 4
          %v2160 = vsel %vm779, %v2158, %v2159
          %v2161 = vrot.slane %v2154, 4
          %v2162 = vsel %vm779, %v2159, %v2161
          %2163 = vrot.lane.b32.xlu0 %v2160, 123
          %v2164 = vpop.permute.xlu0 %2163
          %2165 = vrot.lane.b32.xlu0 %v2162, 123
          %v2166 = vpop.permute.xlu0 %2165
          %v2169 = vadd.f32 %v2127, %v2164
          %v2170 = vadd.f32 %v2128, %v2166
          %v2171 = vstv %s2150
          %v2172 = vmul.f32 %v2171, %v650
          %v2173 = vmul.f32 %v2171, %v651
          %v2174 = vmul.f32 %v2171, %v652
          %v2178 = vrot.slane %v2172, 4
          %v2179 = vrot.slane %v2173, 4
          %v2180 = vsel %vm779, %v2178, %v2179
          %v2181 = vrot.slane %v2174, 4
          %v2182 = vsel %vm779, %v2179, %v2181
          %2183 = vrot.lane.b32.xlu0 %v2180, 123
          %v2184 = vpop.permute.xlu0 %2183
          %2185 = vrot.lane.b32.xlu0 %v2182, 123
          %v2186 = vpop.permute.xlu0 %2185
          %v2189 = vadd.f32 %v2147, %v2184
          %v2190 = vadd.f32 %v2148, %v2186
          %s2191 = sld [smem:[#allocation8 + $0x28]]
          %s2192 = sld [smem:[#allocation8 + $0x59]]
          %v2193 = vstv %s2191
          %v2194 = vmul.f32 %v2193, %v647
          %v2195 = vmul.f32 %v2193, %v648
          %v2196 = vmul.f32 %v2193, %v649
          %v2200 = vrot.slane %v2194, 5
          %v2201 = vrot.slane %v2195, 5
          %v2202 = vsel %vm814, %v2200, %v2201
          %v2203 = vrot.slane %v2196, 5
          %v2204 = vsel %vm814, %v2201, %v2203
          %2205 = vrot.lane.b32.xlu0 %v2202, 123
          %v2206 = vpop.permute.xlu0 %2205
          %2207 = vrot.lane.b32.xlu0 %v2204, 123
          %v2208 = vpop.permute.xlu0 %2207
          %v2211 = vadd.f32 %v2169, %v2206
          %v2212 = vadd.f32 %v2170, %v2208
          %v2213 = vstv %s2192
          %v2214 = vmul.f32 %v2213, %v650
          %v2215 = vmul.f32 %v2213, %v651
          %v2216 = vmul.f32 %v2213, %v652
          %v2220 = vrot.slane %v2214, 5
          %v2221 = vrot.slane %v2215, 5
          %v2222 = vsel %vm814, %v2220, %v2221
          %v2223 = vrot.slane %v2216, 5
          %v2224 = vsel %vm814, %v2221, %v2223
          %2225 = vrot.lane.b32.xlu0 %v2222, 123
          %v2226 = vpop.permute.xlu0 %2225
          %2227 = vrot.lane.b32.xlu0 %v2224, 123
          %v2228 = vpop.permute.xlu0 %2227
          %v2231 = vadd.f32 %v2189, %v2226
          %v2232 = vadd.f32 %v2190, %v2228
          %s2233 = sld [smem:[#allocation8 + $0x2f]]
          %s2234 = sld [smem:[#allocation8 + $0x60]]
          %v2235 = vstv %s2233
          %v2236 = vmul.f32 %v2235, %v647
          %v2237 = vmul.f32 %v2235, %v648
          %v2238 = vmul.f32 %v2235, %v649
          %v2242 = vrot.slane %v2236, 6
          %v2243 = vrot.slane %v2237, 6
          %v2244 = vsel %vm849, %v2242, %v2243
          %v2245 = vrot.slane %v2238, 6
          %v2246 = vsel %vm849, %v2243, %v2245
          %2247 = vrot.lane.b32.xlu0 %v2244, 123
          %v2248 = vpop.permute.xlu0 %2247
          %2249 = vrot.lane.b32.xlu0 %v2246, 123
          %v2250 = vpop.permute.xlu0 %2249
          %v2253 = vadd.f32 %v2211, %v2248
          %v2254 = vadd.f32 %v2212, %v2250
          %v2255 = vstv %s2234
          %v2256 = vmul.f32 %v2255, %v650
          %v2257 = vmul.f32 %v2255, %v651
          %v2258 = vmul.f32 %v2255, %v652
          %v2262 = vrot.slane %v2256, 6
          %v2263 = vrot.slane %v2257, 6
          %v2264 = vsel %vm849, %v2262, %v2263
          %v2265 = vrot.slane %v2258, 6
          %v2266 = vsel %vm849, %v2263, %v2265
          %2267 = vrot.lane.b32.xlu0 %v2264, 123
          %v2268 = vpop.permute.xlu0 %2267
          %2269 = vrot.lane.b32.xlu0 %v2266, 123
          %v2270 = vpop.permute.xlu0 %2269
          %v2273 = vadd.f32 %v2231, %v2268
          %v2274 = vadd.f32 %v2232, %v2270
          %s2275 = sld [smem:[#allocation8 + $0x6]]
          %s2276 = sld [smem:[#allocation8 + $0x37]]
          %v2277 = vstv %s2275
          %v2278 = vmul.f32 %v2277, %v647
          %v2279 = vmul.f32 %v2277, %v648
          %2282 = vrot.lane.b32.xlu0 %v2278, 122
          %v2283 = vpop.permute.xlu0 %2282
          %2284 = vrot.lane.b32.xlu0 %v2279, 122
          %v2285 = vpop.permute.xlu0 %2284
          %v2288 = vadd.f32 %v2253, %v2283
          %v2289 = vadd.f32 %v2254, %v2285
          %v2290 = vstv %s2276
          %v2291 = vmul.f32 %v2290, %v650
          %v2292 = vmul.f32 %v2290, %v651
          %2295 = vrot.lane.b32.xlu0 %v2291, 122
          %v2296 = vpop.permute.xlu0 %2295
          %2297 = vrot.lane.b32.xlu0 %v2292, 122
          %v2298 = vpop.permute.xlu0 %2297
          %v2301 = vadd.f32 %v2273, %v2296
          %v2302 = vadd.f32 %v2274, %v2298
          %s2303 = sld [smem:[#allocation8 + $0xd]]
          %s2304 = sld [smem:[#allocation8 + $0x3e]]
          %v2305 = vstv %s2303
          %v2306 = vmul.f32 %v2305, %v647
          %v2307 = vmul.f32 %v2305, %v648
          %v2308 = vmul.f32 %v2305, %v649
          %v2312 = vrot.slane %v2306, 1
          %v2313 = vrot.slane %v2307, 1
          %v2314 = vsel %vm674, %v2312, %v2313
          %v2315 = vrot.slane %v2308, 1
          %v2316 = vsel %vm674, %v2313, %v2315
          %2317 = vrot.lane.b32.xlu0 %v2314, 122
          %v2318 = vpop.permute.xlu0 %2317
          %2319 = vrot.lane.b32.xlu0 %v2316, 122
          %v2320 = vpop.permute.xlu0 %2319
          %v2323 = vadd.f32 %v2288, %v2318
          %v2324 = vadd.f32 %v2289, %v2320
          %v2325 = vstv %s2304
          %v2326 = vmul.f32 %v2325, %v650
          %v2327 = vmul.f32 %v2325, %v651
          %v2328 = vmul.f32 %v2325, %v652
          %v2332 = vrot.slane %v2326, 1
          %v2333 = vrot.slane %v2327, 1
          %v2334 = vsel %vm674, %v2332, %v2333
          %v2335 = vrot.slane %v2328, 1
          %v2336 = vsel %vm674, %v2333, %v2335
          %2337 = vrot.lane.b32.xlu0 %v2334, 122
          %v2338 = vpop.permute.xlu0 %2337
          %2339 = vrot.lane.b32.xlu0 %v2336, 122
          %v2340 = vpop.permute.xlu0 %2339
          %v2343 = vadd.f32 %v2301, %v2338
          %v2344 = vadd.f32 %v2302, %v2340
          %s2345 = sld [smem:[#allocation8 + $0x14]]
          %s2346 = sld [smem:[#allocation8 + $0x45]]
          %v2347 = vstv %s2345
          %v2348 = vmul.f32 %v2347, %v647
          %v2349 = vmul.f32 %v2347, %v648
          %v2350 = vmul.f32 %v2347, %v649
          %v2354 = vrot.slane %v2348, 2
          %v2355 = vrot.slane %v2349, 2
          %v2356 = vsel %vm709, %v2354, %v2355
          %v2357 = vrot.slane %v2350, 2
          %v2358 = vsel %vm709, %v2355, %v2357
          %2359 = vrot.lane.b32.xlu0 %v2356, 122
          %v2360 = vpop.permute.xlu0 %2359
          %2361 = vrot.lane.b32.xlu0 %v2358, 122
          %v2362 = vpop.permute.xlu0 %2361
          %v2365 = vadd.f32 %v2323, %v2360
          %v2366 = vadd.f32 %v2324, %v2362
          %v2367 = vstv %s2346
          %v2368 = vmul.f32 %v2367, %v650
          %v2369 = vmul.f32 %v2367, %v651
          %v2370 = vmul.f32 %v2367, %v652
          %v2374 = vrot.slane %v2368, 2
          %v2375 = vrot.slane %v2369, 2
          %v2376 = vsel %vm709, %v2374, %v2375
          %v2377 = vrot.slane %v2370, 2
          %v2378 = vsel %vm709, %v2375, %v2377
          %2379 = vrot.lane.b32.xlu0 %v2376, 122
          %v2380 = vpop.permute.xlu0 %2379
          %2381 = vrot.lane.b32.xlu0 %v2378, 122
          %v2382 = vpop.permute.xlu0 %2381
          %v2385 = vadd.f32 %v2343, %v2380
          %v2386 = vadd.f32 %v2344, %v2382
          %s2387 = sld [smem:[#allocation8 + $0x1b]]
          %s2388 = sld [smem:[#allocation8 + $0x4c]]
          %v2389 = vstv %s2387
          %v2390 = vmul.f32 %v2389, %v647
          %v2391 = vmul.f32 %v2389, %v648
          %v2392 = vmul.f32 %v2389, %v649
          %v2396 = vrot.slane %v2390, 3
          %v2397 = vrot.slane %v2391, 3
          %v2398 = vsel %vm744, %v2396, %v2397
          %v2399 = vrot.slane %v2392, 3
          %v2400 = vsel %vm744, %v2397, %v2399
          %2401 = vrot.lane.b32.xlu0 %v2398, 122
          %v2402 = vpop.permute.xlu0 %2401
          %2403 = vrot.lane.b32.xlu0 %v2400, 122
          %v2404 = vpop.permute.xlu0 %2403
          %v2407 = vadd.f32 %v2365, %v2402
          %v2408 = vadd.f32 %v2366, %v2404
          %v2409 = vstv %s2388
          %v2410 = vmul.f32 %v2409, %v650
          %v2411 = vmul.f32 %v2409, %v651
          %v2412 = vmul.f32 %v2409, %v652
          %v2416 = vrot.slane %v2410, 3
          %v2417 = vrot.slane %v2411, 3
          %v2418 = vsel %vm744, %v2416, %v2417
          %v2419 = vrot.slane %v2412, 3
          %v2420 = vsel %vm744, %v2417, %v2419
          %2421 = vrot.lane.b32.xlu0 %v2418, 122
          %v2422 = vpop.permute.xlu0 %2421
          %2423 = vrot.lane.b32.xlu0 %v2420, 122
          %v2424 = vpop.permute.xlu0 %2423
          %v2427 = vadd.f32 %v2385, %v2422
          %v2428 = vadd.f32 %v2386, %v2424
          %s2429 = sld [smem:[#allocation8 + $0x22]]
          %s2430 = sld [smem:[#allocation8 + $0x53]]
          %v2431 = vstv %s2429
          %v2432 = vmul.f32 %v2431, %v647
          %v2433 = vmul.f32 %v2431, %v648
          %v2434 = vmul.f32 %v2431, %v649
          %v2438 = vrot.slane %v2432, 4
          %v2439 = vrot.slane %v2433, 4
          %v2440 = vsel %vm779, %v2438, %v2439
          %v2441 = vrot.slane %v2434, 4
          %v2442 = vsel %vm779, %v2439, %v2441
          %2443 = vrot.lane.b32.xlu0 %v2440, 122
          %v2444 = vpop.permute.xlu0 %2443
          %2445 = vrot.lane.b32.xlu0 %v2442, 122
          %v2446 = vpop.permute.xlu0 %2445
          %v2449 = vadd.f32 %v2407, %v2444
          %v2450 = vadd.f32 %v2408, %v2446
          %v2451 = vstv %s2430
          %v2452 = vmul.f32 %v2451, %v650
          %v2453 = vmul.f32 %v2451, %v651
          %v2454 = vmul.f32 %v2451, %v652
          %v2458 = vrot.slane %v2452, 4
          %v2459 = vrot.slane %v2453, 4
          %v2460 = vsel %vm779, %v2458, %v2459
          %v2461 = vrot.slane %v2454, 4
          %v2462 = vsel %vm779, %v2459, %v2461
          %2463 = vrot.lane.b32.xlu0 %v2460, 122
          %v2464 = vpop.permute.xlu0 %2463
          %2465 = vrot.lane.b32.xlu0 %v2462, 122
          %v2466 = vpop.permute.xlu0 %2465
          %v2469 = vadd.f32 %v2427, %v2464
          %v2470 = vadd.f32 %v2428, %v2466
          %s2471 = sld [smem:[#allocation8 + $0x29]]
          %s2472 = sld [smem:[#allocation8 + $0x5a]]
          %v2473 = vstv %s2471
          %v2474 = vmul.f32 %v2473, %v647
          %v2475 = vmul.f32 %v2473, %v648
          %v2476 = vmul.f32 %v2473, %v649
          %v2480 = vrot.slane %v2474, 5
          %v2481 = vrot.slane %v2475, 5
          %v2482 = vsel %vm814, %v2480, %v2481
          %v2483 = vrot.slane %v2476, 5
          %v2484 = vsel %vm814, %v2481, %v2483
          %2485 = vrot.lane.b32.xlu0 %v2482, 122
          %v2486 = vpop.permute.xlu0 %2485
          %2487 = vrot.lane.b32.xlu0 %v2484, 122
          %v2488 = vpop.permute.xlu0 %2487
          %v2491 = vadd.f32 %v2449, %v2486
          %v2492 = vadd.f32 %v2450, %v2488
          %v2493 = vstv %s2472
          %v2494 = vmul.f32 %v2493, %v650
          %v2495 = vmul.f32 %v2493, %v651
          %v2496 = vmul.f32 %v2493, %v652
          %v2500 = vrot.slane %v2494, 5
          %v2501 = vrot.slane %v2495, 5
          %v2502 = vsel %vm814, %v2500, %v2501
          %v2503 = vrot.slane %v2496, 5
          %v2504 = vsel %vm814, %v2501, %v2503
          %2505 = vrot.lane.b32.xlu0 %v2502, 122
          %v2506 = vpop.permute.xlu0 %2505
          %2507 = vrot.lane.b32.xlu0 %v2504, 122
          %v2508 = vpop.permute.xlu0 %2507
          %v2511 = vadd.f32 %v2469, %v2506
          %v2512 = vadd.f32 %v2470, %v2508
          %s2513 = sld [smem:[#allocation8 + $0x30]]
          %s2514 = sld [smem:[#allocation8 + $0x61]]
          %v2515 = vstv %s2513
          %v2516 = vmul.f32 %v2515, %v647
          %v2517 = vmul.f32 %v2515, %v648
          %v2518 = vmul.f32 %v2515, %v649
          %v2522 = vrot.slane %v2516, 6
          %v2523 = vrot.slane %v2517, 6
          %v2524 = vsel %vm849, %v2522, %v2523
          %v2525 = vrot.slane %v2518, 6
          %v2526 = vsel %vm849, %v2523, %v2525
          %2527 = vrot.lane.b32.xlu0 %v2524, 122
          %v2528 = vpop.permute.xlu0 %2527
          %2529 = vrot.lane.b32.xlu0 %v2526, 122
          %v2530 = vpop.permute.xlu0 %2529
          %v2533 = vadd.f32 %v2491, %v2528
          %v2534 = vadd.f32 %v2492, %v2530
          %v2535 = vstv %s2514
          %v2536 = vmul.f32 %v2535, %v650
          %v2537 = vmul.f32 %v2535, %v651
          %v2538 = vmul.f32 %v2535, %v652
          %v2542 = vrot.slane %v2536, 6
          %v2543 = vrot.slane %v2537, 6
          %v2544 = vsel %vm849, %v2542, %v2543
          %v2545 = vrot.slane %v2538, 6
          %v2546 = vsel %vm849, %v2543, %v2545
          %2547 = vrot.lane.b32.xlu0 %v2544, 122
          %v2548 = vpop.permute.xlu0 %2547
          %2549 = vrot.lane.b32.xlu0 %v2546, 122
          %v2550 = vpop.permute.xlu0 %2549
          %v2553 = vadd.f32 %v2511, %v2548
          %v2554 = vadd.f32 %v2512, %v2550
          %v2555 = vadd.f32 %v2533, %v2553
          %v2556 = vadd.f32 %v2534, %v2554
          %s2557 = sld [smem:[#allocation7]]
          %v2558 = vstv %s2557
          %v2559 = vadd.f32 %v2555, %v2558
          %v2560 = vadd.f32 %v2556, %v2558
          %v2561 = vxor.u32 %v2559, 2147483648
          %v2562 = vxor.u32 %v2560, 2147483648
          %v2563 = vmul.f32 %v2561, 1.442695
          %v2564 = vpow.pop %v2563
          %v2565 = vmul.f32 %v2562, 1.442695
          %v2566 = vpow.pop %v2565
          %v2567 = vadd.f32 %v2564, 1.0
          %v2568 = vadd.f32 %v2566, 1.0
          %v2569 = vrcp.pop %v2567
          %v2570 = vmul.f32 1.0, %v2569
          %v2571 = vrcp.pop %v2568
          %v2572 = vmul.f32 1.0, %v2571
          %vm2573 = vcmp.lt.s32.totalorder %v277, 16
          %vm2574 = vmand %vm278, %vm2573
          %2575 = vst.msk [vmem:[%s217] sm:$0x1] %vm2574, %v2570
          %v2578 = vunpack.c.l.s4 1966171168
          %v2579 = vunpack.c.0.s8 %v2578
          %v2580 = vlaneseq
          %v2581 = vshrl.u32 %v2580, 7
          %v2582 = vsub.s32 %v2579, %v2581
          %v2583 = vrot.slane %v2570, %v2582
          %v2584 = vcombine.high %v2583, %v2583
          %v2586 = vunpack.c.l.s4 1966171168
          %v2587 = vunpack.c.0.s8 %v2586
          %v2588 = vlaneseq
          %v2589 = vshrl.u32 %v2588, 7
          %v2590 = vsub.s32 %v2587, %v2589
          %v2591 = vrot.slane %v2583, %v2590
          %v2593 = vunpack.c.l.s4 1966171168
          %v2594 = vunpack.c.0.s8 %v2593
          %v2595 = vlaneseq
          %v2596 = vshrl.u32 %v2595, 7
          %v2597 = vsub.s32 %v2594, %v2596
          %v2598 = vrot.slane %v2584, %v2597
          %2599 = vrot.lane.b32.xlu0 %v2598, 16
          %v2600 = vpop.permute.xlu0 %2599
          %vm2602 = vcmp.ge.s32.totalorder %v277, 16
          %vm2603 = vcmp.lt.s32.totalorder %v277, 32
          %vm2604 = vmand %vm2602, %vm2603
          %2605 = vst.msk [vmem:[%s217] sm:$0x1] %vm2604, %v2600
          %v2606 = vcombine.high %v2591, %v2591
          %2607 = vrot.lane.b32.xlu0 %v2606, 32
          %v2608 = vpop.permute.xlu0 %2607
          %vm2610 = vcmp.ge.s32.totalorder %v277, 32
          %vm2611 = vcmp.lt.s32.totalorder %v277, 48
          %vm2612 = vmand %vm2610, %vm2611
          %2613 = vst.msk [vmem:[%s217] sm:$0x1] %vm2612, %v2608
          %v2614 = vcombine.high %v2598, %v2598
          %2615 = vrot.lane.b32.xlu0 %v2614, 48
          %v2616 = vpop.permute.xlu0 %2615
          %vm2618 = vcmp.ge.s32.totalorder %v277, 48
          %vm2619 = vcmp.lt.s32.totalorder %v277, 64
          %vm2620 = vmand %vm2618, %vm2619
          %2621 = vst.msk [vmem:[%s217] sm:$0x1] %vm2620, %v2616
          %v2622 = vcombine.high %v2570, %v2570
          %v2624 = vunpack.c.l.s4 1966171168
          %v2625 = vunpack.c.0.s8 %v2624
          %v2626 = vlaneseq
          %v2627 = vshrl.u32 %v2626, 7
          %v2628 = vsub.s32 %v2625, %v2627
          %v2629 = vrot.slane %v2622, %v2628
          %v2631 = vunpack.c.l.s4 1966171168
          %v2632 = vunpack.c.0.s8 %v2631
          %v2633 = vlaneseq
          %v2634 = vshrl.u32 %v2633, 7
          %v2635 = vsub.s32 %v2632, %v2634
          %v2636 = vrot.slane %v2629, %v2635
          %2637 = vrot.lane.b32.xlu0 %v2636, 64
          %v2638 = vpop.permute.xlu0 %2637
          %vm2640 = vcmp.ge.s32.totalorder %v277, 64
          %vm2641 = vcmp.lt.s32.totalorder %v277, 80
          %vm2642 = vmand %vm2640, %vm2641
          %2643 = vst.msk [vmem:[%s217] sm:$0x1] %vm2642, %v2638
          %v2644 = vcombine.high %v2629, %v2629
          %v2646 = vunpack.c.l.s4 1966171168
          %v2647 = vunpack.c.0.s8 %v2646
          %v2648 = vlaneseq
          %v2649 = vshrl.u32 %v2648, 7
          %v2650 = vsub.s32 %v2647, %v2649
          %v2651 = vrot.slane %v2644, %v2650
          %2652 = vrot.lane.b32.xlu0 %v2651, 80
          %v2653 = vpop.permute.xlu0 %2652
          %vm2655 = vcmp.ge.s32.totalorder %v277, 80
          %vm2656 = vcmp.lt.s32.totalorder %v277, 96
          %vm2657 = vmand %vm2655, %vm2656
          %2658 = vst.msk [vmem:[%s217] sm:$0x1] %vm2657, %v2653
          %v2659 = vcombine.high %v2636, %v2636
          %2660 = vrot.lane.b32.xlu0 %v2659, 96
          %v2661 = vpop.permute.xlu0 %2660
          %vm2663 = vcmp.ge.s32.totalorder %v277, 96
          %vm2664 = vcmp.lt.s32.totalorder %v277, 112
          %vm2665 = vmand %vm2663, %vm2664
          %2666 = vst.msk [vmem:[%s217] sm:$0x1] %vm2665, %v2661
          %v2667 = vcombine.high %v2651, %v2651
          %2668 = vrot.lane.b32.xlu0 %v2667, 112
          %v2669 = vpop.permute.xlu0 %2668
          %vm2671 = vcmp.ge.s32.totalorder %v277, 112
          %vm2672 = vcmp.lt.s32.totalorder %v277, 128
          %vm2673 = vmand %vm2671, %vm2672
          %2674 = vst.msk [vmem:[%s217] sm:$0x1] %vm2673, %v2669
          %2675 = vst.msk [vmem:[%s217 + $0x1] sm:$0x1] %vm2574, %v2572
          %v2678 = vunpack.c.l.s4 1966171168
          %v2679 = vunpack.c.0.s8 %v2678
          %v2680 = vlaneseq
          %v2681 = vshrl.u32 %v2680, 7
          %v2682 = vsub.s32 %v2679, %v2681
          %v2683 = vrot.slane %v2572, %v2682
          %v2684 = vcombine.high %v2683, %v2683
          %v2686 = vunpack.c.l.s4 1966171168
          %v2687 = vunpack.c.0.s8 %v2686
          %v2688 = vlaneseq
          %v2689 = vshrl.u32 %v2688, 7
          %v2690 = vsub.s32 %v2687, %v2689
          %v2691 = vrot.slane %v2683, %v2690
          %v2693 = vunpack.c.l.s4 1966171168
          %v2694 = vunpack.c.0.s8 %v2693
          %v2695 = vlaneseq
          %v2696 = vshrl.u32 %v2695, 7
          %v2697 = vsub.s32 %v2694, %v2696
          %v2698 = vrot.slane %v2684, %v2697
          %2699 = vrot.lane.b32.xlu0 %v2698, 16
          %v2700 = vpop.permute.xlu0 %2699
          %2702 = vst.msk [vmem:[%s217 + $0x1] sm:$0x1] %vm2604, %v2700
          %v2703 = vcombine.high %v2691, %v2691
          %2704 = vrot.lane.b32.xlu0 %v2703, 32
          %v2705 = vpop.permute.xlu0 %2704
          %2707 = vst.msk [vmem:[%s217 + $0x1] sm:$0x1] %vm2612, %v2705
          %v2708 = vcombine.high %v2698, %v2698
          %2709 = vrot.lane.b32.xlu0 %v2708, 48
          %v2710 = vpop.permute.xlu0 %2709
          %2712 = vst.msk [vmem:[%s217 + $0x1] sm:$0x1] %vm2620, %v2710
          %v2713 = vcombine.high %v2572, %v2572
          %v2715 = vunpack.c.l.s4 1966171168
          %v2716 = vunpack.c.0.s8 %v2715
          %v2717 = vlaneseq
          %v2718 = vshrl.u32 %v2717, 7
          %v2719 = vsub.s32 %v2716, %v2718
          %v2720 = vrot.slane %v2713, %v2719
          %v2722 = vunpack.c.l.s4 1966171168
          %v2723 = vunpack.c.0.s8 %v2722
          %v2724 = vlaneseq
          %v2725 = vshrl.u32 %v2724, 7
          %v2726 = vsub.s32 %v2723, %v2725
          %v2727 = vrot.slane %v2720, %v2726
          %2728 = vrot.lane.b32.xlu0 %v2727, 64
          %v2729 = vpop.permute.xlu0 %2728
          %2731 = vst.msk [vmem:[%s217 + $0x1] sm:$0x1] %vm2642, %v2729
          %v2732 = vcombine.high %v2720, %v2720
          %v2734 = vunpack.c.l.s4 1966171168
          %v2735 = vunpack.c.0.s8 %v2734
          %v2736 = vlaneseq
          %v2737 = vshrl.u32 %v2736, 7
          %v2738 = vsub.s32 %v2735, %v2737
          %v2739 = vrot.slane %v2732, %v2738
          %2740 = vrot.lane.b32.xlu0 %v2739, 80
          %v2741 = vpop.permute.xlu0 %2740
          %2743 = vst.msk [vmem:[%s217 + $0x1] sm:$0x1] %vm2657, %v2741
          %v2744 = vcombine.high %v2727, %v2727
          %2745 = vrot.lane.b32.xlu0 %v2744, 96
          %v2746 = vpop.permute.xlu0 %2745
          %2748 = vst.msk [vmem:[%s217 + $0x1] sm:$0x1] %vm2665, %v2746
          %v2749 = vcombine.high %v2739, %v2739
          %2750 = vrot.lane.b32.xlu0 %v2749, 112
          %v2751 = vpop.permute.xlu0 %2750
          %2753 = vst.msk [vmem:[%s217 + $0x1] sm:$0x1] %vm2673, %v2751
        $region48: #{tpu_custom_call.1} parent=31 // pred_fallthru
          _
        %s2754 = sand.u32 %s112, 1
        %s2755 = scalar_lea.sflag [#allocation10], %s2754
        %s2756 = sand.u32 %s112, 1
        %s2757 = smul.addr %s2756, 2
        %s2758 = scalar_lea.vmem [#allocation13], %s2757
        // Predicated region
        $region49: #{tpu_custom_call.1} parent=31 // pred_check
          %p2759 = pneg %p122
        $region50: #{tpu_custom_call.1} parent=31 // pred_check_branch
          %2761 = sbr.rel (%p2759) target = $region52
        $region51: #{tpu_custom_call.1} parent=31 // pred_region
          %s2763 = ssub.s32 32, 32
          %2764 = vsyncadd %s2755, %s2763
          %s2765 = smul.addr %s26, 2
          %s2766 = smul.addr %s2765, 16
          %s2767 = scalar_lea.hbm %s3, %s2766
          %s2769 = sshll.u32 %s2758, 4
          %s2770 = int_to_ptr.vmem [resolvable:$true] %s2769
          %2772 = dma.vmem_to_hbm [thread:$0]  %s2770, 32, %s2767, %s2755
        $region52: #{tpu_custom_call.1} parent=31 // pred_fallthru
          _
      $region32: #{tpu_custom_call.1} parent=5 // pred_fallthru
        _
      %p2773 = scmp.le.s32.totalorder 2, %s17
      // Predicated region
      $region53: #{tpu_custom_call.1} parent=5 // pred_check
        %p2774 = pneg %p2773
      $region54: #{tpu_custom_call.1} parent=5 // pred_check_branch
        %2776 = sbr.rel (%p2774) target = $region56
      $region55: #{tpu_custom_call.1} parent=5 // pred_region
        %s2777 = ssub.s32 %s17, 2
        // Predicated region
        $region57: #{tpu_custom_call.1} parent=55 // pred_check
          %p2778 = pneg %p128
        $region58: #{tpu_custom_call.1} parent=55 // pred_check_branch
          %2780 = sbr.rel (%p2778) target = $region60
        $region59: #{tpu_custom_call.1} parent=55 // pred_region
          %s2781 = sand.u32 %s113, 1
          %s2782 = scalar_lea.sflag [#allocation10], %s2781
          %s2783 = sand.u32 %s113, 1
          %s2784 = smul.addr %s2783, 2
          %s2785 = scalar_lea.vmem [#allocation13], %s2784
          %2786 = dma.done %s2782, 32
        $region60: #{tpu_custom_call.1} parent=55 // pred_fallthru
          _
      $region56: #{tpu_custom_call.1} parent=5 // pred_fallthru
        _
    $region6: #{tpu_custom_call.1} parent=1 // loop_footer
      %s21 = sadd.s32 1, %s17
    $region7: #{tpu_custom_call.1} parent=1 // loop_footer_branch
      %16 = sbr.rel target = $region3
    $region8: #{tpu_custom_call.1} parent=1 // loop_exit
      _
    %2787 = vsyncpa [#allocation9], 1
    %s2788 = scalar_lea.sflag [#allocation9], 1
    %2789 = vsyncpa %s2788, 1
    %2790 = vsyncpa [#allocation10], 1
    %s2791 = scalar_lea.sflag [#allocation10], 1
    %2792 = vsyncpa %s2791, 1
    %2793 = vsyncpa [#allocation11], 1
    %s2794 = scalar_lea.sflag [#allocation11], 1
    %2795 = vsyncpa %s2794, 1

</llo_original>
